<compile_context>
chip_gen: v5e
topology: v5e:2x2
jax: 0.10.0
libtpu: 0.0.40
codegen_flags: <defaults>
</compile_context>

<pallas_src>
import numpy as np

import jax
import jax.numpy as jnp
from jax.experimental import pallas as pl
from jax.experimental.pallas import tpu as pltpu

EPS = 1e-5
HG = 7                      # 7x7 spatial grid of the fc feature map
CIN1, COUT1 = 32, 16        # deconv1 channels
CIN2, COUT2 = 16, 1         # deconv2 channels
PHASE1 = 4                  # 2x2 output phases of deconv1 (14 = 2*7)
PHASE2 = 16                 # 4x4 output "super-phases" of deconv2 (28 = 4*7)


# =====================================================================
# Host-side (one-time) weight restructuring for the sub-pixel deconvs.
#
# ConvTranspose2d(k=4, s=2, p=1):  out[Y, X] += x[iy, ix] * W[ci, co, ky, kx]
# with Y = 2*iy - 1 + ky,  X = 2*ix - 1 + kx.
#
# Row layout used by the deconv kernel:  row r = n*7 + ty  (ty = 7-grid row).
#   deconv1 output lane  = tx*64 + py*32 + px*16 + co   (spatial = 2*t + p)
#   deconv2 output lane  = sy*28 + tx*4  + sx           (spatial = 4*t + s)
# so (N*7, 112) reshapes row-major to the exact PyTorch (N, 784) output.
# Each output grid row ty only needs input grid rows ty-1, ty, ty+1; those
# three row-shifted copies form the three K-blocks of the matmuls below.
# =====================================================================
def _build_fc2_perm():
    # fc2 column j is (c, y, x) after PyTorch's view(-1,32,7,7); reorder the
    # columns to (y, x, c) so the fc output is already the NHWC feature map.
    return np.arange(CIN1 * HG * HG).reshape(CIN1, HG, HG).transpose(1, 2, 0).reshape(-1)


def _build_w1_struct(w):
    """deconv1 weight (Cin,Cout,4,4) -> (3*7*32, 7*2*2*16) = (672, 448).

    Row index  = (dy+1)*224 + ix*32 + ci   (dy = input grid row - output grid row)
    Col index  = tx*64 + py*32 + px*16 + co
    Entry      = W[ci,co,ky,kx] iff  2*dy = py + 1 - ky  and  ix = tx + dx with
                 2*dx = px + 1 - kx  (direct consequence of Y = 2*iy - 1 + ky).
    """
    w = np.asarray(w, np.float32)
    out = np.zeros((3, HG, CIN1, HG, 2, 2, COUT1), np.float32)
    for ky in range(4):
        for kx in range(4):
            for py in range(2):
                if (py + 1 - ky) % 2:
                    continue
                dy = (py + 1 - ky) // 2            # in {-1, 0, +1}
                for px in range(2):
                    if (px + 1 - kx) % 2:
                        continue
                    dx = (px + 1 - kx) // 2
                    for tx in range(HG):
                        ix = tx + dx
                        if 0 <= ix < HG:
                            out[dy + 1, ix, :, tx, py, px, :] += w[:, :, ky, kx]
    return out.reshape(3 * HG * CIN1, HG * 2 * 2 * COUT1)


def _build_w2_struct(w):
    """deconv2 weight (16,1,4,4) -> (3*7*2*2*16, 4*7*4) = (1344, 112).

    Row index = (dy+1)*448 + tx_in*64 + py*32 + px*16 + ci   (deconv1 lane order)
    Col index = sy*28 + tx_out*4 + sx      (output pixel (4t+sy, 4t+sx))
    Entry     = W[ci,0,ky,kx] iff  4*dy = sy + 1 - ky - 2*py  and
                tx_in = tx_out + dx with 4*dx = sx + 1 - kx - 2*px.
    """
    w = np.asarray(w, np.float32)
    out = np.zeros((3, HG, 2, 2, CIN2, 4, HG, 4), np.float32)
    for ky in range(4):
        for kx in range(4):
            for py in range(2):
                for px in range(2):
                    for sy in range(4):
                        ny = sy + 1 - ky - 2 * py
                        if ny % 4:
                            continue
                        dy = ny // 4
                        if not -1 <= dy <= 1:
                            continue
                        for sx in range(4):
                            nx = sx + 1 - kx - 2 * px
                            if nx % 4:
                                continue
                            dx = nx // 4
                            for tx in range(HG):
                                ti = tx + dx
                                if 0 <= ti < HG:
                                    out[dy + 1, ti, py, px, :, sy, tx, sx] += w[:, 0, ky, kx]
    return out.reshape(3 * HG * 2 * 2 * CIN2, 4 * HG * 4)


def _build_bn2_reduce():
    # 448x448 0/1 matrix: one dot both reduces the 28 lane-groups of each
    # BatchNorm2d channel (co = lane % 16) and broadcasts the result back to
    # all 448 lanes.
    lane = np.arange(HG * 2 * 2 * COUT1)
    return ((lane[:, None] % COUT1) == (lane[None, :] % COUT1)).astype(np.float32)


def _build_row_shift_mats(batch):
    # up[r] = row r-1 of the same image (0 at ty==0); dn[r] = row r+1 (0 at ty==6)
    rows = batch * HG
    sup = np.zeros((rows, rows), np.float32)
    sdn = np.zeros((rows, rows), np.float32)
    for r in range(rows):
        if r % HG != 0:
            sup[r, r - 1] = 1.0
        if r % HG != HG - 1:
            sdn[r, r + 1] = 1.0
    return sup, sdn


def prepare_params(p, batch):
    """PyTorch-layout parameters -> kernel-ready operands (one-time cost)."""
    perm = _build_fc2_perm()
    sup, sdn = _build_row_shift_mats(batch)
    rep1 = HG * 2 * 2                      # 28 lane groups per deconv1 channel
    return {
        # fused fc kernel
        "w1": p["fc1_w"], "b1": p["fc1_b"].reshape(1, -1),
        "g1": p["bn1_g"].reshape(1, -1), "be1": p["bn1_b"].reshape(1, -1),
        "w2": p["fc2_w"][:, perm], "b2": p["fc2_b"][perm].reshape(1, -1),
        "g2": p["bn2_g"][perm].reshape(1, -1), "be2": p["bn2_b"][perm].reshape(1, -1),
        # fused deconv kernel
        "sup": jnp.asarray(sup), "sdn": jnp.asarray(sdn),
        "w1s": jnp.asarray(_build_w1_struct(p["dc1_w"])),
        "b1t": jnp.tile(p["dc1_b"], rep1).reshape(1, -1),
        "g1t": jnp.tile(p["bn3_g"], rep1).reshape(1, -1),
        "be1t": jnp.tile(p["bn3_b"], rep1).reshape(1, -1),
        "mred": jnp.asarray(_build_bn2_reduce()),
        "w2s": jnp.asarray(_build_w2_struct(p["dc2_w"])),
        "b2t": jnp.tile(p["dc2_b"], 4 * HG * 4).reshape(1, -1),
    }


# =====================================================================
# Kernel A: Linear -> BN1d(train) -> ReLU -> Linear -> BN1d(train) -> ReLU
# (single pallas_call, whole problem in one VMEM-resident block)
# =====================================================================
def _fc_kernel(x_ref, w1_ref, b1_ref, g1_ref, be1_ref,
               w2_ref, b2_ref, g2_ref, be2_ref, o_ref):
    def bn_relu(h, g, b):
        m = jnp.mean(h, axis=0, keepdims=True)                 # batch stats
        v = jnp.mean((h - m) ** 2, axis=0, keepdims=True)      # biased, like PyTorch
        return jnp.maximum((h - m) * jax.lax.rsqrt(v + EPS) * g + b, 0.0)

    h = jnp.dot(x_ref[...], w1_ref[...], preferred_element_type=jnp.float32) + b1_ref[...]
    h = bn_relu(h, g1_ref[...], be1_ref[...])
    h = jnp.dot(h, w2_ref[...], preferred_element_type=jnp.float32) + b2_ref[...]
    o_ref[...] = bn_relu(h, g2_ref[...], be2_ref[...])


def fc_forward(x, kp):
    n = x.shape[0]
    dout = kp["w2"].shape[1]
    full = lambda a: pl.BlockSpec(a.shape, lambda i: (0, 0))
    args = (x, kp["w1"], kp["b1"], kp["g1"], kp["be1"],
            kp["w2"], kp["b2"], kp["g2"], kp["be2"])
    return pl.pallas_call(
        _fc_kernel,
        out_shape=jax.ShapeDtypeStruct((n, dout), jnp.float32),
        grid=(1,),
        in_specs=[full(a) for a in args],
        out_specs=pl.BlockSpec((n, dout), lambda i: (0, 0)),
        compiler_params=pltpu.CompilerParams(dimension_semantics=("arbitrary",)),
    )(*args)


# =====================================================================
# Kernel B: deconv1 -> BN2d(train) -> ReLU -> deconv2 -> Sigmoid
# Rows = (n, ty) 7-grid rows; all taps / phases live in the K / N dims of a
# handful of MXU matmuls.  Output (n*7, 112) == (n, 784) row-major.
# =====================================================================
def _deconv_kernel(fm_ref, sup_ref, sdn_ref, w1s_ref, b1_ref, g1_ref, be1_ref,
                   mred_ref, w2s_ref, b2_ref, o_ref):
    f32 = jnp.float32
    fm = fm_ref[...]                                   # (R, 224) R = n*7
    sup = sup_ref[...]
    sdn = sdn_ref[...]
    rows = fm.shape[0]

    # ---- deconv1: 3 row-shifted copies x structured weight blocks ----------
    up = jnp.dot(sup, fm, preferred_element_type=f32)  # grid row ty-1 (0 at edge)
    dn = jnp.dot(sdn, fm, preferred_element_type=f32)  # grid row ty+1 (0 at edge)
    w1s = w1s_ref[...]                                 # (672, 448)
    h = (jnp.dot(up, w1s[0:224, :], preferred_element_type=f32)
         + jnp.dot(fm, w1s[224:448, :], preferred_element_type=f32)
         + jnp.dot(dn, w1s[448:672, :], preferred_element_type=f32)
         + b1_ref[...])                                # (R, 448)

    # ---- BatchNorm2d (training): per-channel stats over all N*14*14 pixels.
    # channel = lane % 16; mred both group-reduces and re-broadcasts per lane.
    cnt = rows * HG * 2 * 2
    mean = jnp.dot(jnp.sum(h, axis=0, keepdims=True), mred_ref[...],
                   preferred_element_type=f32) * (1.0 / cnt)
    ex2 = jnp.dot(jnp.sum(h * h, axis=0, keepdims=True), mred_ref[...],
                  preferred_element_type=f32) * (1.0 / cnt)
    var = ex2 - mean * mean                            # biased, like PyTorch
    h = jnp.maximum((h - mean) * jax.lax.rsqrt(var + EPS) * g1_ref[...] + be1_ref[...],
                    0.0)

    # ---- deconv2 (cout=1): same 3-block scheme, output lanes = 112 pixels ---
    up2 = jnp.dot(sup, h, preferred_element_type=f32)
    dn2 = jnp.dot(sdn, h, preferred_element_type=f32)
    w2s = w2s_ref[...]                                 # (1344, 112)
    o = (jnp.dot(up2, w2s[0:448, :], preferred_element_type=f32)
         + jnp.dot(h, w2s[448:896, :], preferred_element_type=f32)
         + jnp.dot(dn2, w2s[896:1344, :], preferred_element_type=f32)
         + b2_ref[...])
    o_ref[...] = jax.nn.sigmoid(o)                     # (R, 112), lane-dense store


def deconv_forward(fm_flat, kp):
    # fm_flat: (n, 1568) already in NHWC order (y*224 + x*32 + c) thanks to the
    # fc2 column permutation, so this reshape is a free row-major view.
    n = fm_flat.shape[0]
    rows = n * HG
    fm56 = fm_flat.reshape(rows, HG * CIN1)            # (n*7, 224)

    full = lambda a: pl.BlockSpec(a.shape, lambda i: (0, 0))
    args = (fm56, kp["sup"], kp["sdn"], kp["w1s"], kp["b1t"], kp["g1t"],
            kp["be1t"], kp["mred"], kp["w2s"], kp["b2t"])
    out = pl.pallas_call(
        _deconv_kernel,
        out_shape=jax.ShapeDtypeStruct((rows, 4 * HG * 4), jnp.float32),   # (n*7, 112)
        grid=(1,),
        in_specs=[full(a) for a in args],
        out_specs=pl.BlockSpec((rows, 4 * HG * 4), lambda i: (0, 0)),
        compiler_params=pltpu.CompilerParams(dimension_semantics=("arbitrary",)),
    )(*args)
    # (n*7, 112) -> (n, 784): rows already ordered so this is the exact
    # row-major (Y, X) flatten of the PyTorch output (C == 1).
    return out.reshape(n, 28 * 28)


def decoder_cnn_forward(x, kparams):
    fm = fc_forward(x, kparams)
    return deconv_forward(fm, kparams)


# =====================================================================
# Pure-JAX reference (zero-upsampled dense transpose-conv) for validation.
# =====================================================================
def reference_forward(x, p):
    hp = jax.lax.Precision.HIGHEST

    def bn(h, g, b, axes):
        m = jnp.mean(h, axis=axes, keepdims=True)
        v = jnp.mean((h - m) ** 2, axis=axes, keepdims=True)
        return (h - m) * jax.lax.rsqrt(v + EPS) * g + b

    h = jnp.dot(x, p["fc1_w"], precision=hp) + p["fc1_b"]
    h = jax.nn.relu(bn(h, p["bn1_g"], p["bn1_b"], 0))
    h = jnp.dot(h, p["fc2_w"], precision=hp) + p["fc2_b"]
    h = jax.nn.relu(bn(h, p["bn2_g"], p["bn2_b"], 0))
    fm = h.reshape(-1, 32, 7, 7)                       # NCHW

    def deconv(z, w, b):
        wf = jnp.transpose(jnp.flip(w, (2, 3)), (1, 0, 2, 3))   # (Cout,Cin,4,4)
        y = jax.lax.conv_general_dilated(
            z, wf, window_strides=(1, 1), padding=((2, 2), (2, 2)),
            lhs_dilation=(2, 2), dimension_numbers=("NCHW", "OIHW", "NCHW"),
            precision=hp)
        return y + b.reshape(1, -1, 1, 1)

    d1 = deconv(fm, p["dc1_w"], p["dc1_b"])
    d1 = jax.nn.relu(bn(d1, p["bn3_g"].reshape(1, -1, 1, 1),
                        p["bn3_b"].reshape(1, -1, 1, 1), (0, 2, 3)))
    d2 = jax.nn.sigmoid(deconv(d1, p["dc2_w"], p["dc2_b"]))
    return d2.reshape(x.shape[0], 784)


# =====================================================================
# Deterministic parameter init (PyTorch layouts)
# =====================================================================
def init_params(key):
    input_dim = 62
    fc2_out = 32 * 7 * 7

    def unif(k, shape, fan_in):
        bound = 1.0 / jnp.sqrt(jnp.float32(fan_in))
        return jax.random.uniform(k, shape, jnp.float32, -bound, bound)

    ks = jax.random.split(key, 8)
    return {
        "fc1_w": unif(ks[0], (input_dim, 256), input_dim),
        "fc1_b": unif(ks[1], (256,), input_dim),
        "bn1_g": jnp.ones((256,), jnp.float32),
        "bn1_b": jnp.zeros((256,), jnp.float32),
        "fc2_w": unif(ks[2], (256, fc2_out), 256),
        "fc2_b": unif(ks[3], (fc2_out,), 256),
        "bn2_g": jnp.ones((fc2_out,), jnp.float32),
        "bn2_b": jnp.zeros((fc2_out,), jnp.float32),
        # ConvTranspose2d weights in PyTorch layout (Cin, Cout, kH, kW)
        "dc1_w": unif(ks[4], (32, 16, 4, 4), 16 * 16),
        "dc1_b": unif(ks[5], (16,), 16 * 16),
        "bn3_g": jnp.ones((16,), jnp.float32),
        "bn3_b": jnp.zeros((16,), jnp.float32),
        "dc2_w": unif(ks[6], (16, 1, 4, 4), 1 * 16),
        "dc2_b": unif(ks[7], (1,), 1 * 16),
    }


if __name__ == "__main__":
    key = jax.random.PRNGKey(0)
    pkey, xkey = jax.random.split(key)
    params = init_params(pkey)

    batch = 8
    kparams = prepare_params(params, batch)
    x = jax.random.normal(xkey, (batch, 62), jnp.float32)    # latent input (N, 62)

    fwd = jax.jit(decoder_cnn_forward)
    out = jax.block_until_ready(fwd(x, kparams))

    assert out.shape == (batch, 784), out.shape
    assert bool(jnp.all(jnp.isfinite(out)))
    assert bool(jnp.all((out >= 0.0) & (out <= 1.0)))        # sigmoid range

    ref = reference_forward(x, params)
    err = float(jnp.max(jnp.abs(out - ref)))
    assert err < 5e-3, f"max abs err vs reference = {err}"

    print("KERNEL_OK")
</pallas_src>

<mosaic_0001>
module attributes {stable_mosaic.version = 11 : i64} {
  func.func @_fc_kernel(%arg0: i32, %arg1: memref<8x62xf32, #tpu.memory_space<vmem>>, %arg2: memref<62x256xf32, #tpu.memory_space<vmem>>, %arg3: memref<1x256xf32, #tpu.memory_space<vmem>>, %arg4: memref<1x256xf32, #tpu.memory_space<vmem>>, %arg5: memref<1x256xf32, #tpu.memory_space<vmem>>, %arg6: memref<256x1568xf32, #tpu.memory_space<vmem>>, %arg7: memref<1x1568xf32, #tpu.memory_space<vmem>>, %arg8: memref<1x1568xf32, #tpu.memory_space<vmem>>, %arg9: memref<1x1568xf32, #tpu.memory_space<vmem>>, %arg10: memref<8x1568xf32, #tpu.memory_space<vmem>>) attributes {dimension_semantics = [#tpu.dimension_semantics<arbitrary>], iteration_bounds = array<i64: 1>, scalar_prefetch = 0 : i64, scratch_operands = 0 : i64, tpu.core_type = #tpu.core_type<tc>, window_params = [{pipeline_mode = #tpu.pipeline_mode<synchronous>, transform_indices = @transform_0, window_bounds = array<i64: 8, 62>}, {pipeline_mode = #tpu.pipeline_mode<synchronous>, transform_indices = @transform_1, window_bounds = array<i64: 62, 256>}, {pipeline_mode = #tpu.pipeline_mode<synchronous>, transform_indices = @transform_2, window_bounds = array<i64: 1, 256>}, {pipeline_mode = #tpu.pipeline_mode<synchronous>, transform_indices = @transform_3, window_bounds = array<i64: 1, 256>}, {pipeline_mode = #tpu.pipeline_mode<synchronous>, transform_indices = @transform_4, window_bounds = array<i64: 1, 256>}, {pipeline_mode = #tpu.pipeline_mode<synchronous>, transform_indices = @transform_5, window_bounds = array<i64: 256, 1568>}, {pipeline_mode = #tpu.pipeline_mode<synchronous>, transform_indices = @transform_6, window_bounds = array<i64: 1, 1568>}, {pipeline_mode = #tpu.pipeline_mode<synchronous>, transform_indices = @transform_7, window_bounds = array<i64: 1, 1568>}, {pipeline_mode = #tpu.pipeline_mode<synchronous>, transform_indices = @transform_8, window_bounds = array<i64: 1, 1568>}, {pipeline_mode = #tpu.pipeline_mode<synchronous>, transform_indices = @transform_9, window_bounds = array<i64: 8, 1568>}]} {
    %c0 = arith.constant 0 : index
    %c0_0 = arith.constant 0 : index
    %0 = vector.load %arg1[%c0, %c0_0] : memref<8x62xf32, #tpu.memory_space<vmem>>, vector<8x62xf32>
    %c0_1 = arith.constant 0 : index
    %c0_2 = arith.constant 0 : index
    %1 = vector.load %arg2[%c0_1, %c0_2] : memref<62x256xf32, #tpu.memory_space<vmem>>, vector<62x256xf32>
    %cst = arith.constant dense<0.000000e+00> : vector<8x256xf32>
    %2 = tpu.matmul %0, %1, %cst {dimension_numbers = #tpu.dot_dimension_numbers<[1], [0], [0], [1], [0, 0, 1, 1], [], []>} : vector<8x62xf32>, vector<62x256xf32>, vector<8x256xf32> -> vector<8x256xf32>
    %c0_3 = arith.constant 0 : index
    %c0_4 = arith.constant 0 : index
    %3 = vector.load %arg3[%c0_3, %c0_4] : memref<1x256xf32, #tpu.memory_space<vmem>>, vector<1x256xf32>
    %4 = vector.broadcast %3 : vector<1x256xf32> to vector<8x256xf32>
    %5 = arith.addf %2, %4 : vector<8x256xf32>
    %c0_5 = arith.constant 0 : index
    %c0_6 = arith.constant 0 : index
    %6 = vector.load %arg4[%c0_5, %c0_6] : memref<1x256xf32, #tpu.memory_space<vmem>>, vector<1x256xf32>
    %c0_7 = arith.constant 0 : index
    %c0_8 = arith.constant 0 : index
    %7 = vector.load %arg5[%c0_7, %c0_8] : memref<1x256xf32, #tpu.memory_space<vmem>>, vector<1x256xf32>
    %cst_9 = arith.constant dense<0.000000e+00> : vector<256xf32>
    %8 = vector.multi_reduction <add>, %5, %cst_9 [0] : vector<8x256xf32> to vector<256xf32>
    %9 = vector.shape_cast %8 : vector<256xf32> to vector<1x256xf32>
    %cst_10 = arith.constant 8.000000e+00 : f32
    %10 = vector.broadcast %cst_10 : f32 to vector<1x256xf32>
    %11 = arith.divf %9, %10 : vector<1x256xf32>
    %12 = vector.broadcast %11 : vector<1x256xf32> to vector<8x256xf32>
    %13 = arith.subf %5, %12 : vector<8x256xf32>
    %14 = arith.mulf %13, %13 : vector<8x256xf32>
    %cst_11 = arith.constant dense<0.000000e+00> : vector<256xf32>
    %15 = vector.multi_reduction <add>, %14, %cst_11 [0] : vector<8x256xf32> to vector<256xf32>
    %16 = vector.shape_cast %15 : vector<256xf32> to vector<1x256xf32>
    %cst_12 = arith.constant 8.000000e+00 : f32
    %17 = vector.broadcast %cst_12 : f32 to vector<1x256xf32>
    %18 = arith.divf %16, %17 : vector<1x256xf32>
    %19 = vector.broadcast %11 : vector<1x256xf32> to vector<8x256xf32>
    %20 = arith.subf %5, %19 : vector<8x256xf32>
    %cst_13 = arith.constant 9.99999974E-6 : f32
    %21 = vector.broadcast %cst_13 : f32 to vector<1x256xf32>
    %22 = arith.addf %18, %21 : vector<1x256xf32>
    %23 = math.rsqrt %22 : vector<1x256xf32>
    %24 = vector.broadcast %23 : vector<1x256xf32> to vector<8x256xf32>
    %25 = arith.mulf %20, %24 : vector<8x256xf32>
    %26 = vector.broadcast %6 : vector<1x256xf32> to vector<8x256xf32>
    %27 = arith.mulf %25, %26 : vector<8x256xf32>
    %28 = vector.broadcast %7 : vector<1x256xf32> to vector<8x256xf32>
    %29 = arith.addf %27, %28 : vector<8x256xf32>
    %cst_14 = arith.constant 0.000000e+00 : f32
    %30 = vector.broadcast %cst_14 : f32 to vector<8x256xf32>
    %31 = arith.maximumf %29, %30 : vector<8x256xf32>
    %c0_15 = arith.constant 0 : index
    %c0_16 = arith.constant 0 : index
    %32 = vector.load %arg6[%c0_15, %c0_16] : memref<256x1568xf32, #tpu.memory_space<vmem>>, vector<256x1568xf32>
    %cst_17 = arith.constant dense<0.000000e+00> : vector<8x1568xf32>
    %33 = tpu.matmul %31, %32, %cst_17 {dimension_numbers = #tpu.dot_dimension_numbers<[1], [0], [0], [1], [0, 0, 1, 1], [], []>} : vector<8x256xf32>, vector<256x1568xf32>, vector<8x1568xf32> -> vector<8x1568xf32>
    %c0_18 = arith.constant 0 : index
    %c0_19 = arith.constant 0 : index
    %34 = vector.load %arg7[%c0_18, %c0_19] : memref<1x1568xf32, #tpu.memory_space<vmem>>, vector<1x1568xf32>
    %35 = vector.broadcast %34 : vector<1x1568xf32> to vector<8x1568xf32>
    %36 = arith.addf %33, %35 : vector<8x1568xf32>
    %c0_20 = arith.constant 0 : index
    %c0_21 = arith.constant 0 : index
    %37 = vector.load %arg8[%c0_20, %c0_21] : memref<1x1568xf32, #tpu.memory_space<vmem>>, vector<1x1568xf32>
    %c0_22 = arith.constant 0 : index
    %c0_23 = arith.constant 0 : index
    %38 = vector.load %arg9[%c0_22, %c0_23] : memref<1x1568xf32, #tpu.memory_space<vmem>>, vector<1x1568xf32>
    %cst_24 = arith.constant dense<0.000000e+00> : vector<1568xf32>
    %39 = vector.multi_reduction <add>, %36, %cst_24 [0] : vector<8x1568xf32> to vector<1568xf32>
    %40 = vector.shape_cast %39 : vector<1568xf32> to vector<1x1568xf32>
    %cst_25 = arith.constant 8.000000e+00 : f32
    %41 = vector.broadcast %cst_25 : f32 to vector<1x1568xf32>
    %42 = arith.divf %40, %41 : vector<1x1568xf32>
    %43 = vector.broadcast %42 : vector<1x1568xf32> to vector<8x1568xf32>
    %44 = arith.subf %36, %43 : vector<8x1568xf32>
    %45 = arith.mulf %44, %44 : vector<8x1568xf32>
    %cst_26 = arith.constant dense<0.000000e+00> : vector<1568xf32>
    %46 = vector.multi_reduction <add>, %45, %cst_26 [0] : vector<8x1568xf32> to vector<1568xf32>
    %47 = vector.shape_cast %46 : vector<1568xf32> to vector<1x1568xf32>
    %cst_27 = arith.constant 8.000000e+00 : f32
    %48 = vector.broadcast %cst_27 : f32 to vector<1x1568xf32>
    %49 = arith.divf %47, %48 : vector<1x1568xf32>
    %50 = vector.broadcast %42 : vector<1x1568xf32> to vector<8x1568xf32>
    %51 = arith.subf %36, %50 : vector<8x1568xf32>
    %cst_28 = arith.constant 9.99999974E-6 : f32
    %52 = vector.broadcast %cst_28 : f32 to vector<1x1568xf32>
    %53 = arith.addf %49, %52 : vector<1x1568xf32>
    %54 = math.rsqrt %53 : vector<1x1568xf32>
    %55 = vector.broadcast %54 : vector<1x1568xf32> to vector<8x1568xf32>
    %56 = arith.mulf %51, %55 : vector<8x1568xf32>
    %57 = vector.broadcast %37 : vector<1x1568xf32> to vector<8x1568xf32>
    %58 = arith.mulf %56, %57 : vector<8x1568xf32>
    %59 = vector.broadcast %38 : vector<1x1568xf32> to vector<8x1568xf32>
    %60 = arith.addf %58, %59 : vector<8x1568xf32>
    %cst_29 = arith.constant 0.000000e+00 : f32
    %61 = vector.broadcast %cst_29 : f32 to vector<8x1568xf32>
    %62 = arith.maximumf %60, %61 : vector<8x1568xf32>
    %c0_30 = arith.constant 0 : index
    %c0_31 = arith.constant 0 : index
    %63 = vector.load %arg10[%c0_30, %c0_31] : memref<8x1568xf32, #tpu.memory_space<vmem>>, vector<8x1568xf32>
    tpu.vector_store %arg10[%c0_30, %c0_31], %62 {strides = array<i32>} : memref<8x1568xf32, #tpu.memory_space<vmem>>, vector<8x1568xf32>,
    return
  }
  func.func @transform_0(%arg0: i32) -> (i32, i32) {
    %c0_i32 = arith.constant 0 : i32
    %c0_i32_0 = arith.constant 0 : i32
    %c0_i32_1 = arith.constant 0 : i32
    return %c0_i32, %c0_i32_0 : i32, i32
  }
  func.func @transform_1(%arg0: i32) -> (i32, i32) {
    %c0_i32 = arith.constant 0 : i32
    %c0_i32_0 = arith.constant 0 : i32
    %c0_i32_1 = arith.constant 0 : i32
    return %c0_i32, %c0_i32_0 : i32, i32
  }
  func.func @transform_2(%arg0: i32) -> (i32, i32) {
    %c0_i32 = arith.constant 0 : i32
    %c0_i32_0 = arith.constant 0 : i32
    %c0_i32_1 = arith.constant 0 : i32
    return %c0_i32, %c0_i32_0 : i32, i32
  }
  func.func @transform_3(%arg0: i32) -> (i32, i32) {
    %c0_i32 = arith.constant 0 : i32
    %c0_i32_0 = arith.constant 0 : i32
    %c0_i32_1 = arith.constant 0 : i32
    return %c0_i32, %c0_i32_0 : i32, i32
  }
  func.func @transform_4(%arg0: i32) -> (i32, i32) {
    %c0_i32 = arith.constant 0 : i32
    %c0_i32_0 = arith.constant 0 : i32
    %c0_i32_1 = arith.constant 0 : i32
    return %c0_i32, %c0_i32_0 : i32, i32
  }
  func.func @transform_5(%arg0: i32) -> (i32, i32) {
    %c0_i32 = arith.constant 0 : i32
    %c0_i32_0 = arith.constant 0 : i32
    %c0_i32_1 = arith.constant 0 : i32
    return %c0_i32, %c0_i32_0 : i32, i32
  }
  func.func @transform_6(%arg0: i32) -> (i32, i32) {
    %c0_i32 = arith.constant 0 : i32
    %c0_i32_0 = arith.constant 0 : i32
    %c0_i32_1 = arith.constant 0 : i32
    return %c0_i32, %c0_i32_0 : i32, i32
  }
  func.func @transform_7(%arg0: i32) -> (i32, i32) {
    %c0_i32 = arith.constant 0 : i32
    %c0_i32_0 = arith.constant 0 : i32
    %c0_i32_1 = arith.constant 0 : i32
    return %c0_i32, %c0_i32_0 : i32, i32
  }
  func.func @transform_8(%arg0: i32) -> (i32, i32) {
    %c0_i32 = arith.constant 0 : i32
    %c0_i32_0 = arith.constant 0 : i32
    %c0_i32_1 = arith.constant 0 : i32
    return %c0_i32, %c0_i32_0 : i32, i32
  }
  func.func @transform_9(%arg0: i32) -> (i32, i32) {
    %c0_i32 = arith.constant 0 : i32
    %c0_i32_0 = arith.constant 0 : i32
    %c0_i32_1 = arith.constant 0 : i32
    return %c0_i32, %c0_i32_0 : i32, i32
  }
}

module attributes {stable_mosaic.version = 11 : i64} {
  func.func @_deconv_kernel(%arg0: i32, %arg1: memref<56x224xf32, #tpu.memory_space<vmem>>, %arg2: memref<56x56xf32, #tpu.memory_space<vmem>>, %arg3: memref<56x56xf32, #tpu.memory_space<vmem>>, %arg4: memref<672x448xf32, #tpu.memory_space<vmem>>, %arg5: memref<1x448xf32, #tpu.memory_space<vmem>>, %arg6: memref<1x448xf32, #tpu.memory_space<vmem>>, %arg7: memref<1x448xf32, #tpu.memory_space<vmem>>, %arg8: memref<448x448xf32, #tpu.memory_space<vmem>>, %arg9: memref<1344x112xf32, #tpu.memory_space<vmem>>, %arg10: memref<1x112xf32, #tpu.memory_space<vmem>>, %arg11: memref<56x112xf32, #tpu.memory_space<vmem>>) attributes {dimension_semantics = [#tpu.dimension_semantics<arbitrary>], iteration_bounds = array<i64: 1>, scalar_prefetch = 0 : i64, scratch_operands = 0 : i64, tpu.core_type = #tpu.core_type<tc>, window_params = [{pipeline_mode = #tpu.pipeline_mode<synchronous>, transform_indices = @transform_0, window_bounds = array<i64: 56, 224>}, {pipeline_mode = #tpu.pipeline_mode<synchronous>, transform_indices = @transform_1, window_bounds = array<i64: 56, 56>}, {pipeline_mode = #tpu.pipeline_mode<synchronous>, transform_indices = @transform_2, window_bounds = array<i64: 56, 56>}, {pipeline_mode = #tpu.pipeline_mode<synchronous>, transform_indices = @transform_3, window_bounds = array<i64: 672, 448>}, {pipeline_mode = #tpu.pipeline_mode<synchronous>, transform_indices = @transform_4, window_bounds = array<i64: 1, 448>}, {pipeline_mode = #tpu.pipeline_mode<synchronous>, transform_indices = @transform_5, window_bounds = array<i64: 1, 448>}, {pipeline_mode = #tpu.pipeline_mode<synchronous>, transform_indices = @transform_6, window_bounds = array<i64: 1, 448>}, {pipeline_mode = #tpu.pipeline_mode<synchronous>, transform_indices = @transform_7, window_bounds = array<i64: 448, 448>}, {pipeline_mode = #tpu.pipeline_mode<synchronous>, transform_indices = @transform_8, window_bounds = array<i64: 1344, 112>}, {pipeline_mode = #tpu.pipeline_mode<synchronous>, transform_indices = @transform_9, window_bounds = array<i64: 1, 112>}, {pipeline_mode = #tpu.pipeline_mode<synchronous>, transform_indices = @transform_10, window_bounds = array<i64: 56, 112>}]} {
    %c0 = arith.constant 0 : index
    %c0_0 = arith.constant 0 : index
    %0 = vector.load %arg1[%c0, %c0_0] : memref<56x224xf32, #tpu.memory_space<vmem>>, vector<56x224xf32>
    %c0_1 = arith.constant 0 : index
    %c0_2 = arith.constant 0 : index
    %1 = vector.load %arg2[%c0_1, %c0_2] : memref<56x56xf32, #tpu.memory_space<vmem>>, vector<56x56xf32>
    %c0_3 = arith.constant 0 : index
    %c0_4 = arith.constant 0 : index
    %2 = vector.load %arg3[%c0_3, %c0_4] : memref<56x56xf32, #tpu.memory_space<vmem>>, vector<56x56xf32>
    %cst = arith.constant dense<0.000000e+00> : vector<56x224xf32>
    %3 = tpu.matmul %1, %0, %cst {dimension_numbers = #tpu.dot_dimension_numbers<[1], [0], [0], [1], [0, 0, 1, 1], [], []>} : vector<56x56xf32>, vector<56x224xf32>, vector<56x224xf32> -> vector<56x224xf32>
    %cst_5 = arith.constant dense<0.000000e+00> : vector<56x224xf32>
    %4 = tpu.matmul %2, %0, %cst_5 {dimension_numbers = #tpu.dot_dimension_numbers<[1], [0], [0], [1], [0, 0, 1, 1], [], []>} : vector<56x56xf32>, vector<56x224xf32>, vector<56x224xf32> -> vector<56x224xf32>
    %c0_6 = arith.constant 0 : index
    %c0_7 = arith.constant 0 : index
    %5 = vector.load %arg4[%c0_6, %c0_7] : memref<672x448xf32, #tpu.memory_space<vmem>>, vector<672x448xf32>
    %6 = vector.extract_strided_slice %5 {offsets = [0, 0], sizes = [224, 448], strides = [1, 1]} : vector<672x448xf32> to vector<224x448xf32>
    %cst_8 = arith.constant dense<0.000000e+00> : vector<56x448xf32>
    %7 = tpu.matmul %3, %6, %cst_8 {dimension_numbers = #tpu.dot_dimension_numbers<[1], [0], [0], [1], [0, 0, 1, 1], [], []>} : vector<56x224xf32>, vector<224x448xf32>, vector<56x448xf32> -> vector<56x448xf32>
    %8 = vector.extract_strided_slice %5 {offsets = [224, 0], sizes = [224, 448], strides = [1, 1]} : vector<672x448xf32> to vector<224x448xf32>
    %cst_9 = arith.constant dense<0.000000e+00> : vector<56x448xf32>
    %9 = tpu.matmul %0, %8, %cst_9 {dimension_numbers = #tpu.dot_dimension_numbers<[1], [0], [0], [1], [0, 0, 1, 1], [], []>} : vector<56x224xf32>, vector<224x448xf32>, vector<56x448xf32> -> vector<56x448xf32>
    %10 = arith.addf %7, %9 : vector<56x448xf32>
    %11 = vector.extract_strided_slice %5 {offsets = [448, 0], sizes = [224, 448], strides = [1, 1]} : vector<672x448xf32> to vector<224x448xf32>
    %cst_10 = arith.constant dense<0.000000e+00> : vector<56x448xf32>
    %12 = tpu.matmul %4, %11, %cst_10 {dimension_numbers = #tpu.dot_dimension_numbers<[1], [0], [0], [1], [0, 0, 1, 1], [], []>} : vector<56x224xf32>, vector<224x448xf32>, vector<56x448xf32> -> vector<56x448xf32>
    %13 = arith.addf %10, %12 : vector<56x448xf32>
    %c0_11 = arith.constant 0 : index
    %c0_12 = arith.constant 0 : index
    %14 = vector.load %arg5[%c0_11, %c0_12] : memref<1x448xf32, #tpu.memory_space<vmem>>, vector<1x448xf32>
    %15 = vector.broadcast %14 : vector<1x448xf32> to vector<56x448xf32>
    %16 = arith.addf %13, %15 : vector<56x448xf32>
    %cst_13 = arith.constant dense<0.000000e+00> : vector<448xf32>
    %17 = vector.multi_reduction <add>, %16, %cst_13 [0] : vector<56x448xf32> to vector<448xf32>
    %18 = vector.shape_cast %17 : vector<448xf32> to vector<1x448xf32>
    %c0_14 = arith.constant 0 : index
    %c0_15 = arith.constant 0 : index
    %19 = vector.load %arg8[%c0_14, %c0_15] : memref<448x448xf32, #tpu.memory_space<vmem>>, vector<448x448xf32>
    %cst_16 = arith.constant dense<0.000000e+00> : vector<1x448xf32>
    %20 = tpu.matmul %18, %19, %cst_16 {dimension_numbers = #tpu.dot_dimension_numbers<[1], [0], [0], [1], [0, 0, 1, 1], [], []>} : vector<1x448xf32>, vector<448x448xf32>, vector<1x448xf32> -> vector<1x448xf32>
    %cst_17 = arith.constant 6.37755089E-4 : f32
    %21 = vector.broadcast %cst_17 : f32 to vector<1x448xf32>
    %22 = arith.mulf %20, %21 : vector<1x448xf32>
    %23 = arith.mulf %16, %16 : vector<56x448xf32>
    %cst_18 = arith.constant dense<0.000000e+00> : vector<448xf32>
    %24 = vector.multi_reduction <add>, %23, %cst_18 [0] : vector<56x448xf32> to vector<448xf32>
    %25 = vector.shape_cast %24 : vector<448xf32> to vector<1x448xf32>
    %c0_19 = arith.constant 0 : index
    %c0_20 = arith.constant 0 : index
    %26 = vector.load %arg8[%c0_19, %c0_20] : memref<448x448xf32, #tpu.memory_space<vmem>>, vector<448x448xf32>
    %cst_21 = arith.constant dense<0.000000e+00> : vector<1x448xf32>
    %27 = tpu.matmul %25, %26, %cst_21 {dimension_numbers = #tpu.dot_dimension_numbers<[1], [0], [0], [1], [0, 0, 1, 1], [], []>} : vector<1x448xf32>, vector<448x448xf32>, vector<1x448xf32> -> vector<1x448xf32>
    %cst_22 = arith.constant 6.37755089E-4 : f32
    %28 = vector.broadcast %cst_22 : f32 to vector<1x448xf32>
    %29 = arith.mulf %27, %28 : vector<1x448xf32>
    %30 = arith.mulf %22, %22 : vector<1x448xf32>
    %31 = arith.subf %29, %30 : vector<1x448xf32>
    %32 = vector.broadcast %22 : vector<1x448xf32> to vector<56x448xf32>
    %33 = arith.subf %16, %32 : vector<56x448xf32>
    %cst_23 = arith.constant 9.99999974E-6 : f32
    %34 = vector.broadcast %cst_23 : f32 to vector<1x448xf32>
    %35 = arith.addf %31, %34 : vector<1x448xf32>
    %36 = math.rsqrt %35 : vector<1x448xf32>
    %37 = vector.broadcast %36 : vector<1x448xf32> to vector<56x448xf32>
    %38 = arith.mulf %33, %37 : vector<56x448xf32>
    %c0_24 = arith.constant 0 : index
    %c0_25 = arith.constant 0 : index
    %39 = vector.load %arg6[%c0_24, %c0_25] : memref<1x448xf32, #tpu.memory_space<vmem>>, vector<1x448xf32>
    %40 = vector.broadcast %39 : vector<1x448xf32> to vector<56x448xf32>
    %41 = arith.mulf %38, %40 : vector<56x448xf32>
    %c0_26 = arith.constant 0 : index
    %c0_27 = arith.constant 0 : index
    %42 = vector.load %arg7[%c0_26, %c0_27] : memref<1x448xf32, #tpu.memory_space<vmem>>, vector<1x448xf32>
    %43 = vector.broadcast %42 : vector<1x448xf32> to vector<56x448xf32>
    %44 = arith.addf %41, %43 : vector<56x448xf32>
    %cst_28 = arith.constant 0.000000e+00 : f32
    %45 = vector.broadcast %cst_28 : f32 to vector<56x448xf32>
    %46 = arith.maximumf %44, %45 : vector<56x448xf32>
    %cst_29 = arith.constant dense<0.000000e+00> : vector<56x448xf32>
    %47 = tpu.matmul %1, %46, %cst_29 {dimension_numbers = #tpu.dot_dimension_numbers<[1], [0], [0], [1], [0, 0, 1, 1], [], []>} : vector<56x56xf32>, vector<56x448xf32>, vector<56x448xf32> -> vector<56x448xf32>
    %cst_30 = arith.constant dense<0.000000e+00> : vector<56x448xf32>
    %48 = tpu.matmul %2, %46, %cst_30 {dimension_numbers = #tpu.dot_dimension_numbers<[1], [0], [0], [1], [0, 0, 1, 1], [], []>} : vector<56x56xf32>, vector<56x448xf32>, vector<56x448xf32> -> vector<56x448xf32>
    %c0_31 = arith.constant 0 : index
    %c0_32 = arith.constant 0 : index
    %49 = vector.load %arg9[%c0_31, %c0_32] : memref<1344x112xf32, #tpu.memory_space<vmem>>, vector<1344x112xf32>
    %50 = vector.extract_strided_slice %49 {offsets = [0, 0], sizes = [448, 112], strides = [1, 1]} : vector<1344x112xf32> to vector<448x112xf32>
    %cst_33 = arith.constant dense<0.000000e+00> : vector<56x112xf32>
    %51 = tpu.matmul %47, %50, %cst_33 {dimension_numbers = #tpu.dot_dimension_numbers<[1], [0], [0], [1], [0, 0, 1, 1], [], []>} : vector<56x448xf32>, vector<448x112xf32>, vector<56x112xf32> -> vector<56x112xf32>
    %52 = vector.extract_strided_slice %49 {offsets = [448, 0], sizes = [448, 112], strides = [1, 1]} : vector<1344x112xf32> to vector<448x112xf32>
    %cst_34 = arith.constant dense<0.000000e+00> : vector<56x112xf32>
    %53 = tpu.matmul %46, %52, %cst_34 {dimension_numbers = #tpu.dot_dimension_numbers<[1], [0], [0], [1], [0, 0, 1, 1], [], []>} : vector<56x448xf32>, vector<448x112xf32>, vector<56x112xf32> -> vector<56x112xf32>
    %54 = arith.addf %51, %53 : vector<56x112xf32>
    %55 = vector.extract_strided_slice %49 {offsets = [896, 0], sizes = [448, 112], strides = [1, 1]} : vector<1344x112xf32> to vector<448x112xf32>
    %cst_35 = arith.constant dense<0.000000e+00> : vector<56x112xf32>
    %56 = tpu.matmul %48, %55, %cst_35 {dimension_numbers = #tpu.dot_dimension_numbers<[1], [0], [0], [1], [0, 0, 1, 1], [], []>} : vector<56x448xf32>, vector<448x112xf32>, vector<56x112xf32> -> vector<56x112xf32>
    %57 = arith.addf %54, %56 : vector<56x112xf32>
    %c0_36 = arith.constant 0 : index
    %c0_37 = arith.constant 0 : index
    %58 = vector.load %arg10[%c0_36, %c0_37] : memref<1x112xf32, #tpu.memory_space<vmem>>, vector<1x112xf32>
    %59 = vector.broadcast %58 : vector<1x112xf32> to vector<56x112xf32>
    %60 = arith.addf %57, %59 : vector<56x112xf32>
    %61 = arith.negf %60 : vector<56x112xf32>
    %62 = math.exp %61 : vector<56x112xf32>
    %cst_38 = arith.constant 1.000000e+00 : f32
    %63 = vector.broadcast %cst_38 : f32 to vector<56x112xf32>
    %64 = arith.addf %63, %62 : vector<56x112xf32>
    %65 = arith.divf %63, %64 : vector<56x112xf32>
    %c0_39 = arith.constant 0 : index
    %c0_40 = arith.constant 0 : index
    %66 = vector.load %arg11[%c0_39, %c0_40] : memref<56x112xf32, #tpu.memory_space<vmem>>, vector<56x112xf32>
    tpu.vector_store %arg11[%c0_39, %c0_40], %65 {strides = array<i32>} : memref<56x112xf32, #tpu.memory_space<vmem>>, vector<56x112xf32>,
    return
  }
  func.func @transform_0(%arg0: i32) -> (i32, i32) {
    %c0_i32 = arith.constant 0 : i32
    %c0_i32_0 = arith.constant 0 : i32
    %c0_i32_1 = arith.constant 0 : i32
    return %c0_i32, %c0_i32_0 : i32, i32
  }
  func.func @transform_1(%arg0: i32) -> (i32, i32) {
    %c0_i32 = arith.constant 0 : i32
    %c0_i32_0 = arith.constant 0 : i32
    %c0_i32_1 = arith.constant 0 : i32
    return %c0_i32, %c0_i32_0 : i32, i32
  }
  func.func @transform_2(%arg0: i32) -> (i32, i32) {
    %c0_i32 = arith.constant 0 : i32
    %c0_i32_0 = arith.constant 0 : i32
    %c0_i32_1 = arith.constant 0 : i32
    return %c0_i32, %c0_i32_0 : i32, i32
  }
  func.func @transform_3(%arg0: i32) -> (i32, i32) {
    %c0_i32 = arith.constant 0 : i32
    %c0_i32_0 = arith.constant 0 : i32
    %c0_i32_1 = arith.constant 0 : i32
    return %c0_i32, %c0_i32_0 : i32, i32
  }
  func.func @transform_4(%arg0: i32) -> (i32, i32) {
    %c0_i32 = arith.constant 0 : i32
    %c0_i32_0 = arith.constant 0 : i32
    %c0_i32_1 = arith.constant 0 : i32
    return %c0_i32, %c0_i32_0 : i32, i32
  }
  func.func @transform_5(%arg0: i32) -> (i32, i32) {
    %c0_i32 = arith.constant 0 : i32
    %c0_i32_0 = arith.constant 0 : i32
    %c0_i32_1 = arith.constant 0 : i32
    return %c0_i32, %c0_i32_0 : i32, i32
  }
  func.func @transform_6(%arg0: i32) -> (i32, i32) {
    %c0_i32 = arith.constant 0 : i32
    %c0_i32_0 = arith.constant 0 : i32
    %c0_i32_1 = arith.constant 0 : i32
    return %c0_i32, %c0_i32_0 : i32, i32
  }
  func.func @transform_7(%arg0: i32) -> (i32, i32) {
    %c0_i32 = arith.constant 0 : i32
    %c0_i32_0 = arith.constant 0 : i32
    %c0_i32_1 = arith.constant 0 : i32
    return %c0_i32, %c0_i32_0 : i32, i32
  }
  func.func @transform_8(%arg0: i32) -> (i32, i32) {
    %c0_i32 = arith.constant 0 : i32
    %c0_i32_0 = arith.constant 0 : i32
    %c0_i32_1 = arith.constant 0 : i32
    return %c0_i32, %c0_i32_0 : i32, i32
  }
  func.func @transform_9(%arg0: i32) -> (i32, i32) {
    %c0_i32 = arith.constant 0 : i32
    %c0_i32_0 = arith.constant 0 : i32
    %c0_i32_1 = arith.constant 0 : i32
    return %c0_i32, %c0_i32_0 : i32, i32
  }
  func.func @transform_10(%arg0: i32) -> (i32, i32) {
    %c0_i32 = arith.constant 0 : i32
    %c0_i32_0 = arith.constant 0 : i32
    %c0_i32_1 = arith.constant 0 : i32
    return %c0_i32, %c0_i32_0 : i32, i32
  }
}

</mosaic_0001>

<llo_original>
// kernel: decoder_cnn_forward.2
$region0: #{decoder_cnn_forward.2}
  #allocation0 [shape = 'u32[]', space=smem, size = 0x4, offset = 0x4, fixed_abs, tag = 'smem constant byte address 0x4 - core index']
  #allocation1 [shape = 'u32[72,128]{1,0:T(1,128)}', space=vmem, size = 0x9000, scoped, tag = 'internal scratch']
  %s0 = inlined_call_operand.vmem [shape: f32[8,62], index: 0, kind: input, shape index: {}]
  %s1 = inlined_call_operand.vmem [shape: f32[62,256], index: 1, kind: input, shape index: {}]
  %s2 = inlined_call_operand.vmem [shape: f32[1,256], index: 2, kind: input, shape index: {}]
  %s3 = inlined_call_operand.vmem [shape: f32[1,256], index: 3, kind: input, shape index: {}]
  %s4 = inlined_call_operand.vmem [shape: f32[1,256], index: 4, kind: input, shape index: {}]
  %s5 = inlined_call_operand.vmem [shape: f32[256,1568], index: 5, kind: input, shape index: {}]
  %s6 = inlined_call_operand.vmem [shape: f32[1,1568], index: 6, kind: input, shape index: {}]
  %s7 = inlined_call_operand.vmem [shape: f32[1,1568], index: 7, kind: input, shape index: {}]
  %s8 = inlined_call_operand.vmem [shape: f32[1,1568], index: 8, kind: input, shape index: {}]
  %s9 = inlined_call_operand.vmem [shape: f32[8,1568], index: 9, kind: output, shape index: {}]
  %s10 = sld [smem:[#allocation0]]
  $region46: #{decoder_cnn_forward.2} parent=0
    _
  %s12 = ssub.s32 1, %s10
  %s13 = scalar_select 0, %s12, %s10
  // Predicated region
  $region2: #{decoder_cnn_forward.2} parent=0 // pred_check
    _
  $region3: #{decoder_cnn_forward.2} parent=0 // pred_check_branch
    %15 = sbr.rel (0) target = $region5
  $region4: #{decoder_cnn_forward.2} parent=0 // pred_region
    _
  $region5: #{decoder_cnn_forward.2} parent=0 // pred_fallthru
    _
  // Predicated region
  $region6: #{decoder_cnn_forward.2} parent=0 // pred_check
    _
  $region7: #{decoder_cnn_forward.2} parent=0 // pred_check_branch
    %17 = sbr.rel (0) target = $region9
  $region8: #{decoder_cnn_forward.2} parent=0 // pred_region
    _
  $region9: #{decoder_cnn_forward.2} parent=0 // pred_fallthru
    _
  // Predicated region
  $region10: #{decoder_cnn_forward.2} parent=0 // pred_check
    _
  $region11: #{decoder_cnn_forward.2} parent=0 // pred_check_branch
    %19 = sbr.rel (0) target = $region13
  $region12: #{decoder_cnn_forward.2} parent=0 // pred_region
    _
  $region13: #{decoder_cnn_forward.2} parent=0 // pred_fallthru
    _
  // Predicated region
  $region14: #{decoder_cnn_forward.2} parent=0 // pred_check
    _
  $region15: #{decoder_cnn_forward.2} parent=0 // pred_check_branch
    %21 = sbr.rel (0) target = $region17
  $region16: #{decoder_cnn_forward.2} parent=0 // pred_region
    _
  $region17: #{decoder_cnn_forward.2} parent=0 // pred_fallthru
    _
  // Predicated region
  $region18: #{decoder_cnn_forward.2} parent=0 // pred_check
    _
  $region19: #{decoder_cnn_forward.2} parent=0 // pred_check_branch
    %23 = sbr.rel (0) target = $region21
  $region20: #{decoder_cnn_forward.2} parent=0 // pred_region
    _
  $region21: #{decoder_cnn_forward.2} parent=0 // pred_fallthru
    _
  // Predicated region
  $region22: #{decoder_cnn_forward.2} parent=0 // pred_check
    _
  $region23: #{decoder_cnn_forward.2} parent=0 // pred_check_branch
    %25 = sbr.rel (0) target = $region25
  $region24: #{decoder_cnn_forward.2} parent=0 // pred_region
    _
  $region25: #{decoder_cnn_forward.2} parent=0 // pred_fallthru
    _
  // Predicated region
  $region26: #{decoder_cnn_forward.2} parent=0 // pred_check
    _
  $region27: #{decoder_cnn_forward.2} parent=0 // pred_check_branch
    %27 = sbr.rel (0) target = $region29
  $region28: #{decoder_cnn_forward.2} parent=0 // pred_region
    _
  $region29: #{decoder_cnn_forward.2} parent=0 // pred_fallthru
    _
  // Predicated region
  $region30: #{decoder_cnn_forward.2} parent=0 // pred_check
    _
  $region31: #{decoder_cnn_forward.2} parent=0 // pred_check_branch
    %29 = sbr.rel (0) target = $region33
  $region32: #{decoder_cnn_forward.2} parent=0 // pred_region
    _
  $region33: #{decoder_cnn_forward.2} parent=0 // pred_fallthru
    _
  // Predicated region
  $region34: #{decoder_cnn_forward.2} parent=0 // pred_check
    _
  $region35: #{decoder_cnn_forward.2} parent=0 // pred_check_branch
    %31 = sbr.rel (0) target = $region37
  $region36: #{decoder_cnn_forward.2} parent=0 // pred_region
    _
  $region37: #{decoder_cnn_forward.2} parent=0 // pred_fallthru
    _
  %v32 = vld [vmem:[%s0] sm:$0xff]
  %v33 = vld [vmem:[%s1] sm:$0xff]
  %v34 = vld [vmem:[%s1 + $0x8] sm:$0xff]
  %v35 = vld [vmem:[%s1 + $0x10] sm:$0xff]
  %v36 = vld [vmem:[%s1 + $0x18] sm:$0xff]
  %v37 = vld [vmem:[%s1 + $0x20] sm:$0xff]
  %v38 = vld [vmem:[%s1 + $0x28] sm:$0xff]
  %v39 = vld [vmem:[%s1 + $0x30] sm:$0xff]
  %v40 = vld [vmem:[%s1 + $0x38] sm:$0xff]
  %v41 = vld [vmem:[%s1 + $0x40] sm:$0xff]
  %v42 = vld [vmem:[%s1 + $0x48] sm:$0xff]
  %v43 = vld [vmem:[%s1 + $0x50] sm:$0xff]
  %v44 = vld [vmem:[%s1 + $0x58] sm:$0xff]
  %v45 = vld [vmem:[%s1 + $0x60] sm:$0xff]
  %v46 = vld [vmem:[%s1 + $0x68] sm:$0xff]
  %v47 = vld [vmem:[%s1 + $0x70] sm:$0x3f]
  %v48 = vld [vmem:[%s1 + $0x78] sm:$0x3f]
  %v49 = vld [vmem:[%s2] sm:$0x3]
  %v51 = vperm.slane %v49, 0
  %v52 = vperm.slane %v49, 1
  %vm55 = vcmask 506880
  %v57 = vsel %vm55, %v32, 0
  %vm59 = vcmask 1045504
  %v61 = vsel %vm59, %v47, 0
  %v64 = vsel %vm59, %v48, 0
  %66 = vmatpush.msra.mxu0 0.0
  %67 = vmatpush.msra.mxu0 0.0
  %68 = vmatpush.msra.mxu0 0.0
  %69 = vmatpush.msra.mxu0 0.0
  %70 = vmatpush.msra.mxu0 0.0
  %71 = vmatpush.msra.mxu0 0.0
  %72 = vmatpush.msra.mxu0 0.0
  %73 = vmatpush.msra.mxu0 0.0
  %74 = vmatpush.msra.mxu0 %v61
  %75 = vmatpush.msra.mxu0 %v45
  %76 = vmatpush.msra.mxu0 %v43
  %77 = vmatpush.msra.mxu0 %v41
  %78 = vmatpush.msra.mxu0 %v39
  %79 = vmatpush.msra.mxu0 %v37
  %80 = vmatpush.msra.mxu0 %v35
  %81 = vmatpush.msra.mxu0 %v33
  %82 = vmatmul.f32.gmra.mxu0 %v57
  %v83 = vpop.f32.mrf.mxu0
  %v84 = vadd.f32 %v51, %v83
  %85 = vdwg.mxu0
  %86 = vmatpush.msra.mxu0 0.0
  %87 = vmatpush.msra.mxu0 0.0
  %88 = vmatpush.msra.mxu0 0.0
  %89 = vmatpush.msra.mxu0 0.0
  %90 = vmatpush.msra.mxu0 0.0
  %91 = vmatpush.msra.mxu0 0.0
  %92 = vmatpush.msra.mxu0 0.0
  %93 = vmatpush.msra.mxu0 0.0
  %94 = vmatpush.msra.mxu0 %v64
  %95 = vmatpush.msra.mxu0 %v46
  %96 = vmatpush.msra.mxu0 %v44
  %97 = vmatpush.msra.mxu0 %v42
  %98 = vmatpush.msra.mxu0 %v40
  %99 = vmatpush.msra.mxu0 %v38
  %100 = vmatpush.msra.mxu0 %v36
  %101 = vmatpush.msra.mxu0 %v34
  %102 = vmatmul.f32.gmra.mxu0 %v57
  %v103 = vpop.f32.mrf.mxu0
  %v104 = vadd.f32 %v52, %v103
  %105 = vdwg.mxu0
  %v106 = vld [vmem:[%s3] sm:$0x3]
  %v107 = vld [vmem:[%s4] sm:$0x3]
  %v108 = vrot.slane %v84, 4
  %v109 = vadd.f32 %v84, %v108
  %v110 = vrot.slane %v109, 2
  %v111 = vadd.f32 %v109, %v110
  %v112 = vrot.slane %v111, 1
  %v113 = vadd.f32 %v111, %v112
  %v114 = vrot.slane %v104, 4
  %v115 = vadd.f32 %v104, %v114
  %v116 = vrot.slane %v115, 2
  %v117 = vadd.f32 %v115, %v116
  %v118 = vrot.slane %v117, 1
  %v119 = vadd.f32 %v117, %v118
  %v120 = vrcp.pop 8.0
  %v121 = vmul.f32 8.0, %v120
  %v122 = vsub.f32 1.0, %v121
  %v123 = vmul.f32 %v120, %v122
  %v124 = vadd.f32 %v120, %v123
  %vm125 = vweird.f32 %v120
  %v126 = vsel %vm125, %v120, %v124
  %v127 = vmul.f32 %v113, %v126
  %v128 = vmul.f32 %v119, %v126
  %v129 = vsub.f32 %v84, %v127
  %v130 = vsub.f32 %v104, %v128
  %v131 = vmul.f32 %v129, %v129
  %v132 = vmul.f32 %v130, %v130
  %v133 = vrot.slane %v131, 4
  %v134 = vadd.f32 %v131, %v133
  %v135 = vrot.slane %v134, 2
  %v136 = vadd.f32 %v134, %v135
  %v137 = vrot.slane %v136, 1
  %v138 = vadd.f32 %v136, %v137
  %v139 = vrot.slane %v132, 4
  %v140 = vadd.f32 %v132, %v139
  %v141 = vrot.slane %v140, 2
  %v142 = vadd.f32 %v140, %v141
  %v143 = vrot.slane %v142, 1
  %v144 = vadd.f32 %v142, %v143
  %v145 = vmul.f32 %v138, %v126
  %v146 = vmul.f32 %v144, %v126
  %v147 = vadd.f32 %v145, 1e-05
  %v148 = vadd.f32 %v146, 1e-05
  %v149 = vrsqrt.pop %v147
  %v150 = vmul.f32 %v149, %v147
  %v151 = vmul.f32 %v150, %v149
  %v152 = vmul.f32 0.5, %v151
  %v153 = vsub.f32 1.5, %v152
  %v154 = vmul.f32 %v149, %v153
  %vm155 = vweird.f32 %v147
  %vm156 = vweird.f32 %v149
  %vm157 = vmor %vm155, %vm156
  %v158 = vsel %vm157, %v149, %v154
  %v159 = vrsqrt.pop %v148
  %v160 = vmul.f32 %v159, %v148
  %v161 = vmul.f32 %v160, %v159
  %v162 = vmul.f32 0.5, %v161
  %v163 = vsub.f32 1.5, %v162
  %v164 = vmul.f32 %v159, %v163
  %vm165 = vweird.f32 %v148
  %vm166 = vweird.f32 %v159
  %vm167 = vmor %vm165, %vm166
  %v168 = vsel %vm167, %v159, %v164
  %v169 = vmul.f32 %v129, %v158
  %v170 = vmul.f32 %v130, %v168
  %v172 = vperm.slane %v106, 0
  %v173 = vperm.slane %v106, 1
  %v176 = vmul.f32 %v169, %v172
  %v177 = vmul.f32 %v170, %v173
  %v179 = vperm.slane %v107, 0
  %v180 = vperm.slane %v107, 1
  %v183 = vadd.f32 %v176, %v179
  %v184 = vadd.f32 %v177, %v180
  %v185 = vmax.f32 %v183, 0.0
  %v186 = vmax.f32 %v184, 0.0
  %v187 = vld [vmem:[%s5] sm:$0xff]
  %v188 = vld [vmem:[%s5 + $0x8] sm:$0xff]
  %v189 = vld [vmem:[%s5 + $0x10] sm:$0xff]
  %v190 = vld [vmem:[%s5 + $0x18] sm:$0xff]
  %v191 = vld [vmem:[%s5 + $0x20] sm:$0xff]
  %v192 = vld [vmem:[%s5 + $0x28] sm:$0xff]
  %v193 = vld [vmem:[%s5 + $0x30] sm:$0xff]
  %v194 = vld [vmem:[%s5 + $0x38] sm:$0xff]
  %v195 = vld [vmem:[%s5 + $0x40] sm:$0xff]
  %v196 = vld [vmem:[%s5 + $0x48] sm:$0xff]
  %v197 = vld [vmem:[%s5 + $0x50] sm:$0xff]
  %v198 = vld [vmem:[%s5 + $0x58] sm:$0xff]
  %v199 = vld [vmem:[%s5 + $0x60] sm:$0xff]
  %v200 = vld [vmem:[%s5 + $0x68] sm:$0xff]
  %v201 = vld [vmem:[%s5 + $0x70] sm:$0xff]
  %v202 = vld [vmem:[%s5 + $0x78] sm:$0xff]
  %v203 = vld [vmem:[%s5 + $0x80] sm:$0xff]
  %v204 = vld [vmem:[%s5 + $0x88] sm:$0xff]
  %v205 = vld [vmem:[%s5 + $0x90] sm:$0xff]
  %v206 = vld [vmem:[%s5 + $0x98] sm:$0xff]
  %v207 = vld [vmem:[%s5 + $0xa0] sm:$0xff]
  %v208 = vld [vmem:[%s5 + $0xa8] sm:$0xff]
  %v209 = vld [vmem:[%s5 + $0xb0] sm:$0xff]
  %v210 = vld [vmem:[%s5 + $0xb8] sm:$0xff]
  %v211 = vld [vmem:[%s5 + $0xc0] sm:$0xff]
  %v212 = vld [vmem:[%s5 + $0xc8] sm:$0xff]
  %v213 = vld [vmem:[%s5 + $0xd0] sm:$0xff]
  %v214 = vld [vmem:[%s5 + $0xd8] sm:$0xff]
  %v215 = vld [vmem:[%s5 + $0xe0] sm:$0xff]
  %v216 = vld [vmem:[%s5 + $0xe8] sm:$0xff]
  %v217 = vld [vmem:[%s5 + $0xf0] sm:$0xff]
  %v218 = vld [vmem:[%s5 + $0xf8] sm:$0xff]
  %v219 = vld [vmem:[%s5 + $0x100] sm:$0xff]
  %v220 = vld [vmem:[%s5 + $0x108] sm:$0xff]
  %v221 = vld [vmem:[%s5 + $0x110] sm:$0xff]
  %v222 = vld [vmem:[%s5 + $0x118] sm:$0xff]
  %v223 = vld [vmem:[%s5 + $0x120] sm:$0xff]
  %v224 = vld [vmem:[%s5 + $0x128] sm:$0xff]
  %v225 = vld [vmem:[%s5 + $0x130] sm:$0xff]
  %v226 = vld [vmem:[%s5 + $0x138] sm:$0xff]
  %v227 = vld [vmem:[%s5 + $0x140] sm:$0xff]
  %v228 = vld [vmem:[%s5 + $0x148] sm:$0xff]
  %v229 = vld [vmem:[%s5 + $0x150] sm:$0xff]
  %v230 = vld [vmem:[%s5 + $0x158] sm:$0xff]
  %v231 = vld [vmem:[%s5 + $0x160] sm:$0xff]
  %v232 = vld [vmem:[%s5 + $0x168] sm:$0xff]
  %v233 = vld [vmem:[%s5 + $0x170] sm:$0xff]
  %v234 = vld [vmem:[%s5 + $0x178] sm:$0xff]
  %v235 = vld [vmem:[%s5 + $0x180] sm:$0xff]
  %v236 = vld [vmem:[%s5 + $0x188] sm:$0xff]
  %v237 = vld [vmem:[%s5 + $0x190] sm:$0xff]
  %v238 = vld [vmem:[%s5 + $0x198] sm:$0xff]
  %v239 = vld [vmem:[%s5 + $0x1a0] sm:$0xff]
  %v240 = vld [vmem:[%s5 + $0x1a8] sm:$0xff]
  %v241 = vld [vmem:[%s5 + $0x1b0] sm:$0xff]
  %v242 = vld [vmem:[%s5 + $0x1b8] sm:$0xff]
  %v243 = vld [vmem:[%s5 + $0x1c0] sm:$0xff]
  %v244 = vld [vmem:[%s5 + $0x1c8] sm:$0xff]
  %v245 = vld [vmem:[%s5 + $0x1d0] sm:$0xff]
  %v246 = vld [vmem:[%s5 + $0x1d8] sm:$0xff]
  %v247 = vld [vmem:[%s5 + $0x1e0] sm:$0xff]
  %v248 = vld [vmem:[%s5 + $0x1e8] sm:$0xff]
  %v249 = vld [vmem:[%s5 + $0x1f0] sm:$0xff]
  %v250 = vld [vmem:[%s5 + $0x1f8] sm:$0xff]
  %v251 = vld [vmem:[%s5 + $0x200] sm:$0xff]
  %v252 = vld [vmem:[%s5 + $0x208] sm:$0xff]
  %v253 = vld [vmem:[%s5 + $0x210] sm:$0xff]
  %v254 = vld [vmem:[%s5 + $0x218] sm:$0xff]
  %v255 = vld [vmem:[%s5 + $0x220] sm:$0xff]
  %v256 = vld [vmem:[%s5 + $0x228] sm:$0xff]
  %v257 = vld [vmem:[%s5 + $0x230] sm:$0xff]
  %v258 = vld [vmem:[%s5 + $0x238] sm:$0xff]
  %v259 = vld [vmem:[%s5 + $0x240] sm:$0xff]
  %v260 = vld [vmem:[%s5 + $0x248] sm:$0xff]
  %v261 = vld [vmem:[%s5 + $0x250] sm:$0xff]
  %v262 = vld [vmem:[%s5 + $0x258] sm:$0xff]
  %v263 = vld [vmem:[%s5 + $0x260] sm:$0xff]
  %v264 = vld [vmem:[%s5 + $0x268] sm:$0xff]
  %v265 = vld [vmem:[%s5 + $0x270] sm:$0xff]
  %v266 = vld [vmem:[%s5 + $0x278] sm:$0xff]
  %v267 = vld [vmem:[%s5 + $0x280] sm:$0xff]
  %v268 = vld [vmem:[%s5 + $0x288] sm:$0xff]
  %v269 = vld [vmem:[%s5 + $0x290] sm:$0xff]
  %v270 = vld [vmem:[%s5 + $0x298] sm:$0xff]
  %v271 = vld [vmem:[%s5 + $0x2a0] sm:$0xff]
  %v272 = vld [vmem:[%s5 + $0x2a8] sm:$0xff]
  %v273 = vld [vmem:[%s5 + $0x2b0] sm:$0xff]
  %v274 = vld [vmem:[%s5 + $0x2b8] sm:$0xff]
  %v275 = vld [vmem:[%s5 + $0x2c0] sm:$0xff]
  %v276 = vld [vmem:[%s5 + $0x2c8] sm:$0xff]
  %v277 = vld [vmem:[%s5 + $0x2d0] sm:$0xff]
  %v278 = vld [vmem:[%s5 + $0x2d8] sm:$0xff]
  %v279 = vld [vmem:[%s5 + $0x2e0] sm:$0xff]
  %v280 = vld [vmem:[%s5 + $0x2e8] sm:$0xff]
  %v281 = vld [vmem:[%s5 + $0x2f0] sm:$0xff]
  %v282 = vld [vmem:[%s5 + $0x2f8] sm:$0xff]
  %v283 = vld [vmem:[%s5 + $0x300] sm:$0xff]
  %v284 = vld [vmem:[%s5 + $0x308] sm:$0xff]
  %v285 = vld [vmem:[%s5 + $0x310] sm:$0xff]
  %v286 = vld [vmem:[%s5 + $0x318] sm:$0xff]
  %v287 = vld [vmem:[%s5 + $0x320] sm:$0xff]
  %v288 = vld [vmem:[%s5 + $0x328] sm:$0xff]
  %v289 = vld [vmem:[%s5 + $0x330] sm:$0xff]
  %v290 = vld [vmem:[%s5 + $0x338] sm:$0xff]
  %v291 = vld [vmem:[%s5 + $0x340] sm:$0xff]
  %v292 = vld [vmem:[%s5 + $0x348] sm:$0xff]
  %v293 = vld [vmem:[%s5 + $0x350] sm:$0xff]
  %v294 = vld [vmem:[%s5 + $0x358] sm:$0xff]
  %v295 = vld [vmem:[%s5 + $0x360] sm:$0xff]
  %v296 = vld [vmem:[%s5 + $0x368] sm:$0xff]
  %v297 = vld [vmem:[%s5 + $0x370] sm:$0xff]
  %v298 = vld [vmem:[%s5 + $0x378] sm:$0xff]
  %v299 = vld [vmem:[%s5 + $0x380] sm:$0xff]
  %v300 = vld [vmem:[%s5 + $0x388] sm:$0xff]
  %v301 = vld [vmem:[%s5 + $0x390] sm:$0xff]
  %v302 = vld [vmem:[%s5 + $0x398] sm:$0xff]
  %v303 = vld [vmem:[%s5 + $0x3a0] sm:$0xff]
  %v304 = vld [vmem:[%s5 + $0x3a8] sm:$0xff]
  %v305 = vld [vmem:[%s5 + $0x3b0] sm:$0xff]
  %v306 = vld [vmem:[%s5 + $0x3b8] sm:$0xff]
  %v307 = vld [vmem:[%s5 + $0x3c0] sm:$0xff]
  %v308 = vld [vmem:[%s5 + $0x3c8] sm:$0xff]
  %v309 = vld [vmem:[%s5 + $0x3d0] sm:$0xff]
  %v310 = vld [vmem:[%s5 + $0x3d8] sm:$0xff]
  %v311 = vld [vmem:[%s5 + $0x3e0] sm:$0xff]
  %v312 = vld [vmem:[%s5 + $0x3e8] sm:$0xff]
  %v313 = vld [vmem:[%s5 + $0x3f0] sm:$0xff]
  %v314 = vld [vmem:[%s5 + $0x3f8] sm:$0xff]
  %v315 = vld [vmem:[%s5 + $0x400] sm:$0xff]
  %v316 = vld [vmem:[%s5 + $0x408] sm:$0xff]
  %v317 = vld [vmem:[%s5 + $0x410] sm:$0xff]
  %v318 = vld [vmem:[%s5 + $0x418] sm:$0xff]
  %v319 = vld [vmem:[%s5 + $0x420] sm:$0xff]
  %v320 = vld [vmem:[%s5 + $0x428] sm:$0xff]
  %v321 = vld [vmem:[%s5 + $0x430] sm:$0xff]
  %v322 = vld [vmem:[%s5 + $0x438] sm:$0xff]
  %v323 = vld [vmem:[%s5 + $0x440] sm:$0xff]
  %v324 = vld [vmem:[%s5 + $0x448] sm:$0xff]
  %v325 = vld [vmem:[%s5 + $0x450] sm:$0xff]
  %v326 = vld [vmem:[%s5 + $0x458] sm:$0xff]
  %v327 = vld [vmem:[%s5 + $0x460] sm:$0xff]
  %v328 = vld [vmem:[%s5 + $0x468] sm:$0xff]
  %v329 = vld [vmem:[%s5 + $0x470] sm:$0xff]
  %v330 = vld [vmem:[%s5 + $0x478] sm:$0xff]
  %v331 = vld [vmem:[%s5 + $0x480] sm:$0xff]
  %v332 = vld [vmem:[%s5 + $0x488] sm:$0xff]
  %v333 = vld [vmem:[%s5 + $0x490] sm:$0xff]
  %v334 = vld [vmem:[%s5 + $0x498] sm:$0xff]
  %v335 = vld [vmem:[%s5 + $0x4a0] sm:$0xff]
  %v336 = vld [vmem:[%s5 + $0x4a8] sm:$0xff]
  %v337 = vld [vmem:[%s5 + $0x4b0] sm:$0xff]
  %v338 = vld [vmem:[%s5 + $0x4b8] sm:$0xff]
  %v339 = vld [vmem:[%s5 + $0x4c0] sm:$0xff]
  %v340 = vld [vmem:[%s5 + $0x4c8] sm:$0xff]
  %v341 = vld [vmem:[%s5 + $0x4d0] sm:$0xff]
  %v342 = vld [vmem:[%s5 + $0x4d8] sm:$0xff]
  %v343 = vld [vmem:[%s5 + $0x4e0] sm:$0xff]
  %v344 = vld [vmem:[%s5 + $0x4e8] sm:$0xff]
  %v345 = vld [vmem:[%s5 + $0x4f0] sm:$0xff]
  %v346 = vld [vmem:[%s5 + $0x4f8] sm:$0xff]
  %v347 = vld [vmem:[%s5 + $0x500] sm:$0xff]
  %v348 = vld [vmem:[%s5 + $0x508] sm:$0xff]
  %v349 = vld [vmem:[%s5 + $0x510] sm:$0xff]
  %v350 = vld [vmem:[%s5 + $0x518] sm:$0xff]
  %v351 = vld [vmem:[%s5 + $0x520] sm:$0xff]
  %v352 = vld [vmem:[%s5 + $0x528] sm:$0xff]
  %v353 = vld [vmem:[%s5 + $0x530] sm:$0xff]
  %v354 = vld [vmem:[%s5 + $0x538] sm:$0xff]
  %v355 = vld [vmem:[%s5 + $0x540] sm:$0xff]
  %v356 = vld [vmem:[%s5 + $0x548] sm:$0xff]
  %v357 = vld [vmem:[%s5 + $0x550] sm:$0xff]
  %v358 = vld [vmem:[%s5 + $0x558] sm:$0xff]
  %v359 = vld [vmem:[%s5 + $0x560] sm:$0xff]
  %v360 = vld [vmem:[%s5 + $0x568] sm:$0xff]
  %v361 = vld [vmem:[%s5 + $0x570] sm:$0xff]
  %v362 = vld [vmem:[%s5 + $0x578] sm:$0xff]
  %v363 = vld [vmem:[%s5 + $0x580] sm:$0xff]
  %v364 = vld [vmem:[%s5 + $0x588] sm:$0xff]
  %v365 = vld [vmem:[%s5 + $0x590] sm:$0xff]
  %v366 = vld [vmem:[%s5 + $0x598] sm:$0xff]
  %v367 = vld [vmem:[%s5 + $0x5a0] sm:$0xff]
  %v368 = vld [vmem:[%s5 + $0x5a8] sm:$0xff]
  %v369 = vld [vmem:[%s5 + $0x5b0] sm:$0xff]
  %v370 = vld [vmem:[%s5 + $0x5b8] sm:$0xff]
  %v371 = vld [vmem:[%s5 + $0x5c0] sm:$0xff]
  %v372 = vld [vmem:[%s5 + $0x5c8] sm:$0xff]
  %v373 = vld [vmem:[%s5 + $0x5d0] sm:$0xff]
  %v374 = vld [vmem:[%s5 + $0x5d8] sm:$0xff]
  %v375 = vld [vmem:[%s5 + $0x5e0] sm:$0xff]
  %v376 = vld [vmem:[%s5 + $0x5e8] sm:$0xff]
  %v377 = vld [vmem:[%s5 + $0x5f0] sm:$0xff]
  %v378 = vld [vmem:[%s5 + $0x5f8] sm:$0xff]
  %v379 = vld [vmem:[%s5 + $0x600] sm:$0xff]
  %v380 = vld [vmem:[%s5 + $0x608] sm:$0xff]
  %v381 = vld [vmem:[%s5 + $0x610] sm:$0xff]
  %v382 = vld [vmem:[%s5 + $0x618] sm:$0xff]
  %v383 = vld [vmem:[%s5 + $0x620] sm:$0xff]
  %v384 = vld [vmem:[%s5 + $0x628] sm:$0xff]
  %v385 = vld [vmem:[%s5 + $0x630] sm:$0xff]
  %v386 = vld [vmem:[%s5 + $0x638] sm:$0xff]
  %v387 = vld [vmem:[%s5 + $0x640] sm:$0xff]
  %v388 = vld [vmem:[%s5 + $0x648] sm:$0xff]
  %v389 = vld [vmem:[%s5 + $0x650] sm:$0xff]
  %v390 = vld [vmem:[%s5 + $0x658] sm:$0xff]
  %v391 = vld [vmem:[%s5 + $0x660] sm:$0xff]
  %v392 = vld [vmem:[%s5 + $0x668] sm:$0xff]
  %v393 = vld [vmem:[%s5 + $0x670] sm:$0xff]
  %v394 = vld [vmem:[%s5 + $0x678] sm:$0xff]
  %v395 = vld [vmem:[%s5 + $0x680] sm:$0xff]
  %v396 = vld [vmem:[%s5 + $0x688] sm:$0xff]
  %v397 = vld [vmem:[%s5 + $0x690] sm:$0xff]
  %v398 = vld [vmem:[%s5 + $0x698] sm:$0xff]
  %v399 = vld [vmem:[%s5 + $0x6a0] sm:$0xff]
  %v400 = vld [vmem:[%s5 + $0x6a8] sm:$0xff]
  %v401 = vld [vmem:[%s5 + $0x6b0] sm:$0xff]
  %v402 = vld [vmem:[%s5 + $0x6b8] sm:$0xff]
  %v403 = vld [vmem:[%s5 + $0x6c0] sm:$0xff]
  %v404 = vld [vmem:[%s5 + $0x6c8] sm:$0xff]
  %v405 = vld [vmem:[%s5 + $0x6d0] sm:$0xff]
  %v406 = vld [vmem:[%s5 + $0x6d8] sm:$0xff]
  %v407 = vld [vmem:[%s5 + $0x6e0] sm:$0xff]
  %v408 = vld [vmem:[%s5 + $0x6e8] sm:$0xff]
  %v409 = vld [vmem:[%s5 + $0x6f0] sm:$0xff]
  %v410 = vld [vmem:[%s5 + $0x6f8] sm:$0xff]
  %v411 = vld [vmem:[%s5 + $0x700] sm:$0xff]
  %v412 = vld [vmem:[%s5 + $0x708] sm:$0xff]
  %v413 = vld [vmem:[%s5 + $0x710] sm:$0xff]
  %v414 = vld [vmem:[%s5 + $0x718] sm:$0xff]
  %v415 = vld [vmem:[%s5 + $0x720] sm:$0xff]
  %v416 = vld [vmem:[%s5 + $0x728] sm:$0xff]
  %v417 = vld [vmem:[%s5 + $0x730] sm:$0xff]
  %v418 = vld [vmem:[%s5 + $0x738] sm:$0xff]
  %v419 = vld [vmem:[%s5 + $0x740] sm:$0xff]
  %v420 = vld [vmem:[%s5 + $0x748] sm:$0xff]
  %v421 = vld [vmem:[%s5 + $0x750] sm:$0xff]
  %v422 = vld [vmem:[%s5 + $0x758] sm:$0xff]
  %v423 = vld [vmem:[%s5 + $0x760] sm:$0xff]
  %v424 = vld [vmem:[%s5 + $0x768] sm:$0xff]
  %v425 = vld [vmem:[%s5 + $0x770] sm:$0xff]
  %v426 = vld [vmem:[%s5 + $0x778] sm:$0xff]
  %v427 = vld [vmem:[%s5 + $0x780] sm:$0xff]
  %v428 = vld [vmem:[%s5 + $0x788] sm:$0xff]
  %v429 = vld [vmem:[%s5 + $0x790] sm:$0xff]
  %v430 = vld [vmem:[%s5 + $0x798] sm:$0xff]
  %v431 = vld [vmem:[%s5 + $0x7a0] sm:$0xff]
  %v432 = vld [vmem:[%s5 + $0x7a8] sm:$0xff]
  %v433 = vld [vmem:[%s5 + $0x7b0] sm:$0xff]
  %v434 = vld [vmem:[%s5 + $0x7b8] sm:$0xff]
  %v435 = vld [vmem:[%s5 + $0x7c0] sm:$0xff]
  %v436 = vld [vmem:[%s5 + $0x7c8] sm:$0xff]
  %v437 = vld [vmem:[%s5 + $0x7d0] sm:$0xff]
  %v438 = vld [vmem:[%s5 + $0x7d8] sm:$0xff]
  %v439 = vld [vmem:[%s5 + $0x7e0] sm:$0xff]
  %v440 = vld [vmem:[%s5 + $0x7e8] sm:$0xff]
  %v441 = vld [vmem:[%s5 + $0x7f0] sm:$0xff]
  %v442 = vld [vmem:[%s5 + $0x7f8] sm:$0xff]
  %v443 = vld [vmem:[%s5 + $0x800] sm:$0xff]
  %v444 = vld [vmem:[%s5 + $0x808] sm:$0xff]
  %v445 = vld [vmem:[%s5 + $0x810] sm:$0xff]
  %v446 = vld [vmem:[%s5 + $0x818] sm:$0xff]
  %v447 = vld [vmem:[%s5 + $0x820] sm:$0xff]
  %v448 = vld [vmem:[%s5 + $0x828] sm:$0xff]
  %v449 = vld [vmem:[%s5 + $0x830] sm:$0xff]
  %v450 = vld [vmem:[%s5 + $0x838] sm:$0xff]
  %v451 = vld [vmem:[%s5 + $0x840] sm:$0xff]
  %v452 = vld [vmem:[%s5 + $0x848] sm:$0xff]
  %v453 = vld [vmem:[%s5 + $0x850] sm:$0xff]
  %v454 = vld [vmem:[%s5 + $0x858] sm:$0xff]
  %v455 = vld [vmem:[%s5 + $0x860] sm:$0xff]
  %v456 = vld [vmem:[%s5 + $0x868] sm:$0xff]
  %v457 = vld [vmem:[%s5 + $0x870] sm:$0xff]
  %v458 = vld [vmem:[%s5 + $0x878] sm:$0xff]
  %v459 = vld [vmem:[%s5 + $0x880] sm:$0xff]
  %v460 = vld [vmem:[%s5 + $0x888] sm:$0xff]
  %v461 = vld [vmem:[%s5 + $0x890] sm:$0xff]
  %v462 = vld [vmem:[%s5 + $0x898] sm:$0xff]
  %v463 = vld [vmem:[%s5 + $0x8a0] sm:$0xff]
  %v464 = vld [vmem:[%s5 + $0x8a8] sm:$0xff]
  %v465 = vld [vmem:[%s5 + $0x8b0] sm:$0xff]
  %v466 = vld [vmem:[%s5 + $0x8b8] sm:$0xff]
  %v467 = vld [vmem:[%s5 + $0x8c0] sm:$0xff]
  %v468 = vld [vmem:[%s5 + $0x8c8] sm:$0xff]
  %v469 = vld [vmem:[%s5 + $0x8d0] sm:$0xff]
  %v470 = vld [vmem:[%s5 + $0x8d8] sm:$0xff]
  %v471 = vld [vmem:[%s5 + $0x8e0] sm:$0xff]
  %v472 = vld [vmem:[%s5 + $0x8e8] sm:$0xff]
  %v473 = vld [vmem:[%s5 + $0x8f0] sm:$0xff]
  %v474 = vld [vmem:[%s5 + $0x8f8] sm:$0xff]
  %v475 = vld [vmem:[%s5 + $0x900] sm:$0xff]
  %v476 = vld [vmem:[%s5 + $0x908] sm:$0xff]
  %v477 = vld [vmem:[%s5 + $0x910] sm:$0xff]
  %v478 = vld [vmem:[%s5 + $0x918] sm:$0xff]
  %v479 = vld [vmem:[%s5 + $0x920] sm:$0xff]
  %v480 = vld [vmem:[%s5 + $0x928] sm:$0xff]
  %v481 = vld [vmem:[%s5 + $0x930] sm:$0xff]
  %v482 = vld [vmem:[%s5 + $0x938] sm:$0xff]
  %v483 = vld [vmem:[%s5 + $0x940] sm:$0xff]
  %v484 = vld [vmem:[%s5 + $0x948] sm:$0xff]
  %v485 = vld [vmem:[%s5 + $0x950] sm:$0xff]
  %v486 = vld [vmem:[%s5 + $0x958] sm:$0xff]
  %v487 = vld [vmem:[%s5 + $0x960] sm:$0xff]
  %v488 = vld [vmem:[%s5 + $0x968] sm:$0xff]
  %v489 = vld [vmem:[%s5 + $0x970] sm:$0xff]
  %v490 = vld [vmem:[%s5 + $0x978] sm:$0xff]
  %v491 = vld [vmem:[%s5 + $0x980] sm:$0xff]
  %v492 = vld [vmem:[%s5 + $0x988] sm:$0xff]
  %v493 = vld [vmem:[%s5 + $0x990] sm:$0xff]
  %v494 = vld [vmem:[%s5 + $0x998] sm:$0xff]
  %v495 = vld [vmem:[%s5 + $0x9a0] sm:$0xff]
  %v496 = vld [vmem:[%s5 + $0x9a8] sm:$0xff]
  %v497 = vld [vmem:[%s5 + $0x9b0] sm:$0xff]
  %v498 = vld [vmem:[%s5 + $0x9b8] sm:$0xff]
  %v499 = vld [vmem:[%s5 + $0x9c0] sm:$0xff]
  %v500 = vld [vmem:[%s5 + $0x9c8] sm:$0xff]
  %v501 = vld [vmem:[%s5 + $0x9d0] sm:$0xff]
  %v502 = vld [vmem:[%s5 + $0x9d8] sm:$0xff]
  %v503 = vld [vmem:[%s5 + $0x9e0] sm:$0xff]
  %v504 = vld [vmem:[%s5 + $0x9e8] sm:$0xff]
  %v505 = vld [vmem:[%s5 + $0x9f0] sm:$0xff]
  %v506 = vld [vmem:[%s5 + $0x9f8] sm:$0xff]
  %v507 = vld [vmem:[%s5 + $0xa00] sm:$0xff]
  %v508 = vld [vmem:[%s5 + $0xa08] sm:$0xff]
  %v509 = vld [vmem:[%s5 + $0xa10] sm:$0xff]
  %v510 = vld [vmem:[%s5 + $0xa18] sm:$0xff]
  %v511 = vld [vmem:[%s5 + $0xa20] sm:$0xff]
  %v512 = vld [vmem:[%s5 + $0xa28] sm:$0xff]
  %v513 = vld [vmem:[%s5 + $0xa30] sm:$0xff]
  %v514 = vld [vmem:[%s5 + $0xa38] sm:$0xff]
  %v515 = vld [vmem:[%s5 + $0xa40] sm:$0xff]
  %v516 = vld [vmem:[%s5 + $0xa48] sm:$0xff]
  %v517 = vld [vmem:[%s5 + $0xa50] sm:$0xff]
  %v518 = vld [vmem:[%s5 + $0xa58] sm:$0xff]
  %v519 = vld [vmem:[%s5 + $0xa60] sm:$0xff]
  %v520 = vld [vmem:[%s5 + $0xa68] sm:$0xff]
  %v521 = vld [vmem:[%s5 + $0xa70] sm:$0xff]
  %v522 = vld [vmem:[%s5 + $0xa78] sm:$0xff]
  %v523 = vld [vmem:[%s5 + $0xa80] sm:$0xff]
  %v524 = vld [vmem:[%s5 + $0xa88] sm:$0xff]
  %v525 = vld [vmem:[%s5 + $0xa90] sm:$0xff]
  %v526 = vld [vmem:[%s5 + $0xa98] sm:$0xff]
  %v527 = vld [vmem:[%s5 + $0xaa0] sm:$0xff]
  %v528 = vld [vmem:[%s5 + $0xaa8] sm:$0xff]
  %v529 = vld [vmem:[%s5 + $0xab0] sm:$0xff]
  %v530 = vld [vmem:[%s5 + $0xab8] sm:$0xff]
  %v531 = vld [vmem:[%s5 + $0xac0] sm:$0xff]
  %v532 = vld [vmem:[%s5 + $0xac8] sm:$0xff]
  %v533 = vld [vmem:[%s5 + $0xad0] sm:$0xff]
  %v534 = vld [vmem:[%s5 + $0xad8] sm:$0xff]
  %v535 = vld [vmem:[%s5 + $0xae0] sm:$0xff]
  %v536 = vld [vmem:[%s5 + $0xae8] sm:$0xff]
  %v537 = vld [vmem:[%s5 + $0xaf0] sm:$0xff]
  %v538 = vld [vmem:[%s5 + $0xaf8] sm:$0xff]
  %v539 = vld [vmem:[%s5 + $0xb00] sm:$0xff]
  %v540 = vld [vmem:[%s5 + $0xb08] sm:$0xff]
  %v541 = vld [vmem:[%s5 + $0xb10] sm:$0xff]
  %v542 = vld [vmem:[%s5 + $0xb18] sm:$0xff]
  %v543 = vld [vmem:[%s5 + $0xb20] sm:$0xff]
  %v544 = vld [vmem:[%s5 + $0xb28] sm:$0xff]
  %v545 = vld [vmem:[%s5 + $0xb30] sm:$0xff]
  %v546 = vld [vmem:[%s5 + $0xb38] sm:$0xff]
  %v547 = vld [vmem:[%s5 + $0xb40] sm:$0xff]
  %v548 = vld [vmem:[%s5 + $0xb48] sm:$0xff]
  %v549 = vld [vmem:[%s5 + $0xb50] sm:$0xff]
  %v550 = vld [vmem:[%s5 + $0xb58] sm:$0xff]
  %v551 = vld [vmem:[%s5 + $0xb60] sm:$0xff]
  %v552 = vld [vmem:[%s5 + $0xb68] sm:$0xff]
  %v553 = vld [vmem:[%s5 + $0xb70] sm:$0xff]
  %v554 = vld [vmem:[%s5 + $0xb78] sm:$0xff]
  %v555 = vld [vmem:[%s5 + $0xb80] sm:$0xff]
  %v556 = vld [vmem:[%s5 + $0xb88] sm:$0xff]
  %v557 = vld [vmem:[%s5 + $0xb90] sm:$0xff]
  %v558 = vld [vmem:[%s5 + $0xb98] sm:$0xff]
  %v559 = vld [vmem:[%s5 + $0xba0] sm:$0xff]
  %v560 = vld [vmem:[%s5 + $0xba8] sm:$0xff]
  %v561 = vld [vmem:[%s5 + $0xbb0] sm:$0xff]
  %v562 = vld [vmem:[%s5 + $0xbb8] sm:$0xff]
  %v563 = vld [vmem:[%s5 + $0xbc0] sm:$0xff]
  %v564 = vld [vmem:[%s5 + $0xbc8] sm:$0xff]
  %v565 = vld [vmem:[%s5 + $0xbd0] sm:$0xff]
  %v566 = vld [vmem:[%s5 + $0xbd8] sm:$0xff]
  %v567 = vld [vmem:[%s5 + $0xbe0] sm:$0xff]
  %v568 = vld [vmem:[%s5 + $0xbe8] sm:$0xff]
  %v569 = vld [vmem:[%s5 + $0xbf0] sm:$0xff]
  %v570 = vld [vmem:[%s5 + $0xbf8] sm:$0xff]
  %v571 = vld [vmem:[%s5 + $0xc00] sm:$0xff]
  %v572 = vld [vmem:[%s5 + $0xc08] sm:$0xff]
  %v573 = vld [vmem:[%s5 + $0xc10] sm:$0xff]
  %v574 = vld [vmem:[%s5 + $0xc18] sm:$0xff]
  %v575 = vld [vmem:[%s5 + $0xc20] sm:$0xff]
  %v576 = vld [vmem:[%s5 + $0xc28] sm:$0xff]
  %v577 = vld [vmem:[%s5 + $0xc30] sm:$0xff]
  %v578 = vld [vmem:[%s5 + $0xc38] sm:$0xff]
  %v579 = vld [vmem:[%s5 + $0xc40] sm:$0xff]
  %v580 = vld [vmem:[%s5 + $0xc48] sm:$0xff]
  %v581 = vld [vmem:[%s5 + $0xc50] sm:$0xff]
  %v582 = vld [vmem:[%s5 + $0xc58] sm:$0xff]
  %v583 = vld [vmem:[%s5 + $0xc60] sm:$0xff]
  %v584 = vld [vmem:[%s5 + $0xc68] sm:$0xff]
  %v585 = vld [vmem:[%s5 + $0xc70] sm:$0xff]
  %v586 = vld [vmem:[%s5 + $0xc78] sm:$0xff]
  %v587 = vld [vmem:[%s5 + $0xc80] sm:$0xff]
  %v588 = vld [vmem:[%s5 + $0xc88] sm:$0xff]
  %v589 = vld [vmem:[%s5 + $0xc90] sm:$0xff]
  %v590 = vld [vmem:[%s5 + $0xc98] sm:$0xff]
  %v591 = vld [vmem:[%s5 + $0xca0] sm:$0xff]
  %v592 = vld [vmem:[%s5 + $0xca8] sm:$0xff]
  %v593 = vld [vmem:[%s5 + $0xcb0] sm:$0xff]
  %v594 = vld [vmem:[%s5 + $0xcb8] sm:$0xff]
  %v595 = vld [vmem:[%s5 + $0xcc0] sm:$0xff]
  %v596 = vld [vmem:[%s5 + $0xcc8] sm:$0xff]
  %v597 = vld [vmem:[%s5 + $0xcd0] sm:$0xff]
  %v598 = vld [vmem:[%s5 + $0xcd8] sm:$0xff]
  %v599 = vld [vmem:[%s5 + $0xce0] sm:$0xff]
  %v600 = vld [vmem:[%s5 + $0xce8] sm:$0xff]
  %v601 = vld [vmem:[%s5 + $0xcf0] sm:$0xff]
  %v602 = vld [vmem:[%s5 + $0xcf8] sm:$0xff]
  %v603 = vld [vmem:[%s6] sm:$0xff]
  %v604 = vld [vmem:[%s6 + $0x8] sm:$0x1f]
  %v607 = vperm.slane %v603, 0
  %v608 = vperm.slane %v603, 1
  %v609 = vperm.slane %v603, 2
  %v610 = vperm.slane %v603, 3
  %v611 = vperm.slane %v603, 4
  %v612 = vperm.slane %v603, 5
  %v613 = vperm.slane %v603, 6
  %v614 = vperm.slane %v603, 7
  %v615 = vperm.slane %v604, 0
  %v616 = vperm.slane %v604, 1
  %v617 = vperm.slane %v604, 2
  %v618 = vperm.slane %v604, 3
  %v619 = vperm.slane %v604, 4
  %633 = vmatpush.msra.mxu0 %v382
  %634 = vmatpush.msra.mxu0 %v369
  %635 = vmatpush.msra.mxu0 %v356
  %636 = vmatpush.msra.mxu0 %v343
  %637 = vmatpush.msra.mxu0 %v330
  %638 = vmatpush.msra.mxu0 %v317
  %639 = vmatpush.msra.mxu0 %v304
  %640 = vmatpush.msra.mxu0 %v291
  %641 = vmatpush.msra.mxu0 %v278
  %642 = vmatpush.msra.mxu0 %v265
  %643 = vmatpush.msra.mxu0 %v252
  %644 = vmatpush.msra.mxu0 %v239
  %645 = vmatpush.msra.mxu0 %v226
  %646 = vmatpush.msra.mxu0 %v213
  %647 = vmatpush.msra.mxu0 %v200
  %648 = vmatpush.msra.mxu0 %v187
  %649 = vmatmul.f32.gmra.mxu0 %v185
  %v650 = vpop.f32.mrf.mxu0
  %v651 = vadd.f32 %v607, %v650
  %652 = vdwg.mxu0
  %653 = vmatpush.msra.mxu0 %v590
  %654 = vmatpush.msra.mxu0 %v577
  %655 = vmatpush.msra.mxu0 %v564
  %656 = vmatpush.msra.mxu0 %v551
  %657 = vmatpush.msra.mxu0 %v538
  %658 = vmatpush.msra.mxu0 %v525
  %659 = vmatpush.msra.mxu0 %v512
  %660 = vmatpush.msra.mxu0 %v499
  %661 = vmatpush.msra.mxu0 %v486
  %662 = vmatpush.msra.mxu0 %v473
  %663 = vmatpush.msra.mxu0 %v460
  %664 = vmatpush.msra.mxu0 %v447
  %665 = vmatpush.msra.mxu0 %v434
  %666 = vmatpush.msra.mxu0 %v421
  %667 = vmatpush.msra.mxu0 %v408
  %668 = vmatpush.msra.mxu0 %v395
  %669 = vmatmul.f32.gmra.mxu0 %v186
  %v670 = vpop.f32.mrf.mxu0
  %v671 = vadd.f32 %v651, %v670
  %672 = vdwg.mxu0
  %673 = vmatpush.msra.mxu0 %v383
  %674 = vmatpush.msra.mxu0 %v370
  %675 = vmatpush.msra.mxu0 %v357
  %676 = vmatpush.msra.mxu0 %v344
  %677 = vmatpush.msra.mxu0 %v331
  %678 = vmatpush.msra.mxu0 %v318
  %679 = vmatpush.msra.mxu0 %v305
  %680 = vmatpush.msra.mxu0 %v292
  %681 = vmatpush.msra.mxu0 %v279
  %682 = vmatpush.msra.mxu0 %v266
  %683 = vmatpush.msra.mxu0 %v253
  %684 = vmatpush.msra.mxu0 %v240
  %685 = vmatpush.msra.mxu0 %v227
  %686 = vmatpush.msra.mxu0 %v214
  %687 = vmatpush.msra.mxu0 %v201
  %688 = vmatpush.msra.mxu0 %v188
  %689 = vmatmul.f32.gmra.mxu0 %v185
  %v690 = vpop.f32.mrf.mxu0
  %v691 = vadd.f32 %v608, %v690
  %692 = vdwg.mxu0
  %693 = vmatpush.msra.mxu0 %v591
  %694 = vmatpush.msra.mxu0 %v578
  %695 = vmatpush.msra.mxu0 %v565
  %696 = vmatpush.msra.mxu0 %v552
  %697 = vmatpush.msra.mxu0 %v539
  %698 = vmatpush.msra.mxu0 %v526
  %699 = vmatpush.msra.mxu0 %v513
  %700 = vmatpush.msra.mxu0 %v500
  %701 = vmatpush.msra.mxu0 %v487
  %702 = vmatpush.msra.mxu0 %v474
  %703 = vmatpush.msra.mxu0 %v461
  %704 = vmatpush.msra.mxu0 %v448
  %705 = vmatpush.msra.mxu0 %v435
  %706 = vmatpush.msra.mxu0 %v422
  %707 = vmatpush.msra.mxu0 %v409
  %708 = vmatpush.msra.mxu0 %v396
  %709 = vmatmul.f32.gmra.mxu0 %v186
  %v710 = vpop.f32.mrf.mxu0
  %v711 = vadd.f32 %v691, %v710
  %712 = vdwg.mxu0
  %713 = vmatpush.msra.mxu0 %v384
  %714 = vmatpush.msra.mxu0 %v371
  %715 = vmatpush.msra.mxu0 %v358
  %716 = vmatpush.msra.mxu0 %v345
  %717 = vmatpush.msra.mxu0 %v332
  %718 = vmatpush.msra.mxu0 %v319
  %719 = vmatpush.msra.mxu0 %v306
  %720 = vmatpush.msra.mxu0 %v293
  %721 = vmatpush.msra.mxu0 %v280
  %722 = vmatpush.msra.mxu0 %v267
  %723 = vmatpush.msra.mxu0 %v254
  %724 = vmatpush.msra.mxu0 %v241
  %725 = vmatpush.msra.mxu0 %v228
  %726 = vmatpush.msra.mxu0 %v215
  %727 = vmatpush.msra.mxu0 %v202
  %728 = vmatpush.msra.mxu0 %v189
  %729 = vmatmul.f32.gmra.mxu0 %v185
  %v730 = vpop.f32.mrf.mxu0
  %v731 = vadd.f32 %v609, %v730
  %732 = vdwg.mxu0
  %733 = vmatpush.msra.mxu0 %v592
  %734 = vmatpush.msra.mxu0 %v579
  %735 = vmatpush.msra.mxu0 %v566
  %736 = vmatpush.msra.mxu0 %v553
  %737 = vmatpush.msra.mxu0 %v540
  %738 = vmatpush.msra.mxu0 %v527
  %739 = vmatpush.msra.mxu0 %v514
  %740 = vmatpush.msra.mxu0 %v501
  %741 = vmatpush.msra.mxu0 %v488
  %742 = vmatpush.msra.mxu0 %v475
  %743 = vmatpush.msra.mxu0 %v462
  %744 = vmatpush.msra.mxu0 %v449
  %745 = vmatpush.msra.mxu0 %v436
  %746 = vmatpush.msra.mxu0 %v423
  %747 = vmatpush.msra.mxu0 %v410
  %748 = vmatpush.msra.mxu0 %v397
  %749 = vmatmul.f32.gmra.mxu0 %v186
  %v750 = vpop.f32.mrf.mxu0
  %v751 = vadd.f32 %v731, %v750
  %752 = vdwg.mxu0
  %753 = vmatpush.msra.mxu0 %v385
  %754 = vmatpush.msra.mxu0 %v372
  %755 = vmatpush.msra.mxu0 %v359
  %756 = vmatpush.msra.mxu0 %v346
  %757 = vmatpush.msra.mxu0 %v333
  %758 = vmatpush.msra.mxu0 %v320
  %759 = vmatpush.msra.mxu0 %v307
  %760 = vmatpush.msra.mxu0 %v294
  %761 = vmatpush.msra.mxu0 %v281
  %762 = vmatpush.msra.mxu0 %v268
  %763 = vmatpush.msra.mxu0 %v255
  %764 = vmatpush.msra.mxu0 %v242
  %765 = vmatpush.msra.mxu0 %v229
  %766 = vmatpush.msra.mxu0 %v216
  %767 = vmatpush.msra.mxu0 %v203
  %768 = vmatpush.msra.mxu0 %v190
  %769 = vmatmul.f32.gmra.mxu0 %v185
  %v770 = vpop.f32.mrf.mxu0
  %v771 = vadd.f32 %v610, %v770
  %772 = vdwg.mxu0
  %773 = vmatpush.msra.mxu0 %v593
  %774 = vmatpush.msra.mxu0 %v580
  %775 = vmatpush.msra.mxu0 %v567
  %776 = vmatpush.msra.mxu0 %v554
  %777 = vmatpush.msra.mxu0 %v541
  %778 = vmatpush.msra.mxu0 %v528
  %779 = vmatpush.msra.mxu0 %v515
  %780 = vmatpush.msra.mxu0 %v502
  %781 = vmatpush.msra.mxu0 %v489
  %782 = vmatpush.msra.mxu0 %v476
  %783 = vmatpush.msra.mxu0 %v463
  %784 = vmatpush.msra.mxu0 %v450
  %785 = vmatpush.msra.mxu0 %v437
  %786 = vmatpush.msra.mxu0 %v424
  %787 = vmatpush.msra.mxu0 %v411
  %788 = vmatpush.msra.mxu0 %v398
  %789 = vmatmul.f32.gmra.mxu0 %v186
  %v790 = vpop.f32.mrf.mxu0
  %v791 = vadd.f32 %v771, %v790
  %792 = vdwg.mxu0
  %793 = vmatpush.msra.mxu0 %v386
  %794 = vmatpush.msra.mxu0 %v373
  %795 = vmatpush.msra.mxu0 %v360
  %796 = vmatpush.msra.mxu0 %v347
  %797 = vmatpush.msra.mxu0 %v334
  %798 = vmatpush.msra.mxu0 %v321
  %799 = vmatpush.msra.mxu0 %v308
  %800 = vmatpush.msra.mxu0 %v295
  %801 = vmatpush.msra.mxu0 %v282
  %802 = vmatpush.msra.mxu0 %v269
  %803 = vmatpush.msra.mxu0 %v256
  %804 = vmatpush.msra.mxu0 %v243
  %805 = vmatpush.msra.mxu0 %v230
  %806 = vmatpush.msra.mxu0 %v217
  %807 = vmatpush.msra.mxu0 %v204
  %808 = vmatpush.msra.mxu0 %v191
  %809 = vmatmul.f32.gmra.mxu0 %v185
  %v810 = vpop.f32.mrf.mxu0
  %v811 = vadd.f32 %v611, %v810
  %812 = vdwg.mxu0
  %813 = vmatpush.msra.mxu0 %v594
  %814 = vmatpush.msra.mxu0 %v581
  %815 = vmatpush.msra.mxu0 %v568
  %816 = vmatpush.msra.mxu0 %v555
  %817 = vmatpush.msra.mxu0 %v542
  %818 = vmatpush.msra.mxu0 %v529
  %819 = vmatpush.msra.mxu0 %v516
  %820 = vmatpush.msra.mxu0 %v503
  %821 = vmatpush.msra.mxu0 %v490
  %822 = vmatpush.msra.mxu0 %v477
  %823 = vmatpush.msra.mxu0 %v464
  %824 = vmatpush.msra.mxu0 %v451
  %825 = vmatpush.msra.mxu0 %v438
  %826 = vmatpush.msra.mxu0 %v425
  %827 = vmatpush.msra.mxu0 %v412
  %828 = vmatpush.msra.mxu0 %v399
  %829 = vmatmul.f32.gmra.mxu0 %v186
  %v830 = vpop.f32.mrf.mxu0
  %v831 = vadd.f32 %v811, %v830
  %832 = vdwg.mxu0
  %833 = vmatpush.msra.mxu0 %v387
  %834 = vmatpush.msra.mxu0 %v374
  %835 = vmatpush.msra.mxu0 %v361
  %836 = vmatpush.msra.mxu0 %v348
  %837 = vmatpush.msra.mxu0 %v335
  %838 = vmatpush.msra.mxu0 %v322
  %839 = vmatpush.msra.mxu0 %v309
  %840 = vmatpush.msra.mxu0 %v296
  %841 = vmatpush.msra.mxu0 %v283
  %842 = vmatpush.msra.mxu0 %v270
  %843 = vmatpush.msra.mxu0 %v257
  %844 = vmatpush.msra.mxu0 %v244
  %845 = vmatpush.msra.mxu0 %v231
  %846 = vmatpush.msra.mxu0 %v218
  %847 = vmatpush.msra.mxu0 %v205
  %848 = vmatpush.msra.mxu0 %v192
  %849 = vmatmul.f32.gmra.mxu0 %v185
  %v850 = vpop.f32.mrf.mxu0
  %v851 = vadd.f32 %v612, %v850
  %852 = vdwg.mxu0
  %853 = vmatpush.msra.mxu0 %v595
  %854 = vmatpush.msra.mxu0 %v582
  %855 = vmatpush.msra.mxu0 %v569
  %856 = vmatpush.msra.mxu0 %v556
  %857 = vmatpush.msra.mxu0 %v543
  %858 = vmatpush.msra.mxu0 %v530
  %859 = vmatpush.msra.mxu0 %v517
  %860 = vmatpush.msra.mxu0 %v504
  %861 = vmatpush.msra.mxu0 %v491
  %862 = vmatpush.msra.mxu0 %v478
  %863 = vmatpush.msra.mxu0 %v465
  %864 = vmatpush.msra.mxu0 %v452
  %865 = vmatpush.msra.mxu0 %v439
  %866 = vmatpush.msra.mxu0 %v426
  %867 = vmatpush.msra.mxu0 %v413
  %868 = vmatpush.msra.mxu0 %v400
  %869 = vmatmul.f32.gmra.mxu0 %v186
  %v870 = vpop.f32.mrf.mxu0
  %v871 = vadd.f32 %v851, %v870
  %872 = vdwg.mxu0
  %873 = vmatpush.msra.mxu0 %v388
  %874 = vmatpush.msra.mxu0 %v375
  %875 = vmatpush.msra.mxu0 %v362
  %876 = vmatpush.msra.mxu0 %v349
  %877 = vmatpush.msra.mxu0 %v336
  %878 = vmatpush.msra.mxu0 %v323
  %879 = vmatpush.msra.mxu0 %v310
  %880 = vmatpush.msra.mxu0 %v297
  %881 = vmatpush.msra.mxu0 %v284
  %882 = vmatpush.msra.mxu0 %v271
  %883 = vmatpush.msra.mxu0 %v258
  %884 = vmatpush.msra.mxu0 %v245
  %885 = vmatpush.msra.mxu0 %v232
  %886 = vmatpush.msra.mxu0 %v219
  %887 = vmatpush.msra.mxu0 %v206
  %888 = vmatpush.msra.mxu0 %v193
  %889 = vmatmul.f32.gmra.mxu0 %v185
  %v890 = vpop.f32.mrf.mxu0
  %v891 = vadd.f32 %v613, %v890
  %892 = vdwg.mxu0
  %893 = vmatpush.msra.mxu0 %v596
  %894 = vmatpush.msra.mxu0 %v583
  %895 = vmatpush.msra.mxu0 %v570
  %896 = vmatpush.msra.mxu0 %v557
  %897 = vmatpush.msra.mxu0 %v544
  %898 = vmatpush.msra.mxu0 %v531
  %899 = vmatpush.msra.mxu0 %v518
  %900 = vmatpush.msra.mxu0 %v505
  %901 = vmatpush.msra.mxu0 %v492
  %902 = vmatpush.msra.mxu0 %v479
  %903 = vmatpush.msra.mxu0 %v466
  %904 = vmatpush.msra.mxu0 %v453
  %905 = vmatpush.msra.mxu0 %v440
  %906 = vmatpush.msra.mxu0 %v427
  %907 = vmatpush.msra.mxu0 %v414
  %908 = vmatpush.msra.mxu0 %v401
  %909 = vmatmul.f32.gmra.mxu0 %v186
  %v910 = vpop.f32.mrf.mxu0
  %v911 = vadd.f32 %v891, %v910
  %912 = vdwg.mxu0
  %913 = vmatpush.msra.mxu0 %v389
  %914 = vmatpush.msra.mxu0 %v376
  %915 = vmatpush.msra.mxu0 %v363
  %916 = vmatpush.msra.mxu0 %v350
  %917 = vmatpush.msra.mxu0 %v337
  %918 = vmatpush.msra.mxu0 %v324
  %919 = vmatpush.msra.mxu0 %v311
  %920 = vmatpush.msra.mxu0 %v298
  %921 = vmatpush.msra.mxu0 %v285
  %922 = vmatpush.msra.mxu0 %v272
  %923 = vmatpush.msra.mxu0 %v259
  %924 = vmatpush.msra.mxu0 %v246
  %925 = vmatpush.msra.mxu0 %v233
  %926 = vmatpush.msra.mxu0 %v220
  %927 = vmatpush.msra.mxu0 %v207
  %928 = vmatpush.msra.mxu0 %v194
  %929 = vmatmul.f32.gmra.mxu0 %v185
  %v930 = vpop.f32.mrf.mxu0
  %v931 = vadd.f32 %v614, %v930
  %932 = vdwg.mxu0
  %933 = vmatpush.msra.mxu0 %v597
  %934 = vmatpush.msra.mxu0 %v584
  %935 = vmatpush.msra.mxu0 %v571
  %936 = vmatpush.msra.mxu0 %v558
  %937 = vmatpush.msra.mxu0 %v545
  %938 = vmatpush.msra.mxu0 %v532
  %939 = vmatpush.msra.mxu0 %v519
  %940 = vmatpush.msra.mxu0 %v506
  %941 = vmatpush.msra.mxu0 %v493
  %942 = vmatpush.msra.mxu0 %v480
  %943 = vmatpush.msra.mxu0 %v467
  %944 = vmatpush.msra.mxu0 %v454
  %945 = vmatpush.msra.mxu0 %v441
  %946 = vmatpush.msra.mxu0 %v428
  %947 = vmatpush.msra.mxu0 %v415
  %948 = vmatpush.msra.mxu0 %v402
  %949 = vmatmul.f32.gmra.mxu0 %v186
  %v950 = vpop.f32.mrf.mxu0
  %v951 = vadd.f32 %v931, %v950
  %952 = vdwg.mxu0
  %953 = vmatpush.msra.mxu0 %v390
  %954 = vmatpush.msra.mxu0 %v377
  %955 = vmatpush.msra.mxu0 %v364
  %956 = vmatpush.msra.mxu0 %v351
  %957 = vmatpush.msra.mxu0 %v338
  %958 = vmatpush.msra.mxu0 %v325
  %959 = vmatpush.msra.mxu0 %v312
  %960 = vmatpush.msra.mxu0 %v299
  %961 = vmatpush.msra.mxu0 %v286
  %962 = vmatpush.msra.mxu0 %v273
  %963 = vmatpush.msra.mxu0 %v260
  %964 = vmatpush.msra.mxu0 %v247
  %965 = vmatpush.msra.mxu0 %v234
  %966 = vmatpush.msra.mxu0 %v221
  %967 = vmatpush.msra.mxu0 %v208
  %968 = vmatpush.msra.mxu0 %v195
  %969 = vmatmul.f32.gmra.mxu0 %v185
  %v970 = vpop.f32.mrf.mxu0
  %v971 = vadd.f32 %v615, %v970
  %972 = vdwg.mxu0
  %973 = vmatpush.msra.mxu0 %v598
  %974 = vmatpush.msra.mxu0 %v585
  %975 = vmatpush.msra.mxu0 %v572
  %976 = vmatpush.msra.mxu0 %v559
  %977 = vmatpush.msra.mxu0 %v546
  %978 = vmatpush.msra.mxu0 %v533
  %979 = vmatpush.msra.mxu0 %v520
  %980 = vmatpush.msra.mxu0 %v507
  %981 = vmatpush.msra.mxu0 %v494
  %982 = vmatpush.msra.mxu0 %v481
  %983 = vmatpush.msra.mxu0 %v468
  %984 = vmatpush.msra.mxu0 %v455
  %985 = vmatpush.msra.mxu0 %v442
  %986 = vmatpush.msra.mxu0 %v429
  %987 = vmatpush.msra.mxu0 %v416
  %988 = vmatpush.msra.mxu0 %v403
  %989 = vmatmul.f32.gmra.mxu0 %v186
  %v990 = vpop.f32.mrf.mxu0
  %v991 = vadd.f32 %v971, %v990
  %992 = vdwg.mxu0
  %993 = vmatpush.msra.mxu0 %v391
  %994 = vmatpush.msra.mxu0 %v378
  %995 = vmatpush.msra.mxu0 %v365
  %996 = vmatpush.msra.mxu0 %v352
  %997 = vmatpush.msra.mxu0 %v339
  %998 = vmatpush.msra.mxu0 %v326
  %999 = vmatpush.msra.mxu0 %v313
  %1000 = vmatpush.msra.mxu0 %v300
  %1001 = vmatpush.msra.mxu0 %v287
  %1002 = vmatpush.msra.mxu0 %v274
  %1003 = vmatpush.msra.mxu0 %v261
  %1004 = vmatpush.msra.mxu0 %v248
  %1005 = vmatpush.msra.mxu0 %v235
  %1006 = vmatpush.msra.mxu0 %v222
  %1007 = vmatpush.msra.mxu0 %v209
  %1008 = vmatpush.msra.mxu0 %v196
  %1009 = vmatmul.f32.gmra.mxu0 %v185
  %v1010 = vpop.f32.mrf.mxu0
  %v1011 = vadd.f32 %v616, %v1010
  %1012 = vdwg.mxu0
  %1013 = vmatpush.msra.mxu0 %v599
  %1014 = vmatpush.msra.mxu0 %v586
  %1015 = vmatpush.msra.mxu0 %v573
  %1016 = vmatpush.msra.mxu0 %v560
  %1017 = vmatpush.msra.mxu0 %v547
  %1018 = vmatpush.msra.mxu0 %v534
  %1019 = vmatpush.msra.mxu0 %v521
  %1020 = vmatpush.msra.mxu0 %v508
  %1021 = vmatpush.msra.mxu0 %v495
  %1022 = vmatpush.msra.mxu0 %v482
  %1023 = vmatpush.msra.mxu0 %v469
  %1024 = vmatpush.msra.mxu0 %v456
  %1025 = vmatpush.msra.mxu0 %v443
  %1026 = vmatpush.msra.mxu0 %v430
  %1027 = vmatpush.msra.mxu0 %v417
  %1028 = vmatpush.msra.mxu0 %v404
  %1029 = vmatmul.f32.gmra.mxu0 %v186
  %v1030 = vpop.f32.mrf.mxu0
  %v1031 = vadd.f32 %v1011, %v1030
  %1032 = vdwg.mxu0
  %1033 = vmatpush.msra.mxu0 %v392
  %1034 = vmatpush.msra.mxu0 %v379
  %1035 = vmatpush.msra.mxu0 %v366
  %1036 = vmatpush.msra.mxu0 %v353
  %1037 = vmatpush.msra.mxu0 %v340
  %1038 = vmatpush.msra.mxu0 %v327
  %1039 = vmatpush.msra.mxu0 %v314
  %1040 = vmatpush.msra.mxu0 %v301
  %1041 = vmatpush.msra.mxu0 %v288
  %1042 = vmatpush.msra.mxu0 %v275
  %1043 = vmatpush.msra.mxu0 %v262
  %1044 = vmatpush.msra.mxu0 %v249
  %1045 = vmatpush.msra.mxu0 %v236
  %1046 = vmatpush.msra.mxu0 %v223
  %1047 = vmatpush.msra.mxu0 %v210
  %1048 = vmatpush.msra.mxu0 %v197
  %1049 = vmatmul.f32.gmra.mxu0 %v185
  %v1050 = vpop.f32.mrf.mxu0
  %v1051 = vadd.f32 %v617, %v1050
  %1052 = vdwg.mxu0
  %1053 = vmatpush.msra.mxu0 %v600
  %1054 = vmatpush.msra.mxu0 %v587
  %1055 = vmatpush.msra.mxu0 %v574
  %1056 = vmatpush.msra.mxu0 %v561
  %1057 = vmatpush.msra.mxu0 %v548
  %1058 = vmatpush.msra.mxu0 %v535
  %1059 = vmatpush.msra.mxu0 %v522
  %1060 = vmatpush.msra.mxu0 %v509
  %1061 = vmatpush.msra.mxu0 %v496
  %1062 = vmatpush.msra.mxu0 %v483
  %1063 = vmatpush.msra.mxu0 %v470
  %1064 = vmatpush.msra.mxu0 %v457
  %1065 = vmatpush.msra.mxu0 %v444
  %1066 = vmatpush.msra.mxu0 %v431
  %1067 = vmatpush.msra.mxu0 %v418
  %1068 = vmatpush.msra.mxu0 %v405
  %1069 = vmatmul.f32.gmra.mxu0 %v186
  %v1070 = vpop.f32.mrf.mxu0
  %v1071 = vadd.f32 %v1051, %v1070
  %1072 = vdwg.mxu0
  %1073 = vmatpush.msra.mxu0 %v393
  %1074 = vmatpush.msra.mxu0 %v380
  %1075 = vmatpush.msra.mxu0 %v367
  %1076 = vmatpush.msra.mxu0 %v354
  %1077 = vmatpush.msra.mxu0 %v341
  %1078 = vmatpush.msra.mxu0 %v328
  %1079 = vmatpush.msra.mxu0 %v315
  %1080 = vmatpush.msra.mxu0 %v302
  %1081 = vmatpush.msra.mxu0 %v289
  %1082 = vmatpush.msra.mxu0 %v276
  %1083 = vmatpush.msra.mxu0 %v263
  %1084 = vmatpush.msra.mxu0 %v250
  %1085 = vmatpush.msra.mxu0 %v237
  %1086 = vmatpush.msra.mxu0 %v224
  %1087 = vmatpush.msra.mxu0 %v211
  %1088 = vmatpush.msra.mxu0 %v198
  %1089 = vmatmul.f32.gmra.mxu0 %v185
  %v1090 = vpop.f32.mrf.mxu0
  %v1091 = vadd.f32 %v618, %v1090
  %1092 = vdwg.mxu0
  %1093 = vmatpush.msra.mxu0 %v601
  %1094 = vmatpush.msra.mxu0 %v588
  %1095 = vmatpush.msra.mxu0 %v575
  %1096 = vmatpush.msra.mxu0 %v562
  %1097 = vmatpush.msra.mxu0 %v549
  %1098 = vmatpush.msra.mxu0 %v536
  %1099 = vmatpush.msra.mxu0 %v523
  %1100 = vmatpush.msra.mxu0 %v510
  %1101 = vmatpush.msra.mxu0 %v497
  %1102 = vmatpush.msra.mxu0 %v484
  %1103 = vmatpush.msra.mxu0 %v471
  %1104 = vmatpush.msra.mxu0 %v458
  %1105 = vmatpush.msra.mxu0 %v445
  %1106 = vmatpush.msra.mxu0 %v432
  %1107 = vmatpush.msra.mxu0 %v419
  %1108 = vmatpush.msra.mxu0 %v406
  %1109 = vmatmul.f32.gmra.mxu0 %v186
  %v1110 = vpop.f32.mrf.mxu0
  %v1111 = vadd.f32 %v1091, %v1110
  %1112 = vdwg.mxu0
  %1113 = vmatpush.msra.mxu0 %v394
  %1114 = vmatpush.msra.mxu0 %v381
  %1115 = vmatpush.msra.mxu0 %v368
  %1116 = vmatpush.msra.mxu0 %v355
  %1117 = vmatpush.msra.mxu0 %v342
  %1118 = vmatpush.msra.mxu0 %v329
  %1119 = vmatpush.msra.mxu0 %v316
  %1120 = vmatpush.msra.mxu0 %v303
  %1121 = vmatpush.msra.mxu0 %v290
  %1122 = vmatpush.msra.mxu0 %v277
  %1123 = vmatpush.msra.mxu0 %v264
  %1124 = vmatpush.msra.mxu0 %v251
  %1125 = vmatpush.msra.mxu0 %v238
  %1126 = vmatpush.msra.mxu0 %v225
  %1127 = vmatpush.msra.mxu0 %v212
  %1128 = vmatpush.msra.mxu0 %v199
  %1129 = vmatmul.f32.gmra.mxu0 %v185
  %v1130 = vpop.f32.mrf.mxu0
  %v1131 = vadd.f32 %v619, %v1130
  %1132 = vdwg.mxu0
  %1133 = vmatpush.msra.mxu0 %v602
  %1134 = vmatpush.msra.mxu0 %v589
  %1135 = vmatpush.msra.mxu0 %v576
  %1136 = vmatpush.msra.mxu0 %v563
  %1137 = vmatpush.msra.mxu0 %v550
  %1138 = vmatpush.msra.mxu0 %v537
  %1139 = vmatpush.msra.mxu0 %v524
  %1140 = vmatpush.msra.mxu0 %v511
  %1141 = vmatpush.msra.mxu0 %v498
  %1142 = vmatpush.msra.mxu0 %v485
  %1143 = vmatpush.msra.mxu0 %v472
  %1144 = vmatpush.msra.mxu0 %v459
  %1145 = vmatpush.msra.mxu0 %v446
  %1146 = vmatpush.msra.mxu0 %v433
  %1147 = vmatpush.msra.mxu0 %v420
  %1148 = vmatpush.msra.mxu0 %v407
  %1149 = vmatmul.f32.gmra.mxu0 %v186
  %v1150 = vpop.f32.mrf.mxu0
  %v1151 = vadd.f32 %v1131, %v1150
  %1152 = vdwg.mxu0
  %v1153 = vld [vmem:[%s7] sm:$0xff]
  %v1154 = vld [vmem:[%s7 + $0x8] sm:$0x1f]
  %v1155 = vld [vmem:[%s8] sm:$0xff]
  %v1156 = vld [vmem:[%s8 + $0x8] sm:$0x1f]
  %v1157 = vrot.slane %v671, 4
  %v1158 = vadd.f32 %v671, %v1157
  %v1159 = vrot.slane %v1158, 2
  %v1160 = vadd.f32 %v1158, %v1159
  %v1161 = vrot.slane %v1160, 1
  %v1162 = vadd.f32 %v1160, %v1161
  %v1163 = vrot.slane %v711, 4
  %v1164 = vadd.f32 %v711, %v1163
  %v1165 = vrot.slane %v1164, 2
  %v1166 = vadd.f32 %v1164, %v1165
  %v1167 = vrot.slane %v1166, 1
  %v1168 = vadd.f32 %v1166, %v1167
  %v1169 = vrot.slane %v751, 4
  %v1170 = vadd.f32 %v751, %v1169
  %v1171 = vrot.slane %v1170, 2
  %v1172 = vadd.f32 %v1170, %v1171
  %v1173 = vrot.slane %v1172, 1
  %v1174 = vadd.f32 %v1172, %v1173
  %v1175 = vrot.slane %v791, 4
  %v1176 = vadd.f32 %v791, %v1175
  %v1177 = vrot.slane %v1176, 2
  %v1178 = vadd.f32 %v1176, %v1177
  %v1179 = vrot.slane %v1178, 1
  %v1180 = vadd.f32 %v1178, %v1179
  %v1181 = vrot.slane %v831, 4
  %v1182 = vadd.f32 %v831, %v1181
  %v1183 = vrot.slane %v1182, 2
  %v1184 = vadd.f32 %v1182, %v1183
  %v1185 = vrot.slane %v1184, 1
  %v1186 = vadd.f32 %v1184, %v1185
  %v1187 = vrot.slane %v871, 4
  %v1188 = vadd.f32 %v871, %v1187
  %v1189 = vrot.slane %v1188, 2
  %v1190 = vadd.f32 %v1188, %v1189
  %v1191 = vrot.slane %v1190, 1
  %v1192 = vadd.f32 %v1190, %v1191
  %v1193 = vrot.slane %v911, 4
  %v1194 = vadd.f32 %v911, %v1193
  %v1195 = vrot.slane %v1194, 2
  %v1196 = vadd.f32 %v1194, %v1195
  %v1197 = vrot.slane %v1196, 1
  %v1198 = vadd.f32 %v1196, %v1197
  %v1199 = vrot.slane %v951, 4
  %v1200 = vadd.f32 %v951, %v1199
  %v1201 = vrot.slane %v1200, 2
  %v1202 = vadd.f32 %v1200, %v1201
  %v1203 = vrot.slane %v1202, 1
  %v1204 = vadd.f32 %v1202, %v1203
  %v1205 = vrot.slane %v991, 4
  %v1206 = vadd.f32 %v991, %v1205
  %v1207 = vrot.slane %v1206, 2
  %v1208 = vadd.f32 %v1206, %v1207
  %v1209 = vrot.slane %v1208, 1
  %v1210 = vadd.f32 %v1208, %v1209
  %v1211 = vrot.slane %v1031, 4
  %v1212 = vadd.f32 %v1031, %v1211
  %v1213 = vrot.slane %v1212, 2
  %v1214 = vadd.f32 %v1212, %v1213
  %v1215 = vrot.slane %v1214, 1
  %v1216 = vadd.f32 %v1214, %v1215
  %v1217 = vrot.slane %v1071, 4
  %v1218 = vadd.f32 %v1071, %v1217
  %v1219 = vrot.slane %v1218, 2
  %v1220 = vadd.f32 %v1218, %v1219
  %v1221 = vrot.slane %v1220, 1
  %v1222 = vadd.f32 %v1220, %v1221
  %v1223 = vrot.slane %v1111, 4
  %v1224 = vadd.f32 %v1111, %v1223
  %v1225 = vrot.slane %v1224, 2
  %v1226 = vadd.f32 %v1224, %v1225
  %v1227 = vrot.slane %v1226, 1
  %v1228 = vadd.f32 %v1226, %v1227
  %vm1229 = vcmask 261120
  %v1230 = vsel %vm1229, %v1151, 0.0
  %v1231 = vrot.slane %v1230, 4
  %v1232 = vadd.f32 %v1230, %v1231
  %v1233 = vrot.slane %v1232, 2
  %v1234 = vadd.f32 %v1232, %v1233
  %v1235 = vrot.slane %v1234, 1
  %v1236 = vadd.f32 %v1234, %v1235
  %v1237 = vmul.f32 %v1162, %v126
  %v1238 = vmul.f32 %v1168, %v126
  %v1239 = vmul.f32 %v1174, %v126
  %v1240 = vmul.f32 %v1180, %v126
  %v1241 = vmul.f32 %v1186, %v126
  %v1242 = vmul.f32 %v1192, %v126
  %v1243 = vmul.f32 %v1198, %v126
  %v1244 = vmul.f32 %v1204, %v126
  %v1245 = vmul.f32 %v1210, %v126
  %v1246 = vmul.f32 %v1216, %v126
  %v1247 = vmul.f32 %v1222, %v126
  %v1248 = vmul.f32 %v1228, %v126
  %v1249 = vmul.f32 %v1236, %v126
  %v1250 = vsub.f32 %v671, %v1237
  %v1251 = vsub.f32 %v711, %v1238
  %v1252 = vsub.f32 %v751, %v1239
  %v1253 = vsub.f32 %v791, %v1240
  %v1254 = vsub.f32 %v831, %v1241
  %v1255 = vsub.f32 %v871, %v1242
  %v1256 = vsub.f32 %v911, %v1243
  %v1257 = vsub.f32 %v951, %v1244
  %v1258 = vsub.f32 %v991, %v1245
  %v1259 = vsub.f32 %v1031, %v1246
  %v1260 = vsub.f32 %v1071, %v1247
  %v1261 = vsub.f32 %v1111, %v1248
  %v1262 = vsub.f32 %v1151, %v1249
  %v1263 = vmul.f32 %v1250, %v1250
  %v1264 = vmul.f32 %v1251, %v1251
  %v1265 = vmul.f32 %v1252, %v1252
  %v1266 = vmul.f32 %v1253, %v1253
  %v1267 = vmul.f32 %v1254, %v1254
  %v1268 = vmul.f32 %v1255, %v1255
  %v1269 = vmul.f32 %v1256, %v1256
  %v1270 = vmul.f32 %v1257, %v1257
  %v1271 = vmul.f32 %v1258, %v1258
  %v1272 = vmul.f32 %v1259, %v1259
  %v1273 = vmul.f32 %v1260, %v1260
  %v1274 = vmul.f32 %v1261, %v1261
  %v1275 = vmul.f32 %v1262, %v1262
  %v1276 = vrot.slane %v1263, 4
  %v1277 = vadd.f32 %v1263, %v1276
  %v1278 = vrot.slane %v1277, 2
  %v1279 = vadd.f32 %v1277, %v1278
  %v1280 = vrot.slane %v1279, 1
  %v1281 = vadd.f32 %v1279, %v1280
  %v1282 = vrot.slane %v1264, 4
  %v1283 = vadd.f32 %v1264, %v1282
  %v1284 = vrot.slane %v1283, 2
  %v1285 = vadd.f32 %v1283, %v1284
  %v1286 = vrot.slane %v1285, 1
  %v1287 = vadd.f32 %v1285, %v1286
  %v1288 = vrot.slane %v1265, 4
  %v1289 = vadd.f32 %v1265, %v1288
  %v1290 = vrot.slane %v1289, 2
  %v1291 = vadd.f32 %v1289, %v1290
  %v1292 = vrot.slane %v1291, 1
  %v1293 = vadd.f32 %v1291, %v1292
  %v1294 = vrot.slane %v1266, 4
  %v1295 = vadd.f32 %v1266, %v1294
  %v1296 = vrot.slane %v1295, 2
  %v1297 = vadd.f32 %v1295, %v1296
  %v1298 = vrot.slane %v1297, 1
  %v1299 = vadd.f32 %v1297, %v1298
  %v1300 = vrot.slane %v1267, 4
  %v1301 = vadd.f32 %v1267, %v1300
  %v1302 = vrot.slane %v1301, 2
  %v1303 = vadd.f32 %v1301, %v1302
  %v1304 = vrot.slane %v1303, 1
  %v1305 = vadd.f32 %v1303, %v1304
  %v1306 = vrot.slane %v1268, 4
  %v1307 = vadd.f32 %v1268, %v1306
  %v1308 = vrot.slane %v1307, 2
  %v1309 = vadd.f32 %v1307, %v1308
  %v1310 = vrot.slane %v1309, 1
  %v1311 = vadd.f32 %v1309, %v1310
  %v1312 = vrot.slane %v1269, 4
  %v1313 = vadd.f32 %v1269, %v1312
  %v1314 = vrot.slane %v1313, 2
  %v1315 = vadd.f32 %v1313, %v1314
  %v1316 = vrot.slane %v1315, 1
  %v1317 = vadd.f32 %v1315, %v1316
  %v1318 = vrot.slane %v1270, 4
  %v1319 = vadd.f32 %v1270, %v1318
  %v1320 = vrot.slane %v1319, 2
  %v1321 = vadd.f32 %v1319, %v1320
  %v1322 = vrot.slane %v1321, 1
  %v1323 = vadd.f32 %v1321, %v1322
  %v1324 = vrot.slane %v1271, 4
  %v1325 = vadd.f32 %v1271, %v1324
  %v1326 = vrot.slane %v1325, 2
  %v1327 = vadd.f32 %v1325, %v1326
  %v1328 = vrot.slane %v1327, 1
  %v1329 = vadd.f32 %v1327, %v1328
  %v1330 = vrot.slane %v1272, 4
  %v1331 = vadd.f32 %v1272, %v1330
  %v1332 = vrot.slane %v1331, 2
  %v1333 = vadd.f32 %v1331, %v1332
  %v1334 = vrot.slane %v1333, 1
  %v1335 = vadd.f32 %v1333, %v1334
  %v1336 = vrot.slane %v1273, 4
  %v1337 = vadd.f32 %v1273, %v1336
  %v1338 = vrot.slane %v1337, 2
  %v1339 = vadd.f32 %v1337, %v1338
  %v1340 = vrot.slane %v1339, 1
  %v1341 = vadd.f32 %v1339, %v1340
  %v1342 = vrot.slane %v1274, 4
  %v1343 = vadd.f32 %v1274, %v1342
  %v1344 = vrot.slane %v1343, 2
  %v1345 = vadd.f32 %v1343, %v1344
  %v1346 = vrot.slane %v1345, 1
  %v1347 = vadd.f32 %v1345, %v1346
  %v1348 = vsel %vm1229, %v1275, 0.0
  %v1349 = vrot.slane %v1348, 4
  %v1350 = vadd.f32 %v1348, %v1349
  %v1351 = vrot.slane %v1350, 2
  %v1352 = vadd.f32 %v1350, %v1351
  %v1353 = vrot.slane %v1352, 1
  %v1354 = vadd.f32 %v1352, %v1353
  %v1355 = vmul.f32 %v1281, %v126
  %v1356 = vmul.f32 %v1287, %v126
  %v1357 = vmul.f32 %v1293, %v126
  %v1358 = vmul.f32 %v1299, %v126
  %v1359 = vmul.f32 %v1305, %v126
  %v1360 = vmul.f32 %v1311, %v126
  %v1361 = vmul.f32 %v1317, %v126
  %v1362 = vmul.f32 %v1323, %v126
  %v1363 = vmul.f32 %v1329, %v126
  %v1364 = vmul.f32 %v1335, %v126
  %v1365 = vmul.f32 %v1341, %v126
  %v1366 = vmul.f32 %v1347, %v126
  %v1367 = vmul.f32 %v1354, %v126
  %v1368 = vadd.f32 %v1355, 1e-05
  %v1369 = vadd.f32 %v1356, 1e-05
  %v1370 = vadd.f32 %v1357, 1e-05
  %v1371 = vadd.f32 %v1358, 1e-05
  %v1372 = vadd.f32 %v1359, 1e-05
  %v1373 = vadd.f32 %v1360, 1e-05
  %v1374 = vadd.f32 %v1361, 1e-05
  %v1375 = vadd.f32 %v1362, 1e-05
  %v1376 = vadd.f32 %v1363, 1e-05
  %v1377 = vadd.f32 %v1364, 1e-05
  %v1378 = vadd.f32 %v1365, 1e-05
  %v1379 = vadd.f32 %v1366, 1e-05
  %v1380 = vadd.f32 %v1367, 1e-05
  %v1381 = vrsqrt.pop %v1368
  %v1382 = vmul.f32 %v1381, %v1368
  %v1383 = vmul.f32 %v1382, %v1381
  %v1384 = vmul.f32 0.5, %v1383
  %v1385 = vsub.f32 1.5, %v1384
  %v1386 = vmul.f32 %v1381, %v1385
  %vm1387 = vweird.f32 %v1368
  %vm1388 = vweird.f32 %v1381
  %vm1389 = vmor %vm1387, %vm1388
  %v1390 = vsel %vm1389, %v1381, %v1386
  %v1391 = vrsqrt.pop %v1369
  %v1392 = vmul.f32 %v1391, %v1369
  %v1393 = vmul.f32 %v1392, %v1391
  %v1394 = vmul.f32 0.5, %v1393
  %v1395 = vsub.f32 1.5, %v1394
  %v1396 = vmul.f32 %v1391, %v1395
  %vm1397 = vweird.f32 %v1369
  %vm1398 = vweird.f32 %v1391
  %vm1399 = vmor %vm1397, %vm1398
  %v1400 = vsel %vm1399, %v1391, %v1396
  %v1401 = vrsqrt.pop %v1370
  %v1402 = vmul.f32 %v1401, %v1370
  %v1403 = vmul.f32 %v1402, %v1401
  %v1404 = vmul.f32 0.5, %v1403
  %v1405 = vsub.f32 1.5, %v1404
  %v1406 = vmul.f32 %v1401, %v1405
  %vm1407 = vweird.f32 %v1370
  %vm1408 = vweird.f32 %v1401
  %vm1409 = vmor %vm1407, %vm1408
  %v1410 = vsel %vm1409, %v1401, %v1406
  %v1411 = vrsqrt.pop %v1371
  %v1412 = vmul.f32 %v1411, %v1371
  %v1413 = vmul.f32 %v1412, %v1411
  %v1414 = vmul.f32 0.5, %v1413
  %v1415 = vsub.f32 1.5, %v1414
  %v1416 = vmul.f32 %v1411, %v1415
  %vm1417 = vweird.f32 %v1371
  %vm1418 = vweird.f32 %v1411
  %vm1419 = vmor %vm1417, %vm1418
  %v1420 = vsel %vm1419, %v1411, %v1416
  %v1421 = vrsqrt.pop %v1372
  %v1422 = vmul.f32 %v1421, %v1372
  %v1423 = vmul.f32 %v1422, %v1421
  %v1424 = vmul.f32 0.5, %v1423
  %v1425 = vsub.f32 1.5, %v1424
  %v1426 = vmul.f32 %v1421, %v1425
  %vm1427 = vweird.f32 %v1372
  %vm1428 = vweird.f32 %v1421
  %vm1429 = vmor %vm1427, %vm1428
  %v1430 = vsel %vm1429, %v1421, %v1426
  %v1431 = vrsqrt.pop %v1373
  %v1432 = vmul.f32 %v1431, %v1373
  %v1433 = vmul.f32 %v1432, %v1431
  %v1434 = vmul.f32 0.5, %v1433
  %v1435 = vsub.f32 1.5, %v1434
  %v1436 = vmul.f32 %v1431, %v1435
  %vm1437 = vweird.f32 %v1373
  %vm1438 = vweird.f32 %v1431
  %vm1439 = vmor %vm1437, %vm1438
  %v1440 = vsel %vm1439, %v1431, %v1436
  %v1441 = vrsqrt.pop %v1374
  %v1442 = vmul.f32 %v1441, %v1374
  %v1443 = vmul.f32 %v1442, %v1441
  %v1444 = vmul.f32 0.5, %v1443
  %v1445 = vsub.f32 1.5, %v1444
  %v1446 = vmul.f32 %v1441, %v1445
  %vm1447 = vweird.f32 %v1374
  %vm1448 = vweird.f32 %v1441
  %vm1449 = vmor %vm1447, %vm1448
  %v1450 = vsel %vm1449, %v1441, %v1446
  %v1451 = vrsqrt.pop %v1375
  %v1452 = vmul.f32 %v1451, %v1375
  %v1453 = vmul.f32 %v1452, %v1451
  %v1454 = vmul.f32 0.5, %v1453
  %v1455 = vsub.f32 1.5, %v1454
  %v1456 = vmul.f32 %v1451, %v1455
  %vm1457 = vweird.f32 %v1375
  %vm1458 = vweird.f32 %v1451
  %vm1459 = vmor %vm1457, %vm1458
  %v1460 = vsel %vm1459, %v1451, %v1456
  %v1461 = vrsqrt.pop %v1376
  %v1462 = vmul.f32 %v1461, %v1376
  %v1463 = vmul.f32 %v1462, %v1461
  %v1464 = vmul.f32 0.5, %v1463
  %v1465 = vsub.f32 1.5, %v1464
  %v1466 = vmul.f32 %v1461, %v1465
  %vm1467 = vweird.f32 %v1376
  %vm1468 = vweird.f32 %v1461
  %vm1469 = vmor %vm1467, %vm1468
  %v1470 = vsel %vm1469, %v1461, %v1466
  %v1471 = vrsqrt.pop %v1377
  %v1472 = vmul.f32 %v1471, %v1377
  %v1473 = vmul.f32 %v1472, %v1471
  %v1474 = vmul.f32 0.5, %v1473
  %v1475 = vsub.f32 1.5, %v1474
  %v1476 = vmul.f32 %v1471, %v1475
  %vm1477 = vweird.f32 %v1377
  %vm1478 = vweird.f32 %v1471
  %vm1479 = vmor %vm1477, %vm1478
  %v1480 = vsel %vm1479, %v1471, %v1476
  %v1481 = vrsqrt.pop %v1378
  %v1482 = vmul.f32 %v1481, %v1378
  %v1483 = vmul.f32 %v1482, %v1481
  %v1484 = vmul.f32 0.5, %v1483
  %v1485 = vsub.f32 1.5, %v1484
  %v1486 = vmul.f32 %v1481, %v1485
  %vm1487 = vweird.f32 %v1378
  %vm1488 = vweird.f32 %v1481
  %vm1489 = vmor %vm1487, %vm1488
  %v1490 = vsel %vm1489, %v1481, %v1486
  %v1491 = vrsqrt.pop %v1379
  %v1492 = vmul.f32 %v1491, %v1379
  %v1493 = vmul.f32 %v1492, %v1491
  %v1494 = vmul.f32 0.5, %v1493
  %v1495 = vsub.f32 1.5, %v1494
  %v1496 = vmul.f32 %v1491, %v1495
  %vm1497 = vweird.f32 %v1379
  %vm1498 = vweird.f32 %v1491
  %vm1499 = vmor %vm1497, %vm1498
  %v1500 = vsel %vm1499, %v1491, %v1496
  %v1501 = vrsqrt.pop %v1380
  %v1502 = vmul.f32 %v1501, %v1380
  %v1503 = vmul.f32 %v1502, %v1501
  %v1504 = vmul.f32 0.5, %v1503
  %v1505 = vsub.f32 1.5, %v1504
  %v1506 = vmul.f32 %v1501, %v1505
  %vm1507 = vweird.f32 %v1380
  %vm1508 = vweird.f32 %v1501
  %vm1509 = vmor %vm1507, %vm1508
  %v1510 = vsel %vm1509, %v1501, %v1506
  %v1511 = vmul.f32 %v1250, %v1390
  %v1512 = vmul.f32 %v1251, %v1400
  %v1513 = vmul.f32 %v1252, %v1410
  %v1514 = vmul.f32 %v1253, %v1420
  %v1515 = vmul.f32 %v1254, %v1430
  %v1516 = vmul.f32 %v1255, %v1440
  %v1517 = vmul.f32 %v1256, %v1450
  %v1518 = vmul.f32 %v1257, %v1460
  %v1519 = vmul.f32 %v1258, %v1470
  %v1520 = vmul.f32 %v1259, %v1480
  %v1521 = vmul.f32 %v1260, %v1490
  %v1522 = vmul.f32 %v1261, %v1500
  %v1523 = vmul.f32 %v1262, %v1510
  %v1526 = vperm.slane %v1153, 0
  %v1527 = vperm.slane %v1153, 1
  %v1528 = vperm.slane %v1153, 2
  %v1529 = vperm.slane %v1153, 3
  %v1530 = vperm.slane %v1153, 4
  %v1531 = vperm.slane %v1153, 5
  %v1532 = vperm.slane %v1153, 6
  %v1533 = vperm.slane %v1153, 7
  %v1534 = vperm.slane %v1154, 0
  %v1535 = vperm.slane %v1154, 1
  %v1536 = vperm.slane %v1154, 2
  %v1537 = vperm.slane %v1154, 3
  %v1538 = vperm.slane %v1154, 4
  %v1552 = vmul.f32 %v1511, %v1526
  %v1553 = vmul.f32 %v1512, %v1527
  %v1554 = vmul.f32 %v1513, %v1528
  %v1555 = vmul.f32 %v1514, %v1529
  %v1556 = vmul.f32 %v1515, %v1530
  %v1557 = vmul.f32 %v1516, %v1531
  %v1558 = vmul.f32 %v1517, %v1532
  %v1559 = vmul.f32 %v1518, %v1533
  %v1560 = vmul.f32 %v1519, %v1534
  %v1561 = vmul.f32 %v1520, %v1535
  %v1562 = vmul.f32 %v1521, %v1536
  %v1563 = vmul.f32 %v1522, %v1537
  %v1564 = vmul.f32 %v1523, %v1538
  %v1567 = vperm.slane %v1155, 0
  %v1568 = vperm.slane %v1155, 1
  %v1569 = vperm.slane %v1155, 2
  %v1570 = vperm.slane %v1155, 3
  %v1571 = vperm.slane %v1155, 4
  %v1572 = vperm.slane %v1155, 5
  %v1573 = vperm.slane %v1155, 6
  %v1574 = vperm.slane %v1155, 7
  %v1575 = vperm.slane %v1156, 0
  %v1576 = vperm.slane %v1156, 1
  %v1577 = vperm.slane %v1156, 2
  %v1578 = vperm.slane %v1156, 3
  %v1579 = vperm.slane %v1156, 4
  %v1593 = vadd.f32 %v1552, %v1567
  %v1594 = vadd.f32 %v1553, %v1568
  %v1595 = vadd.f32 %v1554, %v1569
  %v1596 = vadd.f32 %v1555, %v1570
  %v1597 = vadd.f32 %v1556, %v1571
  %v1598 = vadd.f32 %v1557, %v1572
  %v1599 = vadd.f32 %v1558, %v1573
  %v1600 = vadd.f32 %v1559, %v1574
  %v1601 = vadd.f32 %v1560, %v1575
  %v1602 = vadd.f32 %v1561, %v1576
  %v1603 = vadd.f32 %v1562, %v1577
  %v1604 = vadd.f32 %v1563, %v1578
  %v1605 = vadd.f32 %v1564, %v1579
  %v1606 = vmax.f32 %v1593, 0.0
  %v1607 = vmax.f32 %v1594, 0.0
  %v1608 = vmax.f32 %v1595, 0.0
  %v1609 = vmax.f32 %v1596, 0.0
  %v1610 = vmax.f32 %v1597, 0.0
  %v1611 = vmax.f32 %v1598, 0.0
  %v1612 = vmax.f32 %v1599, 0.0
  %v1613 = vmax.f32 %v1600, 0.0
  %v1614 = vmax.f32 %v1601, 0.0
  %v1615 = vmax.f32 %v1602, 0.0
  %v1616 = vmax.f32 %v1603, 0.0
  %v1617 = vmax.f32 %v1604, 0.0
  %v1618 = vmax.f32 %v1605, 0.0
  %1619 = vst [vmem:[%s9] sm:$0xff] %v1606
  %1620 = vst [vmem:[%s9 + $0x8] sm:$0xff] %v1607
  %1621 = vst [vmem:[%s9 + $0x10] sm:$0xff] %v1608
  %1622 = vst [vmem:[%s9 + $0x18] sm:$0xff] %v1609
  %1623 = vst [vmem:[%s9 + $0x20] sm:$0xff] %v1610
  %1624 = vst [vmem:[%s9 + $0x28] sm:$0xff] %v1611
  %1625 = vst [vmem:[%s9 + $0x30] sm:$0xff] %v1612
  %1626 = vst [vmem:[%s9 + $0x38] sm:$0xff] %v1613
  %1627 = vst [vmem:[%s9 + $0x40] sm:$0xff] %v1614
  %1628 = vst [vmem:[%s9 + $0x48] sm:$0xff] %v1615
  %1629 = vst [vmem:[%s9 + $0x50] sm:$0xff] %v1616
  %1630 = vst [vmem:[%s9 + $0x58] sm:$0xff] %v1617
  %1631 = vst.msk [vmem:[%s9 + $0x60] sm:$0xff] %vm1229, %v1618
  // Predicated region
  $region38: #{decoder_cnn_forward.2} parent=0 // pred_check
    _
  $region39: #{decoder_cnn_forward.2} parent=0 // pred_check_branch
    %1633 = sbr.rel (0) target = $region41
  $region40: #{decoder_cnn_forward.2} parent=0 // pred_region
    _
  $region41: #{decoder_cnn_forward.2} parent=0 // pred_fallthru
    _
  // Predicated region
  $region42: #{decoder_cnn_forward.2} parent=0 // pred_check
    _
  $region43: #{decoder_cnn_forward.2} parent=0 // pred_check_branch
    %1635 = sbr.rel (0) target = $region45
  $region44: #{decoder_cnn_forward.2} parent=0 // pred_region
    _
  $region45: #{decoder_cnn_forward.2} parent=0 // pred_fallthru
    _

// kernel: decoder_cnn_forward.3
$region0: #{decoder_cnn_forward.3}
  #allocation0 [shape = 'u32[]', space=smem, size = 0x4, offset = 0x4, fixed_abs, tag = 'smem constant byte address 0x4 - core index']
  #allocation1 [shape = 'u32[72,128]{1,0:T(1,128)}', space=vmem, size = 0x9000, scoped, tag = 'internal scratch']
  %s0 = inlined_call_operand.vmem [shape: f32[56,224], index: 0, kind: input, shape index: {}]
  %s1 = inlined_call_operand.vmem [shape: f32[56,56], index: 1, kind: input, shape index: {}]
  %s2 = inlined_call_operand.vmem [shape: f32[56,56], index: 2, kind: input, shape index: {}]
  %s3 = inlined_call_operand.vmem [shape: f32[672,448], index: 3, kind: input, shape index: {}]
  %s4 = inlined_call_operand.vmem [shape: f32[1,448], index: 4, kind: input, shape index: {}]
  %s5 = inlined_call_operand.vmem [shape: f32[1,448], index: 5, kind: input, shape index: {}]
  %s6 = inlined_call_operand.vmem [shape: f32[1,448], index: 6, kind: input, shape index: {}]
  %s7 = inlined_call_operand.vmem [shape: f32[448,448], index: 7, kind: input, shape index: {}]
  %s8 = inlined_call_operand.vmem [shape: f32[1344,112], index: 8, kind: input, shape index: {}]
  %s9 = inlined_call_operand.vmem [shape: f32[1,112], index: 9, kind: input, shape index: {}]
  %s10 = inlined_call_operand.vmem [shape: f32[56,112], index: 10, kind: output, shape index: {}]
  %s11 = sld [smem:[#allocation0]]
  $region50: #{decoder_cnn_forward.3} parent=0
    _
  %s13 = ssub.s32 1, %s11
  %s14 = scalar_select 0, %s13, %s11
  // Predicated region
  $region2: #{decoder_cnn_forward.3} parent=0 // pred_check
    _
  $region3: #{decoder_cnn_forward.3} parent=0 // pred_check_branch
    %16 = sbr.rel (0) target = $region5
  $region4: #{decoder_cnn_forward.3} parent=0 // pred_region
    _
  $region5: #{decoder_cnn_forward.3} parent=0 // pred_fallthru
    _
  // Predicated region
  $region6: #{decoder_cnn_forward.3} parent=0 // pred_check
    _
  $region7: #{decoder_cnn_forward.3} parent=0 // pred_check_branch
    %18 = sbr.rel (0) target = $region9
  $region8: #{decoder_cnn_forward.3} parent=0 // pred_region
    _
  $region9: #{decoder_cnn_forward.3} parent=0 // pred_fallthru
    _
  // Predicated region
  $region10: #{decoder_cnn_forward.3} parent=0 // pred_check
    _
  $region11: #{decoder_cnn_forward.3} parent=0 // pred_check_branch
    %20 = sbr.rel (0) target = $region13
  $region12: #{decoder_cnn_forward.3} parent=0 // pred_region
    _
  $region13: #{decoder_cnn_forward.3} parent=0 // pred_fallthru
    _
  // Predicated region
  $region14: #{decoder_cnn_forward.3} parent=0 // pred_check
    _
  $region15: #{decoder_cnn_forward.3} parent=0 // pred_check_branch
    %22 = sbr.rel (0) target = $region17
  $region16: #{decoder_cnn_forward.3} parent=0 // pred_region
    _
  $region17: #{decoder_cnn_forward.3} parent=0 // pred_fallthru
    _
  // Predicated region
  $region18: #{decoder_cnn_forward.3} parent=0 // pred_check
    _
  $region19: #{decoder_cnn_forward.3} parent=0 // pred_check_branch
    %24 = sbr.rel (0) target = $region21
  $region20: #{decoder_cnn_forward.3} parent=0 // pred_region
    _
  $region21: #{decoder_cnn_forward.3} parent=0 // pred_fallthru
    _
  // Predicated region
  $region22: #{decoder_cnn_forward.3} parent=0 // pred_check
    _
  $region23: #{decoder_cnn_forward.3} parent=0 // pred_check_branch
    %26 = sbr.rel (0) target = $region25
  $region24: #{decoder_cnn_forward.3} parent=0 // pred_region
    _
  $region25: #{decoder_cnn_forward.3} parent=0 // pred_fallthru
    _
  // Predicated region
  $region26: #{decoder_cnn_forward.3} parent=0 // pred_check
    _
  $region27: #{decoder_cnn_forward.3} parent=0 // pred_check_branch
    %28 = sbr.rel (0) target = $region29
  $region28: #{decoder_cnn_forward.3} parent=0 // pred_region
    _
  $region29: #{decoder_cnn_forward.3} parent=0 // pred_fallthru
    _
  // Predicated region
  $region30: #{decoder_cnn_forward.3} parent=0 // pred_check
    _
  $region31: #{decoder_cnn_forward.3} parent=0 // pred_check_branch
    %30 = sbr.rel (0) target = $region33
  $region32: #{decoder_cnn_forward.3} parent=0 // pred_region
    _
  $region33: #{decoder_cnn_forward.3} parent=0 // pred_fallthru
    _
  // Predicated region
  $region34: #{decoder_cnn_forward.3} parent=0 // pred_check
    _
  $region35: #{decoder_cnn_forward.3} parent=0 // pred_check_branch
    %32 = sbr.rel (0) target = $region37
  $region36: #{decoder_cnn_forward.3} parent=0 // pred_region
    _
  $region37: #{decoder_cnn_forward.3} parent=0 // pred_fallthru
    _
  // Predicated region
  $region38: #{decoder_cnn_forward.3} parent=0 // pred_check
    _
  $region39: #{decoder_cnn_forward.3} parent=0 // pred_check_branch
    %34 = sbr.rel (0) target = $region41
  $region40: #{decoder_cnn_forward.3} parent=0 // pred_region
    _
  $region41: #{decoder_cnn_forward.3} parent=0 // pred_fallthru
    _
  %v35 = vld [vmem:[%s0] sm:$0xff]
  %v36 = vld [vmem:[%s0 + $0x8] sm:$0xff]
  %v37 = vld [vmem:[%s0 + $0x10] sm:$0xff]
  %v38 = vld [vmem:[%s0 + $0x18] sm:$0xff]
  %v39 = vld [vmem:[%s0 + $0x20] sm:$0xff]
  %v40 = vld [vmem:[%s0 + $0x28] sm:$0xff]
  %v41 = vld [vmem:[%s0 + $0x30] sm:$0xff]
  %v42 = vld [vmem:[%s0 + $0x38] sm:$0xff]
  %v43 = vld [vmem:[%s0 + $0x40] sm:$0xff]
  %v44 = vld [vmem:[%s0 + $0x48] sm:$0xff]
  %v45 = vld [vmem:[%s0 + $0x50] sm:$0xff]
  %v46 = vld [vmem:[%s0 + $0x58] sm:$0xff]
  %v47 = vld [vmem:[%s0 + $0x60] sm:$0xff]
  %v48 = vld [vmem:[%s0 + $0x68] sm:$0xff]
  %v49 = vld [vmem:[%s1] sm:$0xff]
  %v50 = vld [vmem:[%s1 + $0x8] sm:$0xff]
  %v51 = vld [vmem:[%s1 + $0x10] sm:$0xff]
  %v52 = vld [vmem:[%s1 + $0x18] sm:$0xff]
  %v53 = vld [vmem:[%s1 + $0x20] sm:$0xff]
  %v54 = vld [vmem:[%s1 + $0x28] sm:$0xff]
  %v55 = vld [vmem:[%s1 + $0x30] sm:$0xff]
  %v56 = vld [vmem:[%s2] sm:$0xff]
  %v57 = vld [vmem:[%s2 + $0x8] sm:$0xff]
  %v58 = vld [vmem:[%s2 + $0x10] sm:$0xff]
  %v59 = vld [vmem:[%s2 + $0x18] sm:$0xff]
  %v60 = vld [vmem:[%s2 + $0x20] sm:$0xff]
  %v61 = vld [vmem:[%s2 + $0x28] sm:$0xff]
  %v62 = vld [vmem:[%s2 + $0x30] sm:$0xff]
  %vm63 = vcmask 457728
  %v65 = vsel %vm63, %v49, 0
  %v68 = vsel %vm63, %v50, 0
  %v71 = vsel %vm63, %v51, 0
  %v74 = vsel %vm63, %v52, 0
  %v77 = vsel %vm63, %v53, 0
  %v80 = vsel %vm63, %v54, 0
  %v83 = vsel %vm63, %v55, 0
  %85 = vmatpush.msra.mxu0 0.0
  %86 = vmatpush.msra.mxu0 0.0
  %87 = vmatpush.msra.mxu0 0.0
  %88 = vmatpush.msra.mxu0 0.0
  %89 = vmatpush.msra.mxu0 0.0
  %90 = vmatpush.msra.mxu0 0.0
  %91 = vmatpush.msra.mxu0 0.0
  %92 = vmatpush.msra.mxu0 0.0
  %93 = vmatpush.msra.mxu0 0.0
  %94 = vmatpush.msra.mxu0 %v47
  %95 = vmatpush.msra.mxu0 %v45
  %96 = vmatpush.msra.mxu0 %v43
  %97 = vmatpush.msra.mxu0 %v41
  %98 = vmatpush.msra.mxu0 %v39
  %99 = vmatpush.msra.mxu0 %v37
  %100 = vmatpush.msra.mxu0 %v35
  %101 = vmatmul.f32.gmra.mxu0 %v65
  %v102 = vpop.f32.mrf.mxu0
  %v103 = vadd.f32 0.0, %v102
  %104 = vmatmul.f32.gmra.mxu0 %v68
  %v105 = vpop.f32.mrf.mxu0
  %v106 = vadd.f32 0.0, %v105
  %107 = vmatmul.f32.gmra.mxu0 %v71
  %v108 = vpop.f32.mrf.mxu0
  %v109 = vadd.f32 0.0, %v108
  %110 = vmatmul.f32.gmra.mxu0 %v74
  %v111 = vpop.f32.mrf.mxu0
  %v112 = vadd.f32 0.0, %v111
  %113 = vmatmul.f32.gmra.mxu0 %v77
  %v114 = vpop.f32.mrf.mxu0
  %v115 = vadd.f32 0.0, %v114
  %116 = vmatmul.f32.gmra.mxu0 %v80
  %v117 = vpop.f32.mrf.mxu0
  %v118 = vadd.f32 0.0, %v117
  %119 = vmatmul.f32.gmra.mxu0 %v83
  %v120 = vpop.f32.mrf.mxu0
  %v121 = vadd.f32 0.0, %v120
  %122 = vdwg.mxu0
  %123 = vmatpush.msra.mxu0 0.0
  %124 = vmatpush.msra.mxu0 0.0
  %125 = vmatpush.msra.mxu0 0.0
  %126 = vmatpush.msra.mxu0 0.0
  %127 = vmatpush.msra.mxu0 0.0
  %128 = vmatpush.msra.mxu0 0.0
  %129 = vmatpush.msra.mxu0 0.0
  %130 = vmatpush.msra.mxu0 0.0
  %131 = vmatpush.msra.mxu0 0.0
  %132 = vmatpush.msra.mxu0 %v48
  %133 = vmatpush.msra.mxu0 %v46
  %134 = vmatpush.msra.mxu0 %v44
  %135 = vmatpush.msra.mxu0 %v42
  %136 = vmatpush.msra.mxu0 %v40
  %137 = vmatpush.msra.mxu0 %v38
  %138 = vmatpush.msra.mxu0 %v36
  %139 = vmatmul.f32.gmra.mxu0 %v65
  %v140 = vpop.f32.mrf.mxu0
  %v141 = vadd.f32 0.0, %v140
  %142 = vmatmul.f32.gmra.mxu0 %v68
  %v143 = vpop.f32.mrf.mxu0
  %v144 = vadd.f32 0.0, %v143
  %145 = vmatmul.f32.gmra.mxu0 %v71
  %v146 = vpop.f32.mrf.mxu0
  %v147 = vadd.f32 0.0, %v146
  %148 = vmatmul.f32.gmra.mxu0 %v74
  %v149 = vpop.f32.mrf.mxu0
  %v150 = vadd.f32 0.0, %v149
  %151 = vmatmul.f32.gmra.mxu0 %v77
  %v152 = vpop.f32.mrf.mxu0
  %v153 = vadd.f32 0.0, %v152
  %154 = vmatmul.f32.gmra.mxu0 %v80
  %v155 = vpop.f32.mrf.mxu0
  %v156 = vadd.f32 0.0, %v155
  %157 = vmatmul.f32.gmra.mxu0 %v83
  %v158 = vpop.f32.mrf.mxu0
  %v159 = vadd.f32 0.0, %v158
  %160 = vdwg.mxu0
  %v162 = vsel %vm63, %v56, 0
  %v165 = vsel %vm63, %v57, 0
  %v168 = vsel %vm63, %v58, 0
  %v171 = vsel %vm63, %v59, 0
  %v174 = vsel %vm63, %v60, 0
  %v177 = vsel %vm63, %v61, 0
  %v180 = vsel %vm63, %v62, 0
  %182 = vmatpush.msra.mxu0 0.0
  %183 = vmatpush.msra.mxu0 0.0
  %184 = vmatpush.msra.mxu0 0.0
  %185 = vmatpush.msra.mxu0 0.0
  %186 = vmatpush.msra.mxu0 0.0
  %187 = vmatpush.msra.mxu0 0.0
  %188 = vmatpush.msra.mxu0 0.0
  %189 = vmatpush.msra.mxu0 0.0
  %190 = vmatpush.msra.mxu0 0.0
  %191 = vmatpush.msra.mxu0 %v47
  %192 = vmatpush.msra.mxu0 %v45
  %193 = vmatpush.msra.mxu0 %v43
  %194 = vmatpush.msra.mxu0 %v41
  %195 = vmatpush.msra.mxu0 %v39
  %196 = vmatpush.msra.mxu0 %v37
  %197 = vmatpush.msra.mxu0 %v35
  %198 = vmatmul.f32.gmra.mxu0 %v162
  %v199 = vpop.f32.mrf.mxu0
  %v200 = vadd.f32 0.0, %v199
  %201 = vmatmul.f32.gmra.mxu0 %v165
  %v202 = vpop.f32.mrf.mxu0
  %v203 = vadd.f32 0.0, %v202
  %204 = vmatmul.f32.gmra.mxu0 %v168
  %v205 = vpop.f32.mrf.mxu0
  %v206 = vadd.f32 0.0, %v205
  %207 = vmatmul.f32.gmra.mxu0 %v171
  %v208 = vpop.f32.mrf.mxu0
  %v209 = vadd.f32 0.0, %v208
  %210 = vmatmul.f32.gmra.mxu0 %v174
  %v211 = vpop.f32.mrf.mxu0
  %v212 = vadd.f32 0.0, %v211
  %213 = vmatmul.f32.gmra.mxu0 %v177
  %v214 = vpop.f32.mrf.mxu0
  %v215 = vadd.f32 0.0, %v214
  %216 = vmatmul.f32.gmra.mxu0 %v180
  %v217 = vpop.f32.mrf.mxu0
  %v218 = vadd.f32 0.0, %v217
  %219 = vdwg.mxu0
  %220 = vmatpush.msra.mxu0 0.0
  %221 = vmatpush.msra.mxu0 0.0
  %222 = vmatpush.msra.mxu0 0.0
  %223 = vmatpush.msra.mxu0 0.0
  %224 = vmatpush.msra.mxu0 0.0
  %225 = vmatpush.msra.mxu0 0.0
  %226 = vmatpush.msra.mxu0 0.0
  %227 = vmatpush.msra.mxu0 0.0
  %228 = vmatpush.msra.mxu0 0.0
  %229 = vmatpush.msra.mxu0 %v48
  %230 = vmatpush.msra.mxu0 %v46
  %231 = vmatpush.msra.mxu0 %v44
  %232 = vmatpush.msra.mxu0 %v42
  %233 = vmatpush.msra.mxu0 %v40
  %234 = vmatpush.msra.mxu0 %v38
  %235 = vmatpush.msra.mxu0 %v36
  %236 = vmatmul.f32.gmra.mxu0 %v162
  %v237 = vpop.f32.mrf.mxu0
  %v238 = vadd.f32 0.0, %v237
  %239 = vmatmul.f32.gmra.mxu0 %v165
  %v240 = vpop.f32.mrf.mxu0
  %v241 = vadd.f32 0.0, %v240
  %242 = vmatmul.f32.gmra.mxu0 %v168
  %v243 = vpop.f32.mrf.mxu0
  %v244 = vadd.f32 0.0, %v243
  %245 = vmatmul.f32.gmra.mxu0 %v171
  %v246 = vpop.f32.mrf.mxu0
  %v247 = vadd.f32 0.0, %v246
  %248 = vmatmul.f32.gmra.mxu0 %v174
  %v249 = vpop.f32.mrf.mxu0
  %v250 = vadd.f32 0.0, %v249
  %251 = vmatmul.f32.gmra.mxu0 %v177
  %v252 = vpop.f32.mrf.mxu0
  %v253 = vadd.f32 0.0, %v252
  %254 = vmatmul.f32.gmra.mxu0 %v180
  %v255 = vpop.f32.mrf.mxu0
  %v256 = vadd.f32 0.0, %v255
  %257 = vdwg.mxu0
  %v258 = vld [vmem:[%s3] sm:$0xff]
  %v259 = vld [vmem:[%s3 + $0x8] sm:$0xff]
  %v260 = vld [vmem:[%s3 + $0x10] sm:$0xff]
  %v261 = vld [vmem:[%s3 + $0x18] sm:$0xff]
  %v262 = vld [vmem:[%s3 + $0x20] sm:$0xff]
  %v263 = vld [vmem:[%s3 + $0x28] sm:$0xff]
  %v264 = vld [vmem:[%s3 + $0x30] sm:$0xff]
  %v265 = vld [vmem:[%s3 + $0x38] sm:$0xff]
  %v266 = vld [vmem:[%s3 + $0x40] sm:$0xff]
  %v267 = vld [vmem:[%s3 + $0x48] sm:$0xff]
  %v268 = vld [vmem:[%s3 + $0x50] sm:$0xff]
  %v269 = vld [vmem:[%s3 + $0x58] sm:$0xff]
  %v270 = vld [vmem:[%s3 + $0x60] sm:$0xff]
  %v271 = vld [vmem:[%s3 + $0x68] sm:$0xff]
  %v272 = vld [vmem:[%s3 + $0x70] sm:$0xff]
  %v273 = vld [vmem:[%s3 + $0x78] sm:$0xff]
  %v274 = vld [vmem:[%s3 + $0x80] sm:$0xff]
  %v275 = vld [vmem:[%s3 + $0x88] sm:$0xff]
  %v276 = vld [vmem:[%s3 + $0x90] sm:$0xff]
  %v277 = vld [vmem:[%s3 + $0x98] sm:$0xff]
  %v278 = vld [vmem:[%s3 + $0xa0] sm:$0xff]
  %v279 = vld [vmem:[%s3 + $0xa8] sm:$0xff]
  %v280 = vld [vmem:[%s3 + $0xb0] sm:$0xff]
  %v281 = vld [vmem:[%s3 + $0xb8] sm:$0xff]
  %v282 = vld [vmem:[%s3 + $0xc0] sm:$0xff]
  %v283 = vld [vmem:[%s3 + $0xc8] sm:$0xff]
  %v284 = vld [vmem:[%s3 + $0xd0] sm:$0xff]
  %v285 = vld [vmem:[%s3 + $0xd8] sm:$0xff]
  %v286 = vld [vmem:[%s3 + $0xe0] sm:$0xff]
  %v287 = vld [vmem:[%s3 + $0xe8] sm:$0xff]
  %v288 = vld [vmem:[%s3 + $0xf0] sm:$0xff]
  %v289 = vld [vmem:[%s3 + $0xf8] sm:$0xff]
  %v290 = vld [vmem:[%s3 + $0x100] sm:$0xff]
  %v291 = vld [vmem:[%s3 + $0x108] sm:$0xff]
  %v292 = vld [vmem:[%s3 + $0x110] sm:$0xff]
  %v293 = vld [vmem:[%s3 + $0x118] sm:$0xff]
  %v294 = vld [vmem:[%s3 + $0x120] sm:$0xff]
  %v295 = vld [vmem:[%s3 + $0x128] sm:$0xff]
  %v296 = vld [vmem:[%s3 + $0x130] sm:$0xff]
  %v297 = vld [vmem:[%s3 + $0x138] sm:$0xff]
  %v298 = vld [vmem:[%s3 + $0x140] sm:$0xff]
  %v299 = vld [vmem:[%s3 + $0x148] sm:$0xff]
  %v300 = vld [vmem:[%s3 + $0x150] sm:$0xff]
  %v301 = vld [vmem:[%s3 + $0x158] sm:$0xff]
  %v302 = vld [vmem:[%s3 + $0x160] sm:$0xff]
  %v303 = vld [vmem:[%s3 + $0x168] sm:$0xff]
  %v304 = vld [vmem:[%s3 + $0x170] sm:$0xff]
  %v305 = vld [vmem:[%s3 + $0x178] sm:$0xff]
  %v306 = vld [vmem:[%s3 + $0x180] sm:$0xff]
  %v307 = vld [vmem:[%s3 + $0x188] sm:$0xff]
  %v308 = vld [vmem:[%s3 + $0x190] sm:$0xff]
  %v309 = vld [vmem:[%s3 + $0x198] sm:$0xff]
  %v310 = vld [vmem:[%s3 + $0x1a0] sm:$0xff]
  %v311 = vld [vmem:[%s3 + $0x1a8] sm:$0xff]
  %v312 = vld [vmem:[%s3 + $0x1b0] sm:$0xff]
  %v313 = vld [vmem:[%s3 + $0x1b8] sm:$0xff]
  %v314 = vld [vmem:[%s3 + $0x1c0] sm:$0xff]
  %v315 = vld [vmem:[%s3 + $0x1c8] sm:$0xff]
  %v316 = vld [vmem:[%s3 + $0x1d0] sm:$0xff]
  %v317 = vld [vmem:[%s3 + $0x1d8] sm:$0xff]
  %v318 = vld [vmem:[%s3 + $0x1e0] sm:$0xff]
  %v319 = vld [vmem:[%s3 + $0x1e8] sm:$0xff]
  %v320 = vld [vmem:[%s3 + $0x1f0] sm:$0xff]
  %v321 = vld [vmem:[%s3 + $0x1f8] sm:$0xff]
  %v322 = vld [vmem:[%s3 + $0x200] sm:$0xff]
  %v323 = vld [vmem:[%s3 + $0x208] sm:$0xff]
  %v324 = vld [vmem:[%s3 + $0x210] sm:$0xff]
  %v325 = vld [vmem:[%s3 + $0x218] sm:$0xff]
  %v326 = vld [vmem:[%s3 + $0x220] sm:$0xff]
  %v327 = vld [vmem:[%s3 + $0x228] sm:$0xff]
  %v328 = vld [vmem:[%s3 + $0x230] sm:$0xff]
  %v329 = vld [vmem:[%s3 + $0x238] sm:$0xff]
  %v330 = vld [vmem:[%s3 + $0x240] sm:$0xff]
  %v331 = vld [vmem:[%s3 + $0x248] sm:$0xff]
  %v332 = vld [vmem:[%s3 + $0x250] sm:$0xff]
  %v333 = vld [vmem:[%s3 + $0x258] sm:$0xff]
  %v334 = vld [vmem:[%s3 + $0x260] sm:$0xff]
  %v335 = vld [vmem:[%s3 + $0x268] sm:$0xff]
  %v336 = vld [vmem:[%s3 + $0x270] sm:$0xff]
  %v337 = vld [vmem:[%s3 + $0x278] sm:$0xff]
  %v338 = vld [vmem:[%s3 + $0x280] sm:$0xff]
  %v339 = vld [vmem:[%s3 + $0x288] sm:$0xff]
  %v340 = vld [vmem:[%s3 + $0x290] sm:$0xff]
  %v341 = vld [vmem:[%s3 + $0x298] sm:$0xff]
  %v342 = vld [vmem:[%s3 + $0x2a0] sm:$0xff]
  %v343 = vld [vmem:[%s3 + $0x2a8] sm:$0xff]
  %v344 = vld [vmem:[%s3 + $0x2b0] sm:$0xff]
  %v345 = vld [vmem:[%s3 + $0x2b8] sm:$0xff]
  %v346 = vld [vmem:[%s3 + $0x2c0] sm:$0xff]
  %v347 = vld [vmem:[%s3 + $0x2c8] sm:$0xff]
  %v348 = vld [vmem:[%s3 + $0x2d0] sm:$0xff]
  %v349 = vld [vmem:[%s3 + $0x2d8] sm:$0xff]
  %v350 = vld [vmem:[%s3 + $0x2e0] sm:$0xff]
  %v351 = vld [vmem:[%s3 + $0x2e8] sm:$0xff]
  %v352 = vld [vmem:[%s3 + $0x2f0] sm:$0xff]
  %v353 = vld [vmem:[%s3 + $0x2f8] sm:$0xff]
  %v354 = vld [vmem:[%s3 + $0x300] sm:$0xff]
  %v355 = vld [vmem:[%s3 + $0x308] sm:$0xff]
  %v356 = vld [vmem:[%s3 + $0x310] sm:$0xff]
  %v357 = vld [vmem:[%s3 + $0x318] sm:$0xff]
  %v358 = vld [vmem:[%s3 + $0x320] sm:$0xff]
  %v359 = vld [vmem:[%s3 + $0x328] sm:$0xff]
  %v360 = vld [vmem:[%s3 + $0x330] sm:$0xff]
  %v361 = vld [vmem:[%s3 + $0x338] sm:$0xff]
  %v362 = vld [vmem:[%s3 + $0x340] sm:$0xff]
  %v363 = vld [vmem:[%s3 + $0x348] sm:$0xff]
  %v364 = vld [vmem:[%s3 + $0x350] sm:$0xff]
  %v365 = vld [vmem:[%s3 + $0x358] sm:$0xff]
  %v366 = vld [vmem:[%s3 + $0x360] sm:$0xff]
  %v367 = vld [vmem:[%s3 + $0x368] sm:$0xff]
  %v368 = vld [vmem:[%s3 + $0x370] sm:$0xff]
  %v369 = vld [vmem:[%s3 + $0x378] sm:$0xff]
  %v370 = vld [vmem:[%s3 + $0x380] sm:$0xff]
  %v371 = vld [vmem:[%s3 + $0x388] sm:$0xff]
  %v372 = vld [vmem:[%s3 + $0x390] sm:$0xff]
  %v373 = vld [vmem:[%s3 + $0x398] sm:$0xff]
  %v374 = vld [vmem:[%s3 + $0x3a0] sm:$0xff]
  %v375 = vld [vmem:[%s3 + $0x3a8] sm:$0xff]
  %v376 = vld [vmem:[%s3 + $0x3b0] sm:$0xff]
  %v377 = vld [vmem:[%s3 + $0x3b8] sm:$0xff]
  %v378 = vld [vmem:[%s3 + $0x3c0] sm:$0xff]
  %v379 = vld [vmem:[%s3 + $0x3c8] sm:$0xff]
  %v380 = vld [vmem:[%s3 + $0x3d0] sm:$0xff]
  %v381 = vld [vmem:[%s3 + $0x3d8] sm:$0xff]
  %v382 = vld [vmem:[%s3 + $0x3e0] sm:$0xff]
  %v383 = vld [vmem:[%s3 + $0x3e8] sm:$0xff]
  %v384 = vld [vmem:[%s3 + $0x3f0] sm:$0xff]
  %v385 = vld [vmem:[%s3 + $0x3f8] sm:$0xff]
  %v386 = vld [vmem:[%s3 + $0x400] sm:$0xff]
  %v387 = vld [vmem:[%s3 + $0x408] sm:$0xff]
  %v388 = vld [vmem:[%s3 + $0x410] sm:$0xff]
  %v389 = vld [vmem:[%s3 + $0x418] sm:$0xff]
  %v390 = vld [vmem:[%s3 + $0x420] sm:$0xff]
  %v391 = vld [vmem:[%s3 + $0x428] sm:$0xff]
  %v392 = vld [vmem:[%s3 + $0x430] sm:$0xff]
  %v393 = vld [vmem:[%s3 + $0x438] sm:$0xff]
  %v394 = vld [vmem:[%s3 + $0x440] sm:$0xff]
  %v395 = vld [vmem:[%s3 + $0x448] sm:$0xff]
  %v396 = vld [vmem:[%s3 + $0x450] sm:$0xff]
  %v397 = vld [vmem:[%s3 + $0x458] sm:$0xff]
  %v398 = vld [vmem:[%s3 + $0x460] sm:$0xff]
  %v399 = vld [vmem:[%s3 + $0x468] sm:$0xff]
  %v400 = vld [vmem:[%s3 + $0x470] sm:$0xff]
  %v401 = vld [vmem:[%s3 + $0x478] sm:$0xff]
  %v402 = vld [vmem:[%s3 + $0x480] sm:$0xff]
  %v403 = vld [vmem:[%s3 + $0x488] sm:$0xff]
  %v404 = vld [vmem:[%s3 + $0x490] sm:$0xff]
  %v405 = vld [vmem:[%s3 + $0x498] sm:$0xff]
  %v406 = vld [vmem:[%s3 + $0x4a0] sm:$0xff]
  %v407 = vld [vmem:[%s3 + $0x4a8] sm:$0xff]
  %v408 = vld [vmem:[%s3 + $0x4b0] sm:$0xff]
  %v409 = vld [vmem:[%s3 + $0x4b8] sm:$0xff]
  %v410 = vld [vmem:[%s3 + $0x4c0] sm:$0xff]
  %v411 = vld [vmem:[%s3 + $0x4c8] sm:$0xff]
  %v412 = vld [vmem:[%s3 + $0x4d0] sm:$0xff]
  %v413 = vld [vmem:[%s3 + $0x4d8] sm:$0xff]
  %v414 = vld [vmem:[%s3 + $0x4e0] sm:$0xff]
  %v415 = vld [vmem:[%s3 + $0x4e8] sm:$0xff]
  %v416 = vld [vmem:[%s3 + $0x4f0] sm:$0xff]
  %v417 = vld [vmem:[%s3 + $0x4f8] sm:$0xff]
  %v418 = vld [vmem:[%s3 + $0x500] sm:$0xff]
  %v419 = vld [vmem:[%s3 + $0x508] sm:$0xff]
  %v420 = vld [vmem:[%s3 + $0x510] sm:$0xff]
  %v421 = vld [vmem:[%s3 + $0x518] sm:$0xff]
  %v422 = vld [vmem:[%s3 + $0x520] sm:$0xff]
  %v423 = vld [vmem:[%s3 + $0x528] sm:$0xff]
  %v424 = vld [vmem:[%s3 + $0x530] sm:$0xff]
  %v425 = vld [vmem:[%s3 + $0x538] sm:$0xff]
  %v426 = vld [vmem:[%s3 + $0x540] sm:$0xff]
  %v427 = vld [vmem:[%s3 + $0x548] sm:$0xff]
  %v428 = vld [vmem:[%s3 + $0x550] sm:$0xff]
  %v429 = vld [vmem:[%s3 + $0x558] sm:$0xff]
  %v430 = vld [vmem:[%s3 + $0x560] sm:$0xff]
  %v431 = vld [vmem:[%s3 + $0x568] sm:$0xff]
  %v432 = vld [vmem:[%s3 + $0x570] sm:$0xff]
  %v433 = vld [vmem:[%s3 + $0x578] sm:$0xff]
  %v434 = vld [vmem:[%s3 + $0x580] sm:$0xff]
  %v435 = vld [vmem:[%s3 + $0x588] sm:$0xff]
  %v436 = vld [vmem:[%s3 + $0x590] sm:$0xff]
  %v437 = vld [vmem:[%s3 + $0x598] sm:$0xff]
  %v438 = vld [vmem:[%s3 + $0x5a0] sm:$0xff]
  %v439 = vld [vmem:[%s3 + $0x5a8] sm:$0xff]
  %v440 = vld [vmem:[%s3 + $0x5b0] sm:$0xff]
  %v441 = vld [vmem:[%s3 + $0x5b8] sm:$0xff]
  %v442 = vld [vmem:[%s3 + $0x5c0] sm:$0xff]
  %v443 = vld [vmem:[%s3 + $0x5c8] sm:$0xff]
  %v444 = vld [vmem:[%s3 + $0x5d0] sm:$0xff]
  %v445 = vld [vmem:[%s3 + $0x5d8] sm:$0xff]
  %v446 = vld [vmem:[%s3 + $0x5e0] sm:$0xff]
  %v447 = vld [vmem:[%s3 + $0x5e8] sm:$0xff]
  %v448 = vld [vmem:[%s3 + $0x5f0] sm:$0xff]
  %v449 = vld [vmem:[%s3 + $0x5f8] sm:$0xff]
  %v450 = vld [vmem:[%s3 + $0x600] sm:$0xff]
  %v451 = vld [vmem:[%s3 + $0x608] sm:$0xff]
  %v452 = vld [vmem:[%s3 + $0x610] sm:$0xff]
  %v453 = vld [vmem:[%s3 + $0x618] sm:$0xff]
  %v454 = vld [vmem:[%s3 + $0x620] sm:$0xff]
  %v455 = vld [vmem:[%s3 + $0x628] sm:$0xff]
  %v456 = vld [vmem:[%s3 + $0x630] sm:$0xff]
  %v457 = vld [vmem:[%s3 + $0x638] sm:$0xff]
  %v458 = vld [vmem:[%s3 + $0x640] sm:$0xff]
  %v459 = vld [vmem:[%s3 + $0x648] sm:$0xff]
  %v460 = vld [vmem:[%s3 + $0x650] sm:$0xff]
  %v461 = vld [vmem:[%s3 + $0x658] sm:$0xff]
  %v462 = vld [vmem:[%s3 + $0x660] sm:$0xff]
  %v463 = vld [vmem:[%s3 + $0x668] sm:$0xff]
  %v464 = vld [vmem:[%s3 + $0x670] sm:$0xff]
  %v465 = vld [vmem:[%s3 + $0x678] sm:$0xff]
  %v466 = vld [vmem:[%s3 + $0x680] sm:$0xff]
  %v467 = vld [vmem:[%s3 + $0x688] sm:$0xff]
  %v468 = vld [vmem:[%s3 + $0x690] sm:$0xff]
  %v469 = vld [vmem:[%s3 + $0x698] sm:$0xff]
  %v470 = vld [vmem:[%s3 + $0x6a0] sm:$0xff]
  %v471 = vld [vmem:[%s3 + $0x6a8] sm:$0xff]
  %v472 = vld [vmem:[%s3 + $0x6b0] sm:$0xff]
  %v473 = vld [vmem:[%s3 + $0x6b8] sm:$0xff]
  %v474 = vld [vmem:[%s3 + $0x6c0] sm:$0xff]
  %v475 = vld [vmem:[%s3 + $0x6c8] sm:$0xff]
  %v476 = vld [vmem:[%s3 + $0x6d0] sm:$0xff]
  %v477 = vld [vmem:[%s3 + $0x6d8] sm:$0xff]
  %v478 = vld [vmem:[%s3 + $0x6e0] sm:$0xff]
  %v479 = vld [vmem:[%s3 + $0x6e8] sm:$0xff]
  %v480 = vld [vmem:[%s3 + $0x6f0] sm:$0xff]
  %v481 = vld [vmem:[%s3 + $0x6f8] sm:$0xff]
  %v482 = vld [vmem:[%s3 + $0x700] sm:$0xff]
  %v483 = vld [vmem:[%s3 + $0x708] sm:$0xff]
  %v484 = vld [vmem:[%s3 + $0x710] sm:$0xff]
  %v485 = vld [vmem:[%s3 + $0x718] sm:$0xff]
  %v486 = vld [vmem:[%s3 + $0x720] sm:$0xff]
  %v487 = vld [vmem:[%s3 + $0x728] sm:$0xff]
  %v488 = vld [vmem:[%s3 + $0x730] sm:$0xff]
  %v489 = vld [vmem:[%s3 + $0x738] sm:$0xff]
  %v490 = vld [vmem:[%s3 + $0x740] sm:$0xff]
  %v491 = vld [vmem:[%s3 + $0x748] sm:$0xff]
  %v492 = vld [vmem:[%s3 + $0x750] sm:$0xff]
  %v493 = vld [vmem:[%s3 + $0x758] sm:$0xff]
  %v494 = vld [vmem:[%s3 + $0x760] sm:$0xff]
  %v495 = vld [vmem:[%s3 + $0x768] sm:$0xff]
  %v496 = vld [vmem:[%s3 + $0x770] sm:$0xff]
  %v497 = vld [vmem:[%s3 + $0x778] sm:$0xff]
  %v498 = vld [vmem:[%s3 + $0x780] sm:$0xff]
  %v499 = vld [vmem:[%s3 + $0x788] sm:$0xff]
  %v500 = vld [vmem:[%s3 + $0x790] sm:$0xff]
  %v501 = vld [vmem:[%s3 + $0x798] sm:$0xff]
  %v502 = vld [vmem:[%s3 + $0x7a0] sm:$0xff]
  %v503 = vld [vmem:[%s3 + $0x7a8] sm:$0xff]
  %v504 = vld [vmem:[%s3 + $0x7b0] sm:$0xff]
  %v505 = vld [vmem:[%s3 + $0x7b8] sm:$0xff]
  %v506 = vld [vmem:[%s3 + $0x7c0] sm:$0xff]
  %v507 = vld [vmem:[%s3 + $0x7c8] sm:$0xff]
  %v508 = vld [vmem:[%s3 + $0x7d0] sm:$0xff]
  %v509 = vld [vmem:[%s3 + $0x7d8] sm:$0xff]
  %v510 = vld [vmem:[%s3 + $0x7e0] sm:$0xff]
  %v511 = vld [vmem:[%s3 + $0x7e8] sm:$0xff]
  %v512 = vld [vmem:[%s3 + $0x7f0] sm:$0xff]
  %v513 = vld [vmem:[%s3 + $0x7f8] sm:$0xff]
  %v514 = vld [vmem:[%s3 + $0x800] sm:$0xff]
  %v515 = vld [vmem:[%s3 + $0x808] sm:$0xff]
  %v516 = vld [vmem:[%s3 + $0x810] sm:$0xff]
  %v517 = vld [vmem:[%s3 + $0x818] sm:$0xff]
  %v518 = vld [vmem:[%s3 + $0x820] sm:$0xff]
  %v519 = vld [vmem:[%s3 + $0x828] sm:$0xff]
  %v520 = vld [vmem:[%s3 + $0x830] sm:$0xff]
  %v521 = vld [vmem:[%s3 + $0x838] sm:$0xff]
  %v522 = vld [vmem:[%s3 + $0x840] sm:$0xff]
  %v523 = vld [vmem:[%s3 + $0x848] sm:$0xff]
  %v524 = vld [vmem:[%s3 + $0x850] sm:$0xff]
  %v525 = vld [vmem:[%s3 + $0x858] sm:$0xff]
  %v526 = vld [vmem:[%s3 + $0x860] sm:$0xff]
  %v527 = vld [vmem:[%s3 + $0x868] sm:$0xff]
  %v528 = vld [vmem:[%s3 + $0x870] sm:$0xff]
  %v529 = vld [vmem:[%s3 + $0x878] sm:$0xff]
  %v530 = vld [vmem:[%s3 + $0x880] sm:$0xff]
  %v531 = vld [vmem:[%s3 + $0x888] sm:$0xff]
  %v532 = vld [vmem:[%s3 + $0x890] sm:$0xff]
  %v533 = vld [vmem:[%s3 + $0x898] sm:$0xff]
  %v534 = vld [vmem:[%s3 + $0x8a0] sm:$0xff]
  %v535 = vld [vmem:[%s3 + $0x8a8] sm:$0xff]
  %v536 = vld [vmem:[%s3 + $0x8b0] sm:$0xff]
  %v537 = vld [vmem:[%s3 + $0x8b8] sm:$0xff]
  %v538 = vld [vmem:[%s3 + $0x8c0] sm:$0xff]
  %v539 = vld [vmem:[%s3 + $0x8c8] sm:$0xff]
  %v540 = vld [vmem:[%s3 + $0x8d0] sm:$0xff]
  %v541 = vld [vmem:[%s3 + $0x8d8] sm:$0xff]
  %v542 = vld [vmem:[%s3 + $0x8e0] sm:$0xff]
  %v543 = vld [vmem:[%s3 + $0x8e8] sm:$0xff]
  %v544 = vld [vmem:[%s3 + $0x8f0] sm:$0xff]
  %v545 = vld [vmem:[%s3 + $0x8f8] sm:$0xff]
  %v546 = vld [vmem:[%s3 + $0x900] sm:$0xff]
  %v547 = vld [vmem:[%s3 + $0x908] sm:$0xff]
  %v548 = vld [vmem:[%s3 + $0x910] sm:$0xff]
  %v549 = vld [vmem:[%s3 + $0x918] sm:$0xff]
  %v550 = vld [vmem:[%s3 + $0x920] sm:$0xff]
  %v551 = vld [vmem:[%s3 + $0x928] sm:$0xff]
  %v552 = vld [vmem:[%s3 + $0x930] sm:$0xff]
  %v553 = vld [vmem:[%s3 + $0x938] sm:$0xff]
  %v554 = vld [vmem:[%s3 + $0x940] sm:$0xff]
  %v555 = vld [vmem:[%s3 + $0x948] sm:$0xff]
  %v556 = vld [vmem:[%s3 + $0x950] sm:$0xff]
  %v557 = vld [vmem:[%s3 + $0x958] sm:$0xff]
  %v558 = vld [vmem:[%s3 + $0x960] sm:$0xff]
  %v559 = vld [vmem:[%s3 + $0x968] sm:$0xff]
  %v560 = vld [vmem:[%s3 + $0x970] sm:$0xff]
  %v561 = vld [vmem:[%s3 + $0x978] sm:$0xff]
  %v562 = vld [vmem:[%s3 + $0x980] sm:$0xff]
  %v563 = vld [vmem:[%s3 + $0x988] sm:$0xff]
  %v564 = vld [vmem:[%s3 + $0x990] sm:$0xff]
  %v565 = vld [vmem:[%s3 + $0x998] sm:$0xff]
  %v566 = vld [vmem:[%s3 + $0x9a0] sm:$0xff]
  %v567 = vld [vmem:[%s3 + $0x9a8] sm:$0xff]
  %v568 = vld [vmem:[%s3 + $0x9b0] sm:$0xff]
  %v569 = vld [vmem:[%s3 + $0x9b8] sm:$0xff]
  %v570 = vld [vmem:[%s3 + $0x9c0] sm:$0xff]
  %v571 = vld [vmem:[%s3 + $0x9c8] sm:$0xff]
  %v572 = vld [vmem:[%s3 + $0x9d0] sm:$0xff]
  %v573 = vld [vmem:[%s3 + $0x9d8] sm:$0xff]
  %v574 = vld [vmem:[%s3 + $0x9e0] sm:$0xff]
  %v575 = vld [vmem:[%s3 + $0x9e8] sm:$0xff]
  %v576 = vld [vmem:[%s3 + $0x9f0] sm:$0xff]
  %v577 = vld [vmem:[%s3 + $0x9f8] sm:$0xff]
  %v578 = vld [vmem:[%s3 + $0xa00] sm:$0xff]
  %v579 = vld [vmem:[%s3 + $0xa08] sm:$0xff]
  %v580 = vld [vmem:[%s3 + $0xa10] sm:$0xff]
  %v581 = vld [vmem:[%s3 + $0xa18] sm:$0xff]
  %v582 = vld [vmem:[%s3 + $0xa20] sm:$0xff]
  %v583 = vld [vmem:[%s3 + $0xa28] sm:$0xff]
  %v584 = vld [vmem:[%s3 + $0xa30] sm:$0xff]
  %v585 = vld [vmem:[%s3 + $0xa38] sm:$0xff]
  %v586 = vld [vmem:[%s3 + $0xa40] sm:$0xff]
  %v587 = vld [vmem:[%s3 + $0xa48] sm:$0xff]
  %v588 = vld [vmem:[%s3 + $0xa50] sm:$0xff]
  %v589 = vld [vmem:[%s3 + $0xa58] sm:$0xff]
  %v590 = vld [vmem:[%s3 + $0xa60] sm:$0xff]
  %v591 = vld [vmem:[%s3 + $0xa68] sm:$0xff]
  %v592 = vld [vmem:[%s3 + $0xa70] sm:$0xff]
  %v593 = vld [vmem:[%s3 + $0xa78] sm:$0xff]
  %vm594 = vcmask 785408
  %v596 = vsel %vm594, %v36, 0
  %v599 = vsel %vm594, %v38, 0
  %v602 = vsel %vm594, %v40, 0
  %v605 = vsel %vm594, %v42, 0
  %v608 = vsel %vm594, %v44, 0
  %v611 = vsel %vm594, %v46, 0
  %v614 = vsel %vm594, %v48, 0
  %616 = vmatpush.msra.mxu0 %v430
  %617 = vmatpush.msra.mxu0 %v426
  %618 = vmatpush.msra.mxu0 %v422
  %619 = vmatpush.msra.mxu0 %v418
  %620 = vmatpush.msra.mxu0 %v414
  %621 = vmatpush.msra.mxu0 %v410
  %622 = vmatpush.msra.mxu0 %v406
  %623 = vmatpush.msra.mxu0 %v402
  %624 = vmatpush.msra.mxu0 %v398
  %625 = vmatpush.msra.mxu0 %v394
  %626 = vmatpush.msra.mxu0 %v390
  %627 = vmatpush.msra.mxu0 %v386
  %628 = vmatpush.msra.mxu0 %v382
  %629 = vmatpush.msra.mxu0 %v378
  %630 = vmatpush.msra.mxu0 %v374
  %631 = vmatpush.msra.mxu0 %v370
  %632 = vmatmul.f32.gmra.mxu0 %v35
  %v633 = vpop.f32.mrf.mxu0
  %v634 = vadd.f32 0.0, %v633
  %635 = vmatmul.f32.gmra.mxu0 %v37
  %v636 = vpop.f32.mrf.mxu0
  %v637 = vadd.f32 0.0, %v636
  %638 = vmatmul.f32.gmra.mxu0 %v39
  %v639 = vpop.f32.mrf.mxu0
  %v640 = vadd.f32 0.0, %v639
  %641 = vmatmul.f32.gmra.mxu0 %v41
  %v642 = vpop.f32.mrf.mxu0
  %v643 = vadd.f32 0.0, %v642
  %644 = vmatmul.f32.gmra.mxu0 %v43
  %v645 = vpop.f32.mrf.mxu0
  %v646 = vadd.f32 0.0, %v645
  %647 = vmatmul.f32.gmra.mxu0 %v45
  %v648 = vpop.f32.mrf.mxu0
  %v649 = vadd.f32 0.0, %v648
  %650 = vmatmul.f32.gmra.mxu0 %v47
  %v651 = vpop.f32.mrf.mxu0
  %v652 = vadd.f32 0.0, %v651
  %653 = vdwg.mxu0
  %654 = vmatpush.msra.mxu0 0.0
  %655 = vmatpush.msra.mxu0 0.0
  %656 = vmatpush.msra.mxu0 0.0
  %657 = vmatpush.msra.mxu0 0.0
  %658 = vmatpush.msra.mxu0 %v478
  %659 = vmatpush.msra.mxu0 %v474
  %660 = vmatpush.msra.mxu0 %v470
  %661 = vmatpush.msra.mxu0 %v466
  %662 = vmatpush.msra.mxu0 %v462
  %663 = vmatpush.msra.mxu0 %v458
  %664 = vmatpush.msra.mxu0 %v454
  %665 = vmatpush.msra.mxu0 %v450
  %666 = vmatpush.msra.mxu0 %v446
  %667 = vmatpush.msra.mxu0 %v442
  %668 = vmatpush.msra.mxu0 %v438
  %669 = vmatpush.msra.mxu0 %v434
  %670 = vmatmul.f32.gmra.mxu0 %v596
  %v671 = vpop.f32.mrf.mxu0
  %v672 = vadd.f32 %v634, %v671
  %673 = vmatmul.f32.gmra.mxu0 %v599
  %v674 = vpop.f32.mrf.mxu0
  %v675 = vadd.f32 %v637, %v674
  %676 = vmatmul.f32.gmra.mxu0 %v602
  %v677 = vpop.f32.mrf.mxu0
  %v678 = vadd.f32 %v640, %v677
  %679 = vmatmul.f32.gmra.mxu0 %v605
  %v680 = vpop.f32.mrf.mxu0
  %v681 = vadd.f32 %v643, %v680
  %682 = vmatmul.f32.gmra.mxu0 %v608
  %v683 = vpop.f32.mrf.mxu0
  %v684 = vadd.f32 %v646, %v683
  %685 = vmatmul.f32.gmra.mxu0 %v611
  %v686 = vpop.f32.mrf.mxu0
  %v687 = vadd.f32 %v649, %v686
  %688 = vmatmul.f32.gmra.mxu0 %v614
  %v689 = vpop.f32.mrf.mxu0
  %v690 = vadd.f32 %v652, %v689
  %691 = vdwg.mxu0
  %692 = vmatpush.msra.mxu0 %v431
  %693 = vmatpush.msra.mxu0 %v427
  %694 = vmatpush.msra.mxu0 %v423
  %695 = vmatpush.msra.mxu0 %v419
  %696 = vmatpush.msra.mxu0 %v415
  %697 = vmatpush.msra.mxu0 %v411
  %698 = vmatpush.msra.mxu0 %v407
  %699 = vmatpush.msra.mxu0 %v403
  %700 = vmatpush.msra.mxu0 %v399
  %701 = vmatpush.msra.mxu0 %v395
  %702 = vmatpush.msra.mxu0 %v391
  %703 = vmatpush.msra.mxu0 %v387
  %704 = vmatpush.msra.mxu0 %v383
  %705 = vmatpush.msra.mxu0 %v379
  %706 = vmatpush.msra.mxu0 %v375
  %707 = vmatpush.msra.mxu0 %v371
  %708 = vmatmul.f32.gmra.mxu0 %v35
  %v709 = vpop.f32.mrf.mxu0
  %v710 = vadd.f32 0.0, %v709
  %711 = vmatmul.f32.gmra.mxu0 %v37
  %v712 = vpop.f32.mrf.mxu0
  %v713 = vadd.f32 0.0, %v712
  %714 = vmatmul.f32.gmra.mxu0 %v39
  %v715 = vpop.f32.mrf.mxu0
  %v716 = vadd.f32 0.0, %v715
  %717 = vmatmul.f32.gmra.mxu0 %v41
  %v718 = vpop.f32.mrf.mxu0
  %v719 = vadd.f32 0.0, %v718
  %720 = vmatmul.f32.gmra.mxu0 %v43
  %v721 = vpop.f32.mrf.mxu0
  %v722 = vadd.f32 0.0, %v721
  %723 = vmatmul.f32.gmra.mxu0 %v45
  %v724 = vpop.f32.mrf.mxu0
  %v725 = vadd.f32 0.0, %v724
  %726 = vmatmul.f32.gmra.mxu0 %v47
  %v727 = vpop.f32.mrf.mxu0
  %v728 = vadd.f32 0.0, %v727
  %729 = vdwg.mxu0
  %730 = vmatpush.msra.mxu0 0.0
  %731 = vmatpush.msra.mxu0 0.0
  %732 = vmatpush.msra.mxu0 0.0
  %733 = vmatpush.msra.mxu0 0.0
  %734 = vmatpush.msra.mxu0 %v479
  %735 = vmatpush.msra.mxu0 %v475
  %736 = vmatpush.msra.mxu0 %v471
  %737 = vmatpush.msra.mxu0 %v467
  %738 = vmatpush.msra.mxu0 %v463
  %739 = vmatpush.msra.mxu0 %v459
  %740 = vmatpush.msra.mxu0 %v455
  %741 = vmatpush.msra.mxu0 %v451
  %742 = vmatpush.msra.mxu0 %v447
  %743 = vmatpush.msra.mxu0 %v443
  %744 = vmatpush.msra.mxu0 %v439
  %745 = vmatpush.msra.mxu0 %v435
  %746 = vmatmul.f32.gmra.mxu0 %v596
  %v747 = vpop.f32.mrf.mxu0
  %v748 = vadd.f32 %v710, %v747
  %749 = vmatmul.f32.gmra.mxu0 %v599
  %v750 = vpop.f32.mrf.mxu0
  %v751 = vadd.f32 %v713, %v750
  %752 = vmatmul.f32.gmra.mxu0 %v602
  %v753 = vpop.f32.mrf.mxu0
  %v754 = vadd.f32 %v716, %v753
  %755 = vmatmul.f32.gmra.mxu0 %v605
  %v756 = vpop.f32.mrf.mxu0
  %v757 = vadd.f32 %v719, %v756
  %758 = vmatmul.f32.gmra.mxu0 %v608
  %v759 = vpop.f32.mrf.mxu0
  %v760 = vadd.f32 %v722, %v759
  %761 = vmatmul.f32.gmra.mxu0 %v611
  %v762 = vpop.f32.mrf.mxu0
  %v763 = vadd.f32 %v725, %v762
  %764 = vmatmul.f32.gmra.mxu0 %v614
  %v765 = vpop.f32.mrf.mxu0
  %v766 = vadd.f32 %v728, %v765
  %767 = vdwg.mxu0
  %768 = vmatpush.msra.mxu0 %v432
  %769 = vmatpush.msra.mxu0 %v428
  %770 = vmatpush.msra.mxu0 %v424
  %771 = vmatpush.msra.mxu0 %v420
  %772 = vmatpush.msra.mxu0 %v416
  %773 = vmatpush.msra.mxu0 %v412
  %774 = vmatpush.msra.mxu0 %v408
  %775 = vmatpush.msra.mxu0 %v404
  %776 = vmatpush.msra.mxu0 %v400
  %777 = vmatpush.msra.mxu0 %v396
  %778 = vmatpush.msra.mxu0 %v392
  %779 = vmatpush.msra.mxu0 %v388
  %780 = vmatpush.msra.mxu0 %v384
  %781 = vmatpush.msra.mxu0 %v380
  %782 = vmatpush.msra.mxu0 %v376
  %783 = vmatpush.msra.mxu0 %v372
  %784 = vmatmul.f32.gmra.mxu0 %v35
  %v785 = vpop.f32.mrf.mxu0
  %v786 = vadd.f32 0.0, %v785
  %787 = vmatmul.f32.gmra.mxu0 %v37
  %v788 = vpop.f32.mrf.mxu0
  %v789 = vadd.f32 0.0, %v788
  %790 = vmatmul.f32.gmra.mxu0 %v39
  %v791 = vpop.f32.mrf.mxu0
  %v792 = vadd.f32 0.0, %v791
  %793 = vmatmul.f32.gmra.mxu0 %v41
  %v794 = vpop.f32.mrf.mxu0
  %v795 = vadd.f32 0.0, %v794
  %796 = vmatmul.f32.gmra.mxu0 %v43
  %v797 = vpop.f32.mrf.mxu0
  %v798 = vadd.f32 0.0, %v797
  %799 = vmatmul.f32.gmra.mxu0 %v45
  %v800 = vpop.f32.mrf.mxu0
  %v801 = vadd.f32 0.0, %v800
  %802 = vmatmul.f32.gmra.mxu0 %v47
  %v803 = vpop.f32.mrf.mxu0
  %v804 = vadd.f32 0.0, %v803
  %805 = vdwg.mxu0
  %806 = vmatpush.msra.mxu0 0.0
  %807 = vmatpush.msra.mxu0 0.0
  %808 = vmatpush.msra.mxu0 0.0
  %809 = vmatpush.msra.mxu0 0.0
  %810 = vmatpush.msra.mxu0 %v480
  %811 = vmatpush.msra.mxu0 %v476
  %812 = vmatpush.msra.mxu0 %v472
  %813 = vmatpush.msra.mxu0 %v468
  %814 = vmatpush.msra.mxu0 %v464
  %815 = vmatpush.msra.mxu0 %v460
  %816 = vmatpush.msra.mxu0 %v456
  %817 = vmatpush.msra.mxu0 %v452
  %818 = vmatpush.msra.mxu0 %v448
  %819 = vmatpush.msra.mxu0 %v444
  %820 = vmatpush.msra.mxu0 %v440
  %821 = vmatpush.msra.mxu0 %v436
  %822 = vmatmul.f32.gmra.mxu0 %v596
  %v823 = vpop.f32.mrf.mxu0
  %v824 = vadd.f32 %v786, %v823
  %825 = vmatmul.f32.gmra.mxu0 %v599
  %v826 = vpop.f32.mrf.mxu0
  %v827 = vadd.f32 %v789, %v826
  %828 = vmatmul.f32.gmra.mxu0 %v602
  %v829 = vpop.f32.mrf.mxu0
  %v830 = vadd.f32 %v792, %v829
  %831 = vmatmul.f32.gmra.mxu0 %v605
  %v832 = vpop.f32.mrf.mxu0
  %v833 = vadd.f32 %v795, %v832
  %834 = vmatmul.f32.gmra.mxu0 %v608
  %v835 = vpop.f32.mrf.mxu0
  %v836 = vadd.f32 %v798, %v835
  %837 = vmatmul.f32.gmra.mxu0 %v611
  %v838 = vpop.f32.mrf.mxu0
  %v839 = vadd.f32 %v801, %v838
  %840 = vmatmul.f32.gmra.mxu0 %v614
  %v841 = vpop.f32.mrf.mxu0
  %v842 = vadd.f32 %v804, %v841
  %843 = vdwg.mxu0
  %844 = vmatpush.msra.mxu0 %v433
  %845 = vmatpush.msra.mxu0 %v429
  %846 = vmatpush.msra.mxu0 %v425
  %847 = vmatpush.msra.mxu0 %v421
  %848 = vmatpush.msra.mxu0 %v417
  %849 = vmatpush.msra.mxu0 %v413
  %850 = vmatpush.msra.mxu0 %v409
  %851 = vmatpush.msra.mxu0 %v405
  %852 = vmatpush.msra.mxu0 %v401
  %853 = vmatpush.msra.mxu0 %v397
  %854 = vmatpush.msra.mxu0 %v393
  %855 = vmatpush.msra.mxu0 %v389
  %856 = vmatpush.msra.mxu0 %v385
  %857 = vmatpush.msra.mxu0 %v381
  %858 = vmatpush.msra.mxu0 %v377
  %859 = vmatpush.msra.mxu0 %v373
  %860 = vmatmul.f32.gmra.mxu0 %v35
  %v861 = vpop.f32.mrf.mxu0
  %v862 = vadd.f32 0.0, %v861
  %863 = vmatmul.f32.gmra.mxu0 %v37
  %v864 = vpop.f32.mrf.mxu0
  %v865 = vadd.f32 0.0, %v864
  %866 = vmatmul.f32.gmra.mxu0 %v39
  %v867 = vpop.f32.mrf.mxu0
  %v868 = vadd.f32 0.0, %v867
  %869 = vmatmul.f32.gmra.mxu0 %v41
  %v870 = vpop.f32.mrf.mxu0
  %v871 = vadd.f32 0.0, %v870
  %872 = vmatmul.f32.gmra.mxu0 %v43
  %v873 = vpop.f32.mrf.mxu0
  %v874 = vadd.f32 0.0, %v873
  %875 = vmatmul.f32.gmra.mxu0 %v45
  %v876 = vpop.f32.mrf.mxu0
  %v877 = vadd.f32 0.0, %v876
  %878 = vmatmul.f32.gmra.mxu0 %v47
  %v879 = vpop.f32.mrf.mxu0
  %v880 = vadd.f32 0.0, %v879
  %881 = vdwg.mxu0
  %882 = vmatpush.msra.mxu0 0.0
  %883 = vmatpush.msra.mxu0 0.0
  %884 = vmatpush.msra.mxu0 0.0
  %885 = vmatpush.msra.mxu0 0.0
  %886 = vmatpush.msra.mxu0 %v481
  %887 = vmatpush.msra.mxu0 %v477
  %888 = vmatpush.msra.mxu0 %v473
  %889 = vmatpush.msra.mxu0 %v469
  %890 = vmatpush.msra.mxu0 %v465
  %891 = vmatpush.msra.mxu0 %v461
  %892 = vmatpush.msra.mxu0 %v457
  %893 = vmatpush.msra.mxu0 %v453
  %894 = vmatpush.msra.mxu0 %v449
  %895 = vmatpush.msra.mxu0 %v445
  %896 = vmatpush.msra.mxu0 %v441
  %897 = vmatpush.msra.mxu0 %v437
  %898 = vmatmul.f32.gmra.mxu0 %v596
  %v899 = vpop.f32.mrf.mxu0
  %v900 = vadd.f32 %v862, %v899
  %901 = vmatmul.f32.gmra.mxu0 %v599
  %v902 = vpop.f32.mrf.mxu0
  %v903 = vadd.f32 %v865, %v902
  %904 = vmatmul.f32.gmra.mxu0 %v602
  %v905 = vpop.f32.mrf.mxu0
  %v906 = vadd.f32 %v868, %v905
  %907 = vmatmul.f32.gmra.mxu0 %v605
  %v908 = vpop.f32.mrf.mxu0
  %v909 = vadd.f32 %v871, %v908
  %910 = vmatmul.f32.gmra.mxu0 %v608
  %v911 = vpop.f32.mrf.mxu0
  %v912 = vadd.f32 %v874, %v911
  %913 = vmatmul.f32.gmra.mxu0 %v611
  %v914 = vpop.f32.mrf.mxu0
  %v915 = vadd.f32 %v877, %v914
  %916 = vmatmul.f32.gmra.mxu0 %v614
  %v917 = vpop.f32.mrf.mxu0
  %v918 = vadd.f32 %v880, %v917
  %919 = vdwg.mxu0
  %v921 = vsel %vm594, %v141, 0
  %v924 = vsel %vm594, %v144, 0
  %v927 = vsel %vm594, %v147, 0
  %v930 = vsel %vm594, %v150, 0
  %v933 = vsel %vm594, %v153, 0
  %v936 = vsel %vm594, %v156, 0
  %v939 = vsel %vm594, %v159, 0
  %941 = vmatpush.msra.mxu0 %v318
  %942 = vmatpush.msra.mxu0 %v314
  %943 = vmatpush.msra.mxu0 %v310
  %944 = vmatpush.msra.mxu0 %v306
  %945 = vmatpush.msra.mxu0 %v302
  %946 = vmatpush.msra.mxu0 %v298
  %947 = vmatpush.msra.mxu0 %v294
  %948 = vmatpush.msra.mxu0 %v290
  %949 = vmatpush.msra.mxu0 %v286
  %950 = vmatpush.msra.mxu0 %v282
  %951 = vmatpush.msra.mxu0 %v278
  %952 = vmatpush.msra.mxu0 %v274
  %953 = vmatpush.msra.mxu0 %v270
  %954 = vmatpush.msra.mxu0 %v266
  %955 = vmatpush.msra.mxu0 %v262
  %956 = vmatpush.msra.mxu0 %v258
  %957 = vmatmul.f32.gmra.mxu0 %v103
  %v958 = vpop.f32.mrf.mxu0
  %v959 = vadd.f32 %v672, %v958
  %960 = vmatmul.f32.gmra.mxu0 %v106
  %v961 = vpop.f32.mrf.mxu0
  %v962 = vadd.f32 %v675, %v961
  %963 = vmatmul.f32.gmra.mxu0 %v109
  %v964 = vpop.f32.mrf.mxu0
  %v965 = vadd.f32 %v678, %v964
  %966 = vmatmul.f32.gmra.mxu0 %v112
  %v967 = vpop.f32.mrf.mxu0
  %v968 = vadd.f32 %v681, %v967
  %969 = vmatmul.f32.gmra.mxu0 %v115
  %v970 = vpop.f32.mrf.mxu0
  %v971 = vadd.f32 %v684, %v970
  %972 = vmatmul.f32.gmra.mxu0 %v118
  %v973 = vpop.f32.mrf.mxu0
  %v974 = vadd.f32 %v687, %v973
  %975 = vmatmul.f32.gmra.mxu0 %v121
  %v976 = vpop.f32.mrf.mxu0
  %v977 = vadd.f32 %v690, %v976
  %978 = vdwg.mxu0
  %979 = vmatpush.msra.mxu0 0.0
  %980 = vmatpush.msra.mxu0 0.0
  %981 = vmatpush.msra.mxu0 0.0
  %982 = vmatpush.msra.mxu0 0.0
  %983 = vmatpush.msra.mxu0 %v366
  %984 = vmatpush.msra.mxu0 %v362
  %985 = vmatpush.msra.mxu0 %v358
  %986 = vmatpush.msra.mxu0 %v354
  %987 = vmatpush.msra.mxu0 %v350
  %988 = vmatpush.msra.mxu0 %v346
  %989 = vmatpush.msra.mxu0 %v342
  %990 = vmatpush.msra.mxu0 %v338
  %991 = vmatpush.msra.mxu0 %v334
  %992 = vmatpush.msra.mxu0 %v330
  %993 = vmatpush.msra.mxu0 %v326
  %994 = vmatpush.msra.mxu0 %v322
  %995 = vmatmul.f32.gmra.mxu0 %v921
  %v996 = vpop.f32.mrf.mxu0
  %v997 = vadd.f32 %v959, %v996
  %998 = vmatmul.f32.gmra.mxu0 %v924
  %v999 = vpop.f32.mrf.mxu0
  %v1000 = vadd.f32 %v962, %v999
  %1001 = vmatmul.f32.gmra.mxu0 %v927
  %v1002 = vpop.f32.mrf.mxu0
  %v1003 = vadd.f32 %v965, %v1002
  %1004 = vmatmul.f32.gmra.mxu0 %v930
  %v1005 = vpop.f32.mrf.mxu0
  %v1006 = vadd.f32 %v968, %v1005
  %1007 = vmatmul.f32.gmra.mxu0 %v933
  %v1008 = vpop.f32.mrf.mxu0
  %v1009 = vadd.f32 %v971, %v1008
  %1010 = vmatmul.f32.gmra.mxu0 %v936
  %v1011 = vpop.f32.mrf.mxu0
  %v1012 = vadd.f32 %v974, %v1011
  %1013 = vmatmul.f32.gmra.mxu0 %v939
  %v1014 = vpop.f32.mrf.mxu0
  %v1015 = vadd.f32 %v977, %v1014
  %1016 = vdwg.mxu0
  %1017 = vmatpush.msra.mxu0 %v319
  %1018 = vmatpush.msra.mxu0 %v315
  %1019 = vmatpush.msra.mxu0 %v311
  %1020 = vmatpush.msra.mxu0 %v307
  %1021 = vmatpush.msra.mxu0 %v303
  %1022 = vmatpush.msra.mxu0 %v299
  %1023 = vmatpush.msra.mxu0 %v295
  %1024 = vmatpush.msra.mxu0 %v291
  %1025 = vmatpush.msra.mxu0 %v287
  %1026 = vmatpush.msra.mxu0 %v283
  %1027 = vmatpush.msra.mxu0 %v279
  %1028 = vmatpush.msra.mxu0 %v275
  %1029 = vmatpush.msra.mxu0 %v271
  %1030 = vmatpush.msra.mxu0 %v267
  %1031 = vmatpush.msra.mxu0 %v263
  %1032 = vmatpush.msra.mxu0 %v259
  %1033 = vmatmul.f32.gmra.mxu0 %v103
  %v1034 = vpop.f32.mrf.mxu0
  %v1035 = vadd.f32 %v748, %v1034
  %1036 = vmatmul.f32.gmra.mxu0 %v106
  %v1037 = vpop.f32.mrf.mxu0
  %v1038 = vadd.f32 %v751, %v1037
  %1039 = vmatmul.f32.gmra.mxu0 %v109
  %v1040 = vpop.f32.mrf.mxu0
  %v1041 = vadd.f32 %v754, %v1040
  %1042 = vmatmul.f32.gmra.mxu0 %v112
  %v1043 = vpop.f32.mrf.mxu0
  %v1044 = vadd.f32 %v757, %v1043
  %1045 = vmatmul.f32.gmra.mxu0 %v115
  %v1046 = vpop.f32.mrf.mxu0
  %v1047 = vadd.f32 %v760, %v1046
  %1048 = vmatmul.f32.gmra.mxu0 %v118
  %v1049 = vpop.f32.mrf.mxu0
  %v1050 = vadd.f32 %v763, %v1049
  %1051 = vmatmul.f32.gmra.mxu0 %v121
  %v1052 = vpop.f32.mrf.mxu0
  %v1053 = vadd.f32 %v766, %v1052
  %1054 = vdwg.mxu0
  %1055 = vmatpush.msra.mxu0 0.0
  %1056 = vmatpush.msra.mxu0 0.0
  %1057 = vmatpush.msra.mxu0 0.0
  %1058 = vmatpush.msra.mxu0 0.0
  %1059 = vmatpush.msra.mxu0 %v367
  %1060 = vmatpush.msra.mxu0 %v363
  %1061 = vmatpush.msra.mxu0 %v359
  %1062 = vmatpush.msra.mxu0 %v355
  %1063 = vmatpush.msra.mxu0 %v351
  %1064 = vmatpush.msra.mxu0 %v347
  %1065 = vmatpush.msra.mxu0 %v343
  %1066 = vmatpush.msra.mxu0 %v339
  %1067 = vmatpush.msra.mxu0 %v335
  %1068 = vmatpush.msra.mxu0 %v331
  %1069 = vmatpush.msra.mxu0 %v327
  %1070 = vmatpush.msra.mxu0 %v323
  %1071 = vmatmul.f32.gmra.mxu0 %v921
  %v1072 = vpop.f32.mrf.mxu0
  %v1073 = vadd.f32 %v1035, %v1072
  %1074 = vmatmul.f32.gmra.mxu0 %v924
  %v1075 = vpop.f32.mrf.mxu0
  %v1076 = vadd.f32 %v1038, %v1075
  %1077 = vmatmul.f32.gmra.mxu0 %v927
  %v1078 = vpop.f32.mrf.mxu0
  %v1079 = vadd.f32 %v1041, %v1078
  %1080 = vmatmul.f32.gmra.mxu0 %v930
  %v1081 = vpop.f32.mrf.mxu0
  %v1082 = vadd.f32 %v1044, %v1081
  %1083 = vmatmul.f32.gmra.mxu0 %v933
  %v1084 = vpop.f32.mrf.mxu0
  %v1085 = vadd.f32 %v1047, %v1084
  %1086 = vmatmul.f32.gmra.mxu0 %v936
  %v1087 = vpop.f32.mrf.mxu0
  %v1088 = vadd.f32 %v1050, %v1087
  %1089 = vmatmul.f32.gmra.mxu0 %v939
  %v1090 = vpop.f32.mrf.mxu0
  %v1091 = vadd.f32 %v1053, %v1090
  %1092 = vdwg.mxu0
  %1093 = vmatpush.msra.mxu0 %v320
  %1094 = vmatpush.msra.mxu0 %v316
  %1095 = vmatpush.msra.mxu0 %v312
  %1096 = vmatpush.msra.mxu0 %v308
  %1097 = vmatpush.msra.mxu0 %v304
  %1098 = vmatpush.msra.mxu0 %v300
  %1099 = vmatpush.msra.mxu0 %v296
  %1100 = vmatpush.msra.mxu0 %v292
  %1101 = vmatpush.msra.mxu0 %v288
  %1102 = vmatpush.msra.mxu0 %v284
  %1103 = vmatpush.msra.mxu0 %v280
  %1104 = vmatpush.msra.mxu0 %v276
  %1105 = vmatpush.msra.mxu0 %v272
  %1106 = vmatpush.msra.mxu0 %v268
  %1107 = vmatpush.msra.mxu0 %v264
  %1108 = vmatpush.msra.mxu0 %v260
  %1109 = vmatmul.f32.gmra.mxu0 %v103
  %v1110 = vpop.f32.mrf.mxu0
  %v1111 = vadd.f32 %v824, %v1110
  %1112 = vmatmul.f32.gmra.mxu0 %v106
  %v1113 = vpop.f32.mrf.mxu0
  %v1114 = vadd.f32 %v827, %v1113
  %1115 = vmatmul.f32.gmra.mxu0 %v109
  %v1116 = vpop.f32.mrf.mxu0
  %v1117 = vadd.f32 %v830, %v1116
  %1118 = vmatmul.f32.gmra.mxu0 %v112
  %v1119 = vpop.f32.mrf.mxu0
  %v1120 = vadd.f32 %v833, %v1119
  %1121 = vmatmul.f32.gmra.mxu0 %v115
  %v1122 = vpop.f32.mrf.mxu0
  %v1123 = vadd.f32 %v836, %v1122
  %1124 = vmatmul.f32.gmra.mxu0 %v118
  %v1125 = vpop.f32.mrf.mxu0
  %v1126 = vadd.f32 %v839, %v1125
  %1127 = vmatmul.f32.gmra.mxu0 %v121
  %v1128 = vpop.f32.mrf.mxu0
  %v1129 = vadd.f32 %v842, %v1128
  %1130 = vdwg.mxu0
  %1131 = vmatpush.msra.mxu0 0.0
  %1132 = vmatpush.msra.mxu0 0.0
  %1133 = vmatpush.msra.mxu0 0.0
  %1134 = vmatpush.msra.mxu0 0.0
  %1135 = vmatpush.msra.mxu0 %v368
  %1136 = vmatpush.msra.mxu0 %v364
  %1137 = vmatpush.msra.mxu0 %v360
  %1138 = vmatpush.msra.mxu0 %v356
  %1139 = vmatpush.msra.mxu0 %v352
  %1140 = vmatpush.msra.mxu0 %v348
  %1141 = vmatpush.msra.mxu0 %v344
  %1142 = vmatpush.msra.mxu0 %v340
  %1143 = vmatpush.msra.mxu0 %v336
  %1144 = vmatpush.msra.mxu0 %v332
  %1145 = vmatpush.msra.mxu0 %v328
  %1146 = vmatpush.msra.mxu0 %v324
  %1147 = vmatmul.f32.gmra.mxu0 %v921
  %v1148 = vpop.f32.mrf.mxu0
  %v1149 = vadd.f32 %v1111, %v1148
  %1150 = vmatmul.f32.gmra.mxu0 %v924
  %v1151 = vpop.f32.mrf.mxu0
  %v1152 = vadd.f32 %v1114, %v1151
  %1153 = vmatmul.f32.gmra.mxu0 %v927
  %v1154 = vpop.f32.mrf.mxu0
  %v1155 = vadd.f32 %v1117, %v1154
  %1156 = vmatmul.f32.gmra.mxu0 %v930
  %v1157 = vpop.f32.mrf.mxu0
  %v1158 = vadd.f32 %v1120, %v1157
  %1159 = vmatmul.f32.gmra.mxu0 %v933
  %v1160 = vpop.f32.mrf.mxu0
  %v1161 = vadd.f32 %v1123, %v1160
  %1162 = vmatmul.f32.gmra.mxu0 %v936
  %v1163 = vpop.f32.mrf.mxu0
  %v1164 = vadd.f32 %v1126, %v1163
  %1165 = vmatmul.f32.gmra.mxu0 %v939
  %v1166 = vpop.f32.mrf.mxu0
  %v1167 = vadd.f32 %v1129, %v1166
  %1168 = vdwg.mxu0
  %1169 = vmatpush.msra.mxu0 %v321
  %1170 = vmatpush.msra.mxu0 %v317
  %1171 = vmatpush.msra.mxu0 %v313
  %1172 = vmatpush.msra.mxu0 %v309
  %1173 = vmatpush.msra.mxu0 %v305
  %1174 = vmatpush.msra.mxu0 %v301
  %1175 = vmatpush.msra.mxu0 %v297
  %1176 = vmatpush.msra.mxu0 %v293
  %1177 = vmatpush.msra.mxu0 %v289
  %1178 = vmatpush.msra.mxu0 %v285
  %1179 = vmatpush.msra.mxu0 %v281
  %1180 = vmatpush.msra.mxu0 %v277
  %1181 = vmatpush.msra.mxu0 %v273
  %1182 = vmatpush.msra.mxu0 %v269
  %1183 = vmatpush.msra.mxu0 %v265
  %1184 = vmatpush.msra.mxu0 %v261
  %1185 = vmatmul.f32.gmra.mxu0 %v103
  %v1186 = vpop.f32.mrf.mxu0
  %v1187 = vadd.f32 %v900, %v1186
  %1188 = vmatmul.f32.gmra.mxu0 %v106
  %v1189 = vpop.f32.mrf.mxu0
  %v1190 = vadd.f32 %v903, %v1189
  %1191 = vmatmul.f32.gmra.mxu0 %v109
  %v1192 = vpop.f32.mrf.mxu0
  %v1193 = vadd.f32 %v906, %v1192
  %1194 = vmatmul.f32.gmra.mxu0 %v112
  %v1195 = vpop.f32.mrf.mxu0
  %v1196 = vadd.f32 %v909, %v1195
  %1197 = vmatmul.f32.gmra.mxu0 %v115
  %v1198 = vpop.f32.mrf.mxu0
  %v1199 = vadd.f32 %v912, %v1198
  %1200 = vmatmul.f32.gmra.mxu0 %v118
  %v1201 = vpop.f32.mrf.mxu0
  %v1202 = vadd.f32 %v915, %v1201
  %1203 = vmatmul.f32.gmra.mxu0 %v121
  %v1204 = vpop.f32.mrf.mxu0
  %v1205 = vadd.f32 %v918, %v1204
  %1206 = vdwg.mxu0
  %1207 = vmatpush.msra.mxu0 0.0
  %1208 = vmatpush.msra.mxu0 0.0
  %1209 = vmatpush.msra.mxu0 0.0
  %1210 = vmatpush.msra.mxu0 0.0
  %1211 = vmatpush.msra.mxu0 %v369
  %1212 = vmatpush.msra.mxu0 %v365
  %1213 = vmatpush.msra.mxu0 %v361
  %1214 = vmatpush.msra.mxu0 %v357
  %1215 = vmatpush.msra.mxu0 %v353
  %1216 = vmatpush.msra.mxu0 %v349
  %1217 = vmatpush.msra.mxu0 %v345
  %1218 = vmatpush.msra.mxu0 %v341
  %1219 = vmatpush.msra.mxu0 %v337
  %1220 = vmatpush.msra.mxu0 %v333
  %1221 = vmatpush.msra.mxu0 %v329
  %1222 = vmatpush.msra.mxu0 %v325
  %1223 = vmatmul.f32.gmra.mxu0 %v921
  %v1224 = vpop.f32.mrf.mxu0
  %v1225 = vadd.f32 %v1187, %v1224
  %1226 = vmatmul.f32.gmra.mxu0 %v924
  %v1227 = vpop.f32.mrf.mxu0
  %v1228 = vadd.f32 %v1190, %v1227
  %1229 = vmatmul.f32.gmra.mxu0 %v927
  %v1230 = vpop.f32.mrf.mxu0
  %v1231 = vadd.f32 %v1193, %v1230
  %1232 = vmatmul.f32.gmra.mxu0 %v930
  %v1233 = vpop.f32.mrf.mxu0
  %v1234 = vadd.f32 %v1196, %v1233
  %1235 = vmatmul.f32.gmra.mxu0 %v933
  %v1236 = vpop.f32.mrf.mxu0
  %v1237 = vadd.f32 %v1199, %v1236
  %1238 = vmatmul.f32.gmra.mxu0 %v936
  %v1239 = vpop.f32.mrf.mxu0
  %v1240 = vadd.f32 %v1202, %v1239
  %1241 = vmatmul.f32.gmra.mxu0 %v939
  %v1242 = vpop.f32.mrf.mxu0
  %v1243 = vadd.f32 %v1205, %v1242
  %1244 = vdwg.mxu0
  %v1246 = vsel %vm594, %v238, 0
  %v1249 = vsel %vm594, %v241, 0
  %v1252 = vsel %vm594, %v244, 0
  %v1255 = vsel %vm594, %v247, 0
  %v1258 = vsel %vm594, %v250, 0
  %v1261 = vsel %vm594, %v253, 0
  %v1264 = vsel %vm594, %v256, 0
  %1266 = vmatpush.msra.mxu0 %v542
  %1267 = vmatpush.msra.mxu0 %v538
  %1268 = vmatpush.msra.mxu0 %v534
  %1269 = vmatpush.msra.mxu0 %v530
  %1270 = vmatpush.msra.mxu0 %v526
  %1271 = vmatpush.msra.mxu0 %v522
  %1272 = vmatpush.msra.mxu0 %v518
  %1273 = vmatpush.msra.mxu0 %v514
  %1274 = vmatpush.msra.mxu0 %v510
  %1275 = vmatpush.msra.mxu0 %v506
  %1276 = vmatpush.msra.mxu0 %v502
  %1277 = vmatpush.msra.mxu0 %v498
  %1278 = vmatpush.msra.mxu0 %v494
  %1279 = vmatpush.msra.mxu0 %v490
  %1280 = vmatpush.msra.mxu0 %v486
  %1281 = vmatpush.msra.mxu0 %v482
  %1282 = vmatmul.f32.gmra.mxu0 %v200
  %v1283 = vpop.f32.mrf.mxu0
  %v1284 = vadd.f32 0.0, %v1283
  %1285 = vmatmul.f32.gmra.mxu0 %v203
  %v1286 = vpop.f32.mrf.mxu0
  %v1287 = vadd.f32 0.0, %v1286
  %1288 = vmatmul.f32.gmra.mxu0 %v206
  %v1289 = vpop.f32.mrf.mxu0
  %v1290 = vadd.f32 0.0, %v1289
  %1291 = vmatmul.f32.gmra.mxu0 %v209
  %v1292 = vpop.f32.mrf.mxu0
  %v1293 = vadd.f32 0.0, %v1292
  %1294 = vmatmul.f32.gmra.mxu0 %v212
  %v1295 = vpop.f32.mrf.mxu0
  %v1296 = vadd.f32 0.0, %v1295
  %1297 = vmatmul.f32.gmra.mxu0 %v215
  %v1298 = vpop.f32.mrf.mxu0
  %v1299 = vadd.f32 0.0, %v1298
  %1300 = vmatmul.f32.gmra.mxu0 %v218
  %v1301 = vpop.f32.mrf.mxu0
  %v1302 = vadd.f32 0.0, %v1301
  %1303 = vdwg.mxu0
  %1304 = vmatpush.msra.mxu0 0.0
  %1305 = vmatpush.msra.mxu0 0.0
  %1306 = vmatpush.msra.mxu0 0.0
  %1307 = vmatpush.msra.mxu0 0.0
  %1308 = vmatpush.msra.mxu0 %v590
  %1309 = vmatpush.msra.mxu0 %v586
  %1310 = vmatpush.msra.mxu0 %v582
  %1311 = vmatpush.msra.mxu0 %v578
  %1312 = vmatpush.msra.mxu0 %v574
  %1313 = vmatpush.msra.mxu0 %v570
  %1314 = vmatpush.msra.mxu0 %v566
  %1315 = vmatpush.msra.mxu0 %v562
  %1316 = vmatpush.msra.mxu0 %v558
  %1317 = vmatpush.msra.mxu0 %v554
  %1318 = vmatpush.msra.mxu0 %v550
  %1319 = vmatpush.msra.mxu0 %v546
  %1320 = vmatmul.f32.gmra.mxu0 %v1246
  %v1321 = vpop.f32.mrf.mxu0
  %v1322 = vadd.f32 %v1284, %v1321
  %1323 = vmatmul.f32.gmra.mxu0 %v1249
  %v1324 = vpop.f32.mrf.mxu0
  %v1325 = vadd.f32 %v1287, %v1324
  %1326 = vmatmul.f32.gmra.mxu0 %v1252
  %v1327 = vpop.f32.mrf.mxu0
  %v1328 = vadd.f32 %v1290, %v1327
  %1329 = vmatmul.f32.gmra.mxu0 %v1255
  %v1330 = vpop.f32.mrf.mxu0
  %v1331 = vadd.f32 %v1293, %v1330
  %1332 = vmatmul.f32.gmra.mxu0 %v1258
  %v1333 = vpop.f32.mrf.mxu0
  %v1334 = vadd.f32 %v1296, %v1333
  %1335 = vmatmul.f32.gmra.mxu0 %v1261
  %v1336 = vpop.f32.mrf.mxu0
  %v1337 = vadd.f32 %v1299, %v1336
  %1338 = vmatmul.f32.gmra.mxu0 %v1264
  %v1339 = vpop.f32.mrf.mxu0
  %v1340 = vadd.f32 %v1302, %v1339
  %1341 = vdwg.mxu0
  %1342 = vmatpush.msra.mxu0 %v543
  %1343 = vmatpush.msra.mxu0 %v539
  %1344 = vmatpush.msra.mxu0 %v535
  %1345 = vmatpush.msra.mxu0 %v531
  %1346 = vmatpush.msra.mxu0 %v527
  %1347 = vmatpush.msra.mxu0 %v523
  %1348 = vmatpush.msra.mxu0 %v519
  %1349 = vmatpush.msra.mxu0 %v515
  %1350 = vmatpush.msra.mxu0 %v511
  %1351 = vmatpush.msra.mxu0 %v507
  %1352 = vmatpush.msra.mxu0 %v503
  %1353 = vmatpush.msra.mxu0 %v499
  %1354 = vmatpush.msra.mxu0 %v495
  %1355 = vmatpush.msra.mxu0 %v491
  %1356 = vmatpush.msra.mxu0 %v487
  %1357 = vmatpush.msra.mxu0 %v483
  %1358 = vmatmul.f32.gmra.mxu0 %v200
  %v1359 = vpop.f32.mrf.mxu0
  %v1360 = vadd.f32 0.0, %v1359
  %1361 = vmatmul.f32.gmra.mxu0 %v203
  %v1362 = vpop.f32.mrf.mxu0
  %v1363 = vadd.f32 0.0, %v1362
  %1364 = vmatmul.f32.gmra.mxu0 %v206
  %v1365 = vpop.f32.mrf.mxu0
  %v1366 = vadd.f32 0.0, %v1365
  %1367 = vmatmul.f32.gmra.mxu0 %v209
  %v1368 = vpop.f32.mrf.mxu0
  %v1369 = vadd.f32 0.0, %v1368
  %1370 = vmatmul.f32.gmra.mxu0 %v212
  %v1371 = vpop.f32.mrf.mxu0
  %v1372 = vadd.f32 0.0, %v1371
  %1373 = vmatmul.f32.gmra.mxu0 %v215
  %v1374 = vpop.f32.mrf.mxu0
  %v1375 = vadd.f32 0.0, %v1374
  %1376 = vmatmul.f32.gmra.mxu0 %v218
  %v1377 = vpop.f32.mrf.mxu0
  %v1378 = vadd.f32 0.0, %v1377
  %1379 = vdwg.mxu0
  %1380 = vmatpush.msra.mxu0 0.0
  %1381 = vmatpush.msra.mxu0 0.0
  %1382 = vmatpush.msra.mxu0 0.0
  %1383 = vmatpush.msra.mxu0 0.0
  %1384 = vmatpush.msra.mxu0 %v591
  %1385 = vmatpush.msra.mxu0 %v587
  %1386 = vmatpush.msra.mxu0 %v583
  %1387 = vmatpush.msra.mxu0 %v579
  %1388 = vmatpush.msra.mxu0 %v575
  %1389 = vmatpush.msra.mxu0 %v571
  %1390 = vmatpush.msra.mxu0 %v567
  %1391 = vmatpush.msra.mxu0 %v563
  %1392 = vmatpush.msra.mxu0 %v559
  %1393 = vmatpush.msra.mxu0 %v555
  %1394 = vmatpush.msra.mxu0 %v551
  %1395 = vmatpush.msra.mxu0 %v547
  %1396 = vmatmul.f32.gmra.mxu0 %v1246
  %v1397 = vpop.f32.mrf.mxu0
  %v1398 = vadd.f32 %v1360, %v1397
  %1399 = vmatmul.f32.gmra.mxu0 %v1249
  %v1400 = vpop.f32.mrf.mxu0
  %v1401 = vadd.f32 %v1363, %v1400
  %1402 = vmatmul.f32.gmra.mxu0 %v1252
  %v1403 = vpop.f32.mrf.mxu0
  %v1404 = vadd.f32 %v1366, %v1403
  %1405 = vmatmul.f32.gmra.mxu0 %v1255
  %v1406 = vpop.f32.mrf.mxu0
  %v1407 = vadd.f32 %v1369, %v1406
  %1408 = vmatmul.f32.gmra.mxu0 %v1258
  %v1409 = vpop.f32.mrf.mxu0
  %v1410 = vadd.f32 %v1372, %v1409
  %1411 = vmatmul.f32.gmra.mxu0 %v1261
  %v1412 = vpop.f32.mrf.mxu0
  %v1413 = vadd.f32 %v1375, %v1412
  %1414 = vmatmul.f32.gmra.mxu0 %v1264
  %v1415 = vpop.f32.mrf.mxu0
  %v1416 = vadd.f32 %v1378, %v1415
  %1417 = vdwg.mxu0
  %1418 = vmatpush.msra.mxu0 %v544
  %1419 = vmatpush.msra.mxu0 %v540
  %1420 = vmatpush.msra.mxu0 %v536
  %1421 = vmatpush.msra.mxu0 %v532
  %1422 = vmatpush.msra.mxu0 %v528
  %1423 = vmatpush.msra.mxu0 %v524
  %1424 = vmatpush.msra.mxu0 %v520
  %1425 = vmatpush.msra.mxu0 %v516
  %1426 = vmatpush.msra.mxu0 %v512
  %1427 = vmatpush.msra.mxu0 %v508
  %1428 = vmatpush.msra.mxu0 %v504
  %1429 = vmatpush.msra.mxu0 %v500
  %1430 = vmatpush.msra.mxu0 %v496
  %1431 = vmatpush.msra.mxu0 %v492
  %1432 = vmatpush.msra.mxu0 %v488
  %1433 = vmatpush.msra.mxu0 %v484
  %1434 = vmatmul.f32.gmra.mxu0 %v200
  %v1435 = vpop.f32.mrf.mxu0
  %v1436 = vadd.f32 0.0, %v1435
  %1437 = vmatmul.f32.gmra.mxu0 %v203
  %v1438 = vpop.f32.mrf.mxu0
  %v1439 = vadd.f32 0.0, %v1438
  %1440 = vmatmul.f32.gmra.mxu0 %v206
  %v1441 = vpop.f32.mrf.mxu0
  %v1442 = vadd.f32 0.0, %v1441
  %1443 = vmatmul.f32.gmra.mxu0 %v209
  %v1444 = vpop.f32.mrf.mxu0
  %v1445 = vadd.f32 0.0, %v1444
  %1446 = vmatmul.f32.gmra.mxu0 %v212
  %v1447 = vpop.f32.mrf.mxu0
  %v1448 = vadd.f32 0.0, %v1447
  %1449 = vmatmul.f32.gmra.mxu0 %v215
  %v1450 = vpop.f32.mrf.mxu0
  %v1451 = vadd.f32 0.0, %v1450
  %1452 = vmatmul.f32.gmra.mxu0 %v218
  %v1453 = vpop.f32.mrf.mxu0
  %v1454 = vadd.f32 0.0, %v1453
  %1455 = vdwg.mxu0
  %1456 = vmatpush.msra.mxu0 0.0
  %1457 = vmatpush.msra.mxu0 0.0
  %1458 = vmatpush.msra.mxu0 0.0
  %1459 = vmatpush.msra.mxu0 0.0
  %1460 = vmatpush.msra.mxu0 %v592
  %1461 = vmatpush.msra.mxu0 %v588
  %1462 = vmatpush.msra.mxu0 %v584
  %1463 = vmatpush.msra.mxu0 %v580
  %1464 = vmatpush.msra.mxu0 %v576
  %1465 = vmatpush.msra.mxu0 %v572
  %1466 = vmatpush.msra.mxu0 %v568
  %1467 = vmatpush.msra.mxu0 %v564
  %1468 = vmatpush.msra.mxu0 %v560
  %1469 = vmatpush.msra.mxu0 %v556
  %1470 = vmatpush.msra.mxu0 %v552
  %1471 = vmatpush.msra.mxu0 %v548
  %1472 = vmatmul.f32.gmra.mxu0 %v1246
  %v1473 = vpop.f32.mrf.mxu0
  %v1474 = vadd.f32 %v1436, %v1473
  %1475 = vmatmul.f32.gmra.mxu0 %v1249
  %v1476 = vpop.f32.mrf.mxu0
  %v1477 = vadd.f32 %v1439, %v1476
  %1478 = vmatmul.f32.gmra.mxu0 %v1252
  %v1479 = vpop.f32.mrf.mxu0
  %v1480 = vadd.f32 %v1442, %v1479
  %1481 = vmatmul.f32.gmra.mxu0 %v1255
  %v1482 = vpop.f32.mrf.mxu0
  %v1483 = vadd.f32 %v1445, %v1482
  %1484 = vmatmul.f32.gmra.mxu0 %v1258
  %v1485 = vpop.f32.mrf.mxu0
  %v1486 = vadd.f32 %v1448, %v1485
  %1487 = vmatmul.f32.gmra.mxu0 %v1261
  %v1488 = vpop.f32.mrf.mxu0
  %v1489 = vadd.f32 %v1451, %v1488
  %1490 = vmatmul.f32.gmra.mxu0 %v1264
  %v1491 = vpop.f32.mrf.mxu0
  %v1492 = vadd.f32 %v1454, %v1491
  %1493 = vdwg.mxu0
  %1494 = vmatpush.msra.mxu0 %v545
  %1495 = vmatpush.msra.mxu0 %v541
  %1496 = vmatpush.msra.mxu0 %v537
  %1497 = vmatpush.msra.mxu0 %v533
  %1498 = vmatpush.msra.mxu0 %v529
  %1499 = vmatpush.msra.mxu0 %v525
  %1500 = vmatpush.msra.mxu0 %v521
  %1501 = vmatpush.msra.mxu0 %v517
  %1502 = vmatpush.msra.mxu0 %v513
  %1503 = vmatpush.msra.mxu0 %v509
  %1504 = vmatpush.msra.mxu0 %v505
  %1505 = vmatpush.msra.mxu0 %v501
  %1506 = vmatpush.msra.mxu0 %v497
  %1507 = vmatpush.msra.mxu0 %v493
  %1508 = vmatpush.msra.mxu0 %v489
  %1509 = vmatpush.msra.mxu0 %v485
  %1510 = vmatmul.f32.gmra.mxu0 %v200
  %v1511 = vpop.f32.mrf.mxu0
  %v1512 = vadd.f32 0.0, %v1511
  %1513 = vmatmul.f32.gmra.mxu0 %v203
  %v1514 = vpop.f32.mrf.mxu0
  %v1515 = vadd.f32 0.0, %v1514
  %1516 = vmatmul.f32.gmra.mxu0 %v206
  %v1517 = vpop.f32.mrf.mxu0
  %v1518 = vadd.f32 0.0, %v1517
  %1519 = vmatmul.f32.gmra.mxu0 %v209
  %v1520 = vpop.f32.mrf.mxu0
  %v1521 = vadd.f32 0.0, %v1520
  %1522 = vmatmul.f32.gmra.mxu0 %v212
  %v1523 = vpop.f32.mrf.mxu0
  %v1524 = vadd.f32 0.0, %v1523
  %1525 = vmatmul.f32.gmra.mxu0 %v215
  %v1526 = vpop.f32.mrf.mxu0
  %v1527 = vadd.f32 0.0, %v1526
  %1528 = vmatmul.f32.gmra.mxu0 %v218
  %v1529 = vpop.f32.mrf.mxu0
  %v1530 = vadd.f32 0.0, %v1529
  %1531 = vdwg.mxu0
  %1532 = vmatpush.msra.mxu0 0.0
  %1533 = vmatpush.msra.mxu0 0.0
  %1534 = vmatpush.msra.mxu0 0.0
  %1535 = vmatpush.msra.mxu0 0.0
  %1536 = vmatpush.msra.mxu0 %v593
  %1537 = vmatpush.msra.mxu0 %v589
  %1538 = vmatpush.msra.mxu0 %v585
  %1539 = vmatpush.msra.mxu0 %v581
  %1540 = vmatpush.msra.mxu0 %v577
  %1541 = vmatpush.msra.mxu0 %v573
  %1542 = vmatpush.msra.mxu0 %v569
  %1543 = vmatpush.msra.mxu0 %v565
  %1544 = vmatpush.msra.mxu0 %v561
  %1545 = vmatpush.msra.mxu0 %v557
  %1546 = vmatpush.msra.mxu0 %v553
  %1547 = vmatpush.msra.mxu0 %v549
  %1548 = vmatmul.f32.gmra.mxu0 %v1246
  %v1549 = vpop.f32.mrf.mxu0
  %v1550 = vadd.f32 %v1512, %v1549
  %1551 = vmatmul.f32.gmra.mxu0 %v1249
  %v1552 = vpop.f32.mrf.mxu0
  %v1553 = vadd.f32 %v1515, %v1552
  %1554 = vmatmul.f32.gmra.mxu0 %v1252
  %v1555 = vpop.f32.mrf.mxu0
  %v1556 = vadd.f32 %v1518, %v1555
  %1557 = vmatmul.f32.gmra.mxu0 %v1255
  %v1558 = vpop.f32.mrf.mxu0
  %v1559 = vadd.f32 %v1521, %v1558
  %1560 = vmatmul.f32.gmra.mxu0 %v1258
  %v1561 = vpop.f32.mrf.mxu0
  %v1562 = vadd.f32 %v1524, %v1561
  %1563 = vmatmul.f32.gmra.mxu0 %v1261
  %v1564 = vpop.f32.mrf.mxu0
  %v1565 = vadd.f32 %v1527, %v1564
  %1566 = vmatmul.f32.gmra.mxu0 %v1264
  %v1567 = vpop.f32.mrf.mxu0
  %v1568 = vadd.f32 %v1530, %v1567
  %1569 = vdwg.mxu0
  %v1570 = vadd.f32 %v997, %v1322
  %v1571 = vadd.f32 %v1073, %v1398
  %v1572 = vadd.f32 %v1149, %v1474
  %v1573 = vadd.f32 %v1225, %v1550
  %v1574 = vadd.f32 %v1000, %v1325
  %v1575 = vadd.f32 %v1076, %v1401
  %v1576 = vadd.f32 %v1152, %v1477
  %v1577 = vadd.f32 %v1228, %v1553
  %v1578 = vadd.f32 %v1003, %v1328
  %v1579 = vadd.f32 %v1079, %v1404
  %v1580 = vadd.f32 %v1155, %v1480
  %v1581 = vadd.f32 %v1231, %v1556
  %v1582 = vadd.f32 %v1006, %v1331
  %v1583 = vadd.f32 %v1082, %v1407
  %v1584 = vadd.f32 %v1158, %v1483
  %v1585 = vadd.f32 %v1234, %v1559
  %v1586 = vadd.f32 %v1009, %v1334
  %v1587 = vadd.f32 %v1085, %v1410
  %v1588 = vadd.f32 %v1161, %v1486
  %v1589 = vadd.f32 %v1237, %v1562
  %v1590 = vadd.f32 %v1012, %v1337
  %v1591 = vadd.f32 %v1088, %v1413
  %v1592 = vadd.f32 %v1164, %v1489
  %v1593 = vadd.f32 %v1240, %v1565
  %v1594 = vadd.f32 %v1015, %v1340
  %v1595 = vadd.f32 %v1091, %v1416
  %v1596 = vadd.f32 %v1167, %v1492
  %v1597 = vadd.f32 %v1243, %v1568
  %v1598 = vld [vmem:[%s4] sm:$0xf]
  %v1600 = vperm.slane %v1598, 0
  %v1601 = vperm.slane %v1598, 1
  %v1602 = vperm.slane %v1598, 2
  %v1603 = vperm.slane %v1598, 3
  %v1608 = vadd.f32 %v1570, %v1600
  %v1609 = vadd.f32 %v1571, %v1601
  %v1610 = vadd.f32 %v1572, %v1602
  %v1611 = vadd.f32 %v1573, %v1603
  %v1612 = vadd.f32 %v1574, %v1600
  %v1613 = vadd.f32 %v1575, %v1601
  %v1614 = vadd.f32 %v1576, %v1602
  %v1615 = vadd.f32 %v1577, %v1603
  %v1616 = vadd.f32 %v1578, %v1600
  %v1617 = vadd.f32 %v1579, %v1601
  %v1618 = vadd.f32 %v1580, %v1602
  %v1619 = vadd.f32 %v1581, %v1603
  %v1620 = vadd.f32 %v1582, %v1600
  %v1621 = vadd.f32 %v1583, %v1601
  %v1622 = vadd.f32 %v1584, %v1602
  %v1623 = vadd.f32 %v1585, %v1603
  %v1624 = vadd.f32 %v1586, %v1600
  %v1625 = vadd.f32 %v1587, %v1601
  %v1626 = vadd.f32 %v1588, %v1602
  %v1627 = vadd.f32 %v1589, %v1603
  %v1628 = vadd.f32 %v1590, %v1600
  %v1629 = vadd.f32 %v1591, %v1601
  %v1630 = vadd.f32 %v1592, %v1602
  %v1631 = vadd.f32 %v1593, %v1603
  %v1632 = vadd.f32 %v1594, %v1600
  %v1633 = vadd.f32 %v1595, %v1601
  %v1634 = vadd.f32 %v1596, %v1602
  %v1635 = vadd.f32 %v1597, %v1603
  %v1636 = vadd.f32 %v1608, %v1612
  %v1637 = vadd.f32 %v1636, %v1616
  %v1638 = vadd.f32 %v1637, %v1620
  %v1639 = vadd.f32 %v1638, %v1624
  %v1640 = vadd.f32 %v1639, %v1628
  %v1641 = vadd.f32 %v1640, %v1632
  %v1642 = vrot.slane %v1641, 4
  %v1643 = vadd.f32 %v1641, %v1642
  %v1644 = vrot.slane %v1643, 2
  %v1645 = vadd.f32 %v1643, %v1644
  %v1646 = vrot.slane %v1645, 1
  %v1647 = vadd.f32 %v1645, %v1646
  %v1648 = vadd.f32 %v1609, %v1613
  %v1649 = vadd.f32 %v1648, %v1617
  %v1650 = vadd.f32 %v1649, %v1621
  %v1651 = vadd.f32 %v1650, %v1625
  %v1652 = vadd.f32 %v1651, %v1629
  %v1653 = vadd.f32 %v1652, %v1633
  %v1654 = vrot.slane %v1653, 4
  %v1655 = vadd.f32 %v1653, %v1654
  %v1656 = vrot.slane %v1655, 2
  %v1657 = vadd.f32 %v1655, %v1656
  %v1658 = vrot.slane %v1657, 1
  %v1659 = vadd.f32 %v1657, %v1658
  %v1660 = vadd.f32 %v1610, %v1614
  %v1661 = vadd.f32 %v1660, %v1618
  %v1662 = vadd.f32 %v1661, %v1622
  %v1663 = vadd.f32 %v1662, %v1626
  %v1664 = vadd.f32 %v1663, %v1630
  %v1665 = vadd.f32 %v1664, %v1634
  %v1666 = vrot.slane %v1665, 4
  %v1667 = vadd.f32 %v1665, %v1666
  %v1668 = vrot.slane %v1667, 2
  %v1669 = vadd.f32 %v1667, %v1668
  %v1670 = vrot.slane %v1669, 1
  %v1671 = vadd.f32 %v1669, %v1670
  %vm1672 = vcmask 523264
  %v1673 = vsel %vm1672, %v1611, 0.0
  %v1674 = vsel %vm1672, %v1615, 0.0
  %v1675 = vadd.f32 %v1673, %v1674
  %v1676 = vsel %vm1672, %v1619, 0.0
  %v1677 = vadd.f32 %v1675, %v1676
  %v1678 = vsel %vm1672, %v1623, 0.0
  %v1679 = vadd.f32 %v1677, %v1678
  %v1680 = vsel %vm1672, %v1627, 0.0
  %v1681 = vadd.f32 %v1679, %v1680
  %v1682 = vsel %vm1672, %v1631, 0.0
  %v1683 = vadd.f32 %v1681, %v1682
  %v1684 = vsel %vm1672, %v1635, 0.0
  %v1685 = vadd.f32 %v1683, %v1684
  %v1686 = vrot.slane %v1685, 4
  %v1687 = vadd.f32 %v1685, %v1686
  %v1688 = vrot.slane %v1687, 2
  %v1689 = vadd.f32 %v1687, %v1688
  %v1690 = vrot.slane %v1689, 1
  %v1691 = vadd.f32 %v1689, %v1690
  %v1692 = vld [vmem:[%s7] sm:$0xff]
  %v1693 = vld [vmem:[%s7 + $0x8] sm:$0xff]
  %v1694 = vld [vmem:[%s7 + $0x10] sm:$0xff]
  %v1695 = vld [vmem:[%s7 + $0x18] sm:$0xff]
  %v1696 = vld [vmem:[%s7 + $0x20] sm:$0xff]
  %v1697 = vld [vmem:[%s7 + $0x28] sm:$0xff]
  %v1698 = vld [vmem:[%s7 + $0x30] sm:$0xff]
  %v1699 = vld [vmem:[%s7 + $0x38] sm:$0xff]
  %v1700 = vld [vmem:[%s7 + $0x40] sm:$0xff]
  %v1701 = vld [vmem:[%s7 + $0x48] sm:$0xff]
  %v1702 = vld [vmem:[%s7 + $0x50] sm:$0xff]
  %v1703 = vld [vmem:[%s7 + $0x58] sm:$0xff]
  %v1704 = vld [vmem:[%s7 + $0x60] sm:$0xff]
  %v1705 = vld [vmem:[%s7 + $0x68] sm:$0xff]
  %v1706 = vld [vmem:[%s7 + $0x70] sm:$0xff]
  %v1707 = vld [vmem:[%s7 + $0x78] sm:$0xff]
  %v1708 = vld [vmem:[%s7 + $0x80] sm:$0xff]
  %v1709 = vld [vmem:[%s7 + $0x88] sm:$0xff]
  %v1710 = vld [vmem:[%s7 + $0x90] sm:$0xff]
  %v1711 = vld [vmem:[%s7 + $0x98] sm:$0xff]
  %v1712 = vld [vmem:[%s7 + $0xa0] sm:$0xff]
  %v1713 = vld [vmem:[%s7 + $0xa8] sm:$0xff]
  %v1714 = vld [vmem:[%s7 + $0xb0] sm:$0xff]
  %v1715 = vld [vmem:[%s7 + $0xb8] sm:$0xff]
  %v1716 = vld [vmem:[%s7 + $0xc0] sm:$0xff]
  %v1717 = vld [vmem:[%s7 + $0xc8] sm:$0xff]
  %v1718 = vld [vmem:[%s7 + $0xd0] sm:$0xff]
  %v1719 = vld [vmem:[%s7 + $0xd8] sm:$0xff]
  %v1720 = vld [vmem:[%s7 + $0xe0] sm:$0xff]
  %v1721 = vld [vmem:[%s7 + $0xe8] sm:$0xff]
  %v1722 = vld [vmem:[%s7 + $0xf0] sm:$0xff]
  %v1723 = vld [vmem:[%s7 + $0xf8] sm:$0xff]
  %v1724 = vld [vmem:[%s7 + $0x100] sm:$0xff]
  %v1725 = vld [vmem:[%s7 + $0x108] sm:$0xff]
  %v1726 = vld [vmem:[%s7 + $0x110] sm:$0xff]
  %v1727 = vld [vmem:[%s7 + $0x118] sm:$0xff]
  %v1728 = vld [vmem:[%s7 + $0x120] sm:$0xff]
  %v1729 = vld [vmem:[%s7 + $0x128] sm:$0xff]
  %v1730 = vld [vmem:[%s7 + $0x130] sm:$0xff]
  %v1731 = vld [vmem:[%s7 + $0x138] sm:$0xff]
  %v1732 = vld [vmem:[%s7 + $0x140] sm:$0xff]
  %v1733 = vld [vmem:[%s7 + $0x148] sm:$0xff]
  %v1734 = vld [vmem:[%s7 + $0x150] sm:$0xff]
  %v1735 = vld [vmem:[%s7 + $0x158] sm:$0xff]
  %v1736 = vld [vmem:[%s7 + $0x160] sm:$0xff]
  %v1737 = vld [vmem:[%s7 + $0x168] sm:$0xff]
  %v1738 = vld [vmem:[%s7 + $0x170] sm:$0xff]
  %v1739 = vld [vmem:[%s7 + $0x178] sm:$0xff]
  %v1740 = vld [vmem:[%s7 + $0x180] sm:$0xff]
  %v1741 = vld [vmem:[%s7 + $0x188] sm:$0xff]
  %v1742 = vld [vmem:[%s7 + $0x190] sm:$0xff]
  %v1743 = vld [vmem:[%s7 + $0x198] sm:$0xff]
  %v1744 = vld [vmem:[%s7 + $0x1a0] sm:$0xff]
  %v1745 = vld [vmem:[%s7 + $0x1a8] sm:$0xff]
  %v1746 = vld [vmem:[%s7 + $0x1b0] sm:$0xff]
  %v1747 = vld [vmem:[%s7 + $0x1b8] sm:$0xff]
  %v1748 = vld [vmem:[%s7 + $0x1c0] sm:$0xff]
  %v1749 = vld [vmem:[%s7 + $0x1c8] sm:$0xff]
  %v1750 = vld [vmem:[%s7 + $0x1d0] sm:$0xff]
  %v1751 = vld [vmem:[%s7 + $0x1d8] sm:$0xff]
  %v1752 = vld [vmem:[%s7 + $0x1e0] sm:$0xff]
  %v1753 = vld [vmem:[%s7 + $0x1e8] sm:$0xff]
  %v1754 = vld [vmem:[%s7 + $0x1f0] sm:$0xff]
  %v1755 = vld [vmem:[%s7 + $0x1f8] sm:$0xff]
  %v1756 = vld [vmem:[%s7 + $0x200] sm:$0xff]
  %v1757 = vld [vmem:[%s7 + $0x208] sm:$0xff]
  %v1758 = vld [vmem:[%s7 + $0x210] sm:$0xff]
  %v1759 = vld [vmem:[%s7 + $0x218] sm:$0xff]
  %v1760 = vld [vmem:[%s7 + $0x220] sm:$0xff]
  %v1761 = vld [vmem:[%s7 + $0x228] sm:$0xff]
  %v1762 = vld [vmem:[%s7 + $0x230] sm:$0xff]
  %v1763 = vld [vmem:[%s7 + $0x238] sm:$0xff]
  %v1764 = vld [vmem:[%s7 + $0x240] sm:$0xff]
  %v1765 = vld [vmem:[%s7 + $0x248] sm:$0xff]
  %v1766 = vld [vmem:[%s7 + $0x250] sm:$0xff]
  %v1767 = vld [vmem:[%s7 + $0x258] sm:$0xff]
  %v1768 = vld [vmem:[%s7 + $0x260] sm:$0xff]
  %v1769 = vld [vmem:[%s7 + $0x268] sm:$0xff]
  %v1770 = vld [vmem:[%s7 + $0x270] sm:$0xff]
  %v1771 = vld [vmem:[%s7 + $0x278] sm:$0xff]
  %v1772 = vld [vmem:[%s7 + $0x280] sm:$0xff]
  %v1773 = vld [vmem:[%s7 + $0x288] sm:$0xff]
  %v1774 = vld [vmem:[%s7 + $0x290] sm:$0xff]
  %v1775 = vld [vmem:[%s7 + $0x298] sm:$0xff]
  %v1776 = vld [vmem:[%s7 + $0x2a0] sm:$0xff]
  %v1777 = vld [vmem:[%s7 + $0x2a8] sm:$0xff]
  %v1778 = vld [vmem:[%s7 + $0x2b0] sm:$0xff]
  %v1779 = vld [vmem:[%s7 + $0x2b8] sm:$0xff]
  %v1780 = vld [vmem:[%s7 + $0x2c0] sm:$0xff]
  %v1781 = vld [vmem:[%s7 + $0x2c8] sm:$0xff]
  %v1782 = vld [vmem:[%s7 + $0x2d0] sm:$0xff]
  %v1783 = vld [vmem:[%s7 + $0x2d8] sm:$0xff]
  %v1784 = vld [vmem:[%s7 + $0x2e0] sm:$0xff]
  %v1785 = vld [vmem:[%s7 + $0x2e8] sm:$0xff]
  %v1786 = vld [vmem:[%s7 + $0x2f0] sm:$0xff]
  %v1787 = vld [vmem:[%s7 + $0x2f8] sm:$0xff]
  %v1788 = vld [vmem:[%s7 + $0x300] sm:$0xff]
  %v1789 = vld [vmem:[%s7 + $0x308] sm:$0xff]
  %v1790 = vld [vmem:[%s7 + $0x310] sm:$0xff]
  %v1791 = vld [vmem:[%s7 + $0x318] sm:$0xff]
  %v1792 = vld [vmem:[%s7 + $0x320] sm:$0xff]
  %v1793 = vld [vmem:[%s7 + $0x328] sm:$0xff]
  %v1794 = vld [vmem:[%s7 + $0x330] sm:$0xff]
  %v1795 = vld [vmem:[%s7 + $0x338] sm:$0xff]
  %v1796 = vld [vmem:[%s7 + $0x340] sm:$0xff]
  %v1797 = vld [vmem:[%s7 + $0x348] sm:$0xff]
  %v1798 = vld [vmem:[%s7 + $0x350] sm:$0xff]
  %v1799 = vld [vmem:[%s7 + $0x358] sm:$0xff]
  %v1800 = vld [vmem:[%s7 + $0x360] sm:$0xff]
  %v1801 = vld [vmem:[%s7 + $0x368] sm:$0xff]
  %v1802 = vld [vmem:[%s7 + $0x370] sm:$0xff]
  %v1803 = vld [vmem:[%s7 + $0x378] sm:$0xff]
  %v1804 = vld [vmem:[%s7 + $0x380] sm:$0xff]
  %v1805 = vld [vmem:[%s7 + $0x388] sm:$0xff]
  %v1806 = vld [vmem:[%s7 + $0x390] sm:$0xff]
  %v1807 = vld [vmem:[%s7 + $0x398] sm:$0xff]
  %v1808 = vld [vmem:[%s7 + $0x3a0] sm:$0xff]
  %v1809 = vld [vmem:[%s7 + $0x3a8] sm:$0xff]
  %v1810 = vld [vmem:[%s7 + $0x3b0] sm:$0xff]
  %v1811 = vld [vmem:[%s7 + $0x3b8] sm:$0xff]
  %v1812 = vld [vmem:[%s7 + $0x3c0] sm:$0xff]
  %v1813 = vld [vmem:[%s7 + $0x3c8] sm:$0xff]
  %v1814 = vld [vmem:[%s7 + $0x3d0] sm:$0xff]
  %v1815 = vld [vmem:[%s7 + $0x3d8] sm:$0xff]
  %v1816 = vld [vmem:[%s7 + $0x3e0] sm:$0xff]
  %v1817 = vld [vmem:[%s7 + $0x3e8] sm:$0xff]
  %v1818 = vld [vmem:[%s7 + $0x3f0] sm:$0xff]
  %v1819 = vld [vmem:[%s7 + $0x3f8] sm:$0xff]
  %v1820 = vld [vmem:[%s7 + $0x400] sm:$0xff]
  %v1821 = vld [vmem:[%s7 + $0x408] sm:$0xff]
  %v1822 = vld [vmem:[%s7 + $0x410] sm:$0xff]
  %v1823 = vld [vmem:[%s7 + $0x418] sm:$0xff]
  %v1824 = vld [vmem:[%s7 + $0x420] sm:$0xff]
  %v1825 = vld [vmem:[%s7 + $0x428] sm:$0xff]
  %v1826 = vld [vmem:[%s7 + $0x430] sm:$0xff]
  %v1827 = vld [vmem:[%s7 + $0x438] sm:$0xff]
  %v1828 = vld [vmem:[%s7 + $0x440] sm:$0xff]
  %v1829 = vld [vmem:[%s7 + $0x448] sm:$0xff]
  %v1830 = vld [vmem:[%s7 + $0x450] sm:$0xff]
  %v1831 = vld [vmem:[%s7 + $0x458] sm:$0xff]
  %v1832 = vld [vmem:[%s7 + $0x460] sm:$0xff]
  %v1833 = vld [vmem:[%s7 + $0x468] sm:$0xff]
  %v1834 = vld [vmem:[%s7 + $0x470] sm:$0xff]
  %v1835 = vld [vmem:[%s7 + $0x478] sm:$0xff]
  %v1836 = vld [vmem:[%s7 + $0x480] sm:$0xff]
  %v1837 = vld [vmem:[%s7 + $0x488] sm:$0xff]
  %v1838 = vld [vmem:[%s7 + $0x490] sm:$0xff]
  %v1839 = vld [vmem:[%s7 + $0x498] sm:$0xff]
  %v1840 = vld [vmem:[%s7 + $0x4a0] sm:$0xff]
  %v1841 = vld [vmem:[%s7 + $0x4a8] sm:$0xff]
  %v1842 = vld [vmem:[%s7 + $0x4b0] sm:$0xff]
  %v1843 = vld [vmem:[%s7 + $0x4b8] sm:$0xff]
  %v1844 = vld [vmem:[%s7 + $0x4c0] sm:$0xff]
  %v1845 = vld [vmem:[%s7 + $0x4c8] sm:$0xff]
  %v1846 = vld [vmem:[%s7 + $0x4d0] sm:$0xff]
  %v1847 = vld [vmem:[%s7 + $0x4d8] sm:$0xff]
  %v1848 = vld [vmem:[%s7 + $0x4e0] sm:$0xff]
  %v1849 = vld [vmem:[%s7 + $0x4e8] sm:$0xff]
  %v1850 = vld [vmem:[%s7 + $0x4f0] sm:$0xff]
  %v1851 = vld [vmem:[%s7 + $0x4f8] sm:$0xff]
  %v1852 = vld [vmem:[%s7 + $0x500] sm:$0xff]
  %v1853 = vld [vmem:[%s7 + $0x508] sm:$0xff]
  %v1854 = vld [vmem:[%s7 + $0x510] sm:$0xff]
  %v1855 = vld [vmem:[%s7 + $0x518] sm:$0xff]
  %v1856 = vld [vmem:[%s7 + $0x520] sm:$0xff]
  %v1857 = vld [vmem:[%s7 + $0x528] sm:$0xff]
  %v1858 = vld [vmem:[%s7 + $0x530] sm:$0xff]
  %v1859 = vld [vmem:[%s7 + $0x538] sm:$0xff]
  %v1860 = vld [vmem:[%s7 + $0x540] sm:$0xff]
  %v1861 = vld [vmem:[%s7 + $0x548] sm:$0xff]
  %v1862 = vld [vmem:[%s7 + $0x550] sm:$0xff]
  %v1863 = vld [vmem:[%s7 + $0x558] sm:$0xff]
  %v1864 = vld [vmem:[%s7 + $0x560] sm:$0xff]
  %v1865 = vld [vmem:[%s7 + $0x568] sm:$0xff]
  %v1866 = vld [vmem:[%s7 + $0x570] sm:$0xff]
  %v1867 = vld [vmem:[%s7 + $0x578] sm:$0xff]
  %v1868 = vld [vmem:[%s7 + $0x580] sm:$0xff]
  %v1869 = vld [vmem:[%s7 + $0x588] sm:$0xff]
  %v1870 = vld [vmem:[%s7 + $0x590] sm:$0xff]
  %v1871 = vld [vmem:[%s7 + $0x598] sm:$0xff]
  %v1872 = vld [vmem:[%s7 + $0x5a0] sm:$0xff]
  %v1873 = vld [vmem:[%s7 + $0x5a8] sm:$0xff]
  %v1874 = vld [vmem:[%s7 + $0x5b0] sm:$0xff]
  %v1875 = vld [vmem:[%s7 + $0x5b8] sm:$0xff]
  %v1876 = vld [vmem:[%s7 + $0x5c0] sm:$0xff]
  %v1877 = vld [vmem:[%s7 + $0x5c8] sm:$0xff]
  %v1878 = vld [vmem:[%s7 + $0x5d0] sm:$0xff]
  %v1879 = vld [vmem:[%s7 + $0x5d8] sm:$0xff]
  %v1880 = vld [vmem:[%s7 + $0x5e0] sm:$0xff]
  %v1881 = vld [vmem:[%s7 + $0x5e8] sm:$0xff]
  %v1882 = vld [vmem:[%s7 + $0x5f0] sm:$0xff]
  %v1883 = vld [vmem:[%s7 + $0x5f8] sm:$0xff]
  %v1884 = vld [vmem:[%s7 + $0x600] sm:$0xff]
  %v1885 = vld [vmem:[%s7 + $0x608] sm:$0xff]
  %v1886 = vld [vmem:[%s7 + $0x610] sm:$0xff]
  %v1887 = vld [vmem:[%s7 + $0x618] sm:$0xff]
  %v1888 = vld [vmem:[%s7 + $0x620] sm:$0xff]
  %v1889 = vld [vmem:[%s7 + $0x628] sm:$0xff]
  %v1890 = vld [vmem:[%s7 + $0x630] sm:$0xff]
  %v1891 = vld [vmem:[%s7 + $0x638] sm:$0xff]
  %v1892 = vld [vmem:[%s7 + $0x640] sm:$0xff]
  %v1893 = vld [vmem:[%s7 + $0x648] sm:$0xff]
  %v1894 = vld [vmem:[%s7 + $0x650] sm:$0xff]
  %v1895 = vld [vmem:[%s7 + $0x658] sm:$0xff]
  %v1896 = vld [vmem:[%s7 + $0x660] sm:$0xff]
  %v1897 = vld [vmem:[%s7 + $0x668] sm:$0xff]
  %v1898 = vld [vmem:[%s7 + $0x670] sm:$0xff]
  %v1899 = vld [vmem:[%s7 + $0x678] sm:$0xff]
  %v1900 = vld [vmem:[%s7 + $0x680] sm:$0xff]
  %v1901 = vld [vmem:[%s7 + $0x688] sm:$0xff]
  %v1902 = vld [vmem:[%s7 + $0x690] sm:$0xff]
  %v1903 = vld [vmem:[%s7 + $0x698] sm:$0xff]
  %v1904 = vld [vmem:[%s7 + $0x6a0] sm:$0xff]
  %v1905 = vld [vmem:[%s7 + $0x6a8] sm:$0xff]
  %v1906 = vld [vmem:[%s7 + $0x6b0] sm:$0xff]
  %v1907 = vld [vmem:[%s7 + $0x6b8] sm:$0xff]
  %v1908 = vld [vmem:[%s7 + $0x6c0] sm:$0xff]
  %v1909 = vld [vmem:[%s7 + $0x6c8] sm:$0xff]
  %v1910 = vld [vmem:[%s7 + $0x6d0] sm:$0xff]
  %v1911 = vld [vmem:[%s7 + $0x6d8] sm:$0xff]
  %v1912 = vld [vmem:[%s7 + $0x6e0] sm:$0xff]
  %v1913 = vld [vmem:[%s7 + $0x6e8] sm:$0xff]
  %v1914 = vld [vmem:[%s7 + $0x6f0] sm:$0xff]
  %v1915 = vld [vmem:[%s7 + $0x6f8] sm:$0xff]
  %v1917 = vsel %vm1672, %v1691, 0
  %1919 = vmatpush.msra.mxu0 %v1752
  %1920 = vmatpush.msra.mxu0 %v1748
  %1921 = vmatpush.msra.mxu0 %v1744
  %1922 = vmatpush.msra.mxu0 %v1740
  %1923 = vmatpush.msra.mxu0 %v1736
  %1924 = vmatpush.msra.mxu0 %v1732
  %1925 = vmatpush.msra.mxu0 %v1728
  %1926 = vmatpush.msra.mxu0 %v1724
  %1927 = vmatpush.msra.mxu0 %v1720
  %1928 = vmatpush.msra.mxu0 %v1716
  %1929 = vmatpush.msra.mxu0 %v1712
  %1930 = vmatpush.msra.mxu0 %v1708
  %1931 = vmatpush.msra.mxu0 %v1704
  %1932 = vmatpush.msra.mxu0 %v1700
  %1933 = vmatpush.msra.mxu0 %v1696
  %1934 = vmatpush.msra.mxu0 %v1692
  %1935 = vmatmul.f32.gmra.mxu0 %v1647
  %v1936 = vpop.f32.mrf.mxu0
  %v1937 = vadd.f32 0.0, %v1936
  %1938 = vdwg.mxu0
  %1939 = vmatpush.msra.mxu0 %v1816
  %1940 = vmatpush.msra.mxu0 %v1812
  %1941 = vmatpush.msra.mxu0 %v1808
  %1942 = vmatpush.msra.mxu0 %v1804
  %1943 = vmatpush.msra.mxu0 %v1800
  %1944 = vmatpush.msra.mxu0 %v1796
  %1945 = vmatpush.msra.mxu0 %v1792
  %1946 = vmatpush.msra.mxu0 %v1788
  %1947 = vmatpush.msra.mxu0 %v1784
  %1948 = vmatpush.msra.mxu0 %v1780
  %1949 = vmatpush.msra.mxu0 %v1776
  %1950 = vmatpush.msra.mxu0 %v1772
  %1951 = vmatpush.msra.mxu0 %v1768
  %1952 = vmatpush.msra.mxu0 %v1764
  %1953 = vmatpush.msra.mxu0 %v1760
  %1954 = vmatpush.msra.mxu0 %v1756
  %1955 = vmatmul.f32.gmra.mxu0 %v1659
  %v1956 = vpop.f32.mrf.mxu0
  %v1957 = vadd.f32 %v1937, %v1956
  %1958 = vdwg.mxu0
  %1959 = vmatpush.msra.mxu0 %v1880
  %1960 = vmatpush.msra.mxu0 %v1876
  %1961 = vmatpush.msra.mxu0 %v1872
  %1962 = vmatpush.msra.mxu0 %v1868
  %1963 = vmatpush.msra.mxu0 %v1864
  %1964 = vmatpush.msra.mxu0 %v1860
  %1965 = vmatpush.msra.mxu0 %v1856
  %1966 = vmatpush.msra.mxu0 %v1852
  %1967 = vmatpush.msra.mxu0 %v1848
  %1968 = vmatpush.msra.mxu0 %v1844
  %1969 = vmatpush.msra.mxu0 %v1840
  %1970 = vmatpush.msra.mxu0 %v1836
  %1971 = vmatpush.msra.mxu0 %v1832
  %1972 = vmatpush.msra.mxu0 %v1828
  %1973 = vmatpush.msra.mxu0 %v1824
  %1974 = vmatpush.msra.mxu0 %v1820
  %1975 = vmatmul.f32.gmra.mxu0 %v1671
  %v1976 = vpop.f32.mrf.mxu0
  %v1977 = vadd.f32 %v1957, %v1976
  %1978 = vdwg.mxu0
  %1979 = vmatpush.msra.mxu0 0.0
  %1980 = vmatpush.msra.mxu0 0.0
  %1981 = vmatpush.msra.mxu0 0.0
  %1982 = vmatpush.msra.mxu0 0.0
  %1983 = vmatpush.msra.mxu0 0.0
  %1984 = vmatpush.msra.mxu0 0.0
  %1985 = vmatpush.msra.mxu0 0.0
  %1986 = vmatpush.msra.mxu0 0.0
  %1987 = vmatpush.msra.mxu0 %v1912
  %1988 = vmatpush.msra.mxu0 %v1908
  %1989 = vmatpush.msra.mxu0 %v1904
  %1990 = vmatpush.msra.mxu0 %v1900
  %1991 = vmatpush.msra.mxu0 %v1896
  %1992 = vmatpush.msra.mxu0 %v1892
  %1993 = vmatpush.msra.mxu0 %v1888
  %1994 = vmatpush.msra.mxu0 %v1884
  %1995 = vmatmul.f32.gmra.mxu0 %v1917
  %v1996 = vpop.f32.mrf.mxu0
  %v1997 = vadd.f32 %v1977, %v1996
  %1998 = vdwg.mxu0
  %1999 = vmatpush.msra.mxu0 %v1753
  %2000 = vmatpush.msra.mxu0 %v1749
  %2001 = vmatpush.msra.mxu0 %v1745
  %2002 = vmatpush.msra.mxu0 %v1741
  %2003 = vmatpush.msra.mxu0 %v1737
  %2004 = vmatpush.msra.mxu0 %v1733
  %2005 = vmatpush.msra.mxu0 %v1729
  %2006 = vmatpush.msra.mxu0 %v1725
  %2007 = vmatpush.msra.mxu0 %v1721
  %2008 = vmatpush.msra.mxu0 %v1717
  %2009 = vmatpush.msra.mxu0 %v1713
  %2010 = vmatpush.msra.mxu0 %v1709
  %2011 = vmatpush.msra.mxu0 %v1705
  %2012 = vmatpush.msra.mxu0 %v1701
  %2013 = vmatpush.msra.mxu0 %v1697
  %2014 = vmatpush.msra.mxu0 %v1693
  %2015 = vmatmul.f32.gmra.mxu0 %v1647
  %v2016 = vpop.f32.mrf.mxu0
  %v2017 = vadd.f32 0.0, %v2016
  %2018 = vdwg.mxu0
  %2019 = vmatpush.msra.mxu0 %v1817
  %2020 = vmatpush.msra.mxu0 %v1813
  %2021 = vmatpush.msra.mxu0 %v1809
  %2022 = vmatpush.msra.mxu0 %v1805
  %2023 = vmatpush.msra.mxu0 %v1801
  %2024 = vmatpush.msra.mxu0 %v1797
  %2025 = vmatpush.msra.mxu0 %v1793
  %2026 = vmatpush.msra.mxu0 %v1789
  %2027 = vmatpush.msra.mxu0 %v1785
  %2028 = vmatpush.msra.mxu0 %v1781
  %2029 = vmatpush.msra.mxu0 %v1777
  %2030 = vmatpush.msra.mxu0 %v1773
  %2031 = vmatpush.msra.mxu0 %v1769
  %2032 = vmatpush.msra.mxu0 %v1765
  %2033 = vmatpush.msra.mxu0 %v1761
  %2034 = vmatpush.msra.mxu0 %v1757
  %2035 = vmatmul.f32.gmra.mxu0 %v1659
  %v2036 = vpop.f32.mrf.mxu0
  %v2037 = vadd.f32 %v2017, %v2036
  %2038 = vdwg.mxu0
  %2039 = vmatpush.msra.mxu0 %v1881
  %2040 = vmatpush.msra.mxu0 %v1877
  %2041 = vmatpush.msra.mxu0 %v1873
  %2042 = vmatpush.msra.mxu0 %v1869
  %2043 = vmatpush.msra.mxu0 %v1865
  %2044 = vmatpush.msra.mxu0 %v1861
  %2045 = vmatpush.msra.mxu0 %v1857
  %2046 = vmatpush.msra.mxu0 %v1853
  %2047 = vmatpush.msra.mxu0 %v1849
  %2048 = vmatpush.msra.mxu0 %v1845
  %2049 = vmatpush.msra.mxu0 %v1841
  %2050 = vmatpush.msra.mxu0 %v1837
  %2051 = vmatpush.msra.mxu0 %v1833
  %2052 = vmatpush.msra.mxu0 %v1829
  %2053 = vmatpush.msra.mxu0 %v1825
  %2054 = vmatpush.msra.mxu0 %v1821
  %2055 = vmatmul.f32.gmra.mxu0 %v1671
  %v2056 = vpop.f32.mrf.mxu0
  %v2057 = vadd.f32 %v2037, %v2056
  %2058 = vdwg.mxu0
  %2059 = vmatpush.msra.mxu0 0.0
  %2060 = vmatpush.msra.mxu0 0.0
  %2061 = vmatpush.msra.mxu0 0.0
  %2062 = vmatpush.msra.mxu0 0.0
  %2063 = vmatpush.msra.mxu0 0.0
  %2064 = vmatpush.msra.mxu0 0.0
  %2065 = vmatpush.msra.mxu0 0.0
  %2066 = vmatpush.msra.mxu0 0.0
  %2067 = vmatpush.msra.mxu0 %v1913
  %2068 = vmatpush.msra.mxu0 %v1909
  %2069 = vmatpush.msra.mxu0 %v1905
  %2070 = vmatpush.msra.mxu0 %v1901
  %2071 = vmatpush.msra.mxu0 %v1897
  %2072 = vmatpush.msra.mxu0 %v1893
  %2073 = vmatpush.msra.mxu0 %v1889
  %2074 = vmatpush.msra.mxu0 %v1885
  %2075 = vmatmul.f32.gmra.mxu0 %v1917
  %v2076 = vpop.f32.mrf.mxu0
  %v2077 = vadd.f32 %v2057, %v2076
  %2078 = vdwg.mxu0
  %2079 = vmatpush.msra.mxu0 %v1754
  %2080 = vmatpush.msra.mxu0 %v1750
  %2081 = vmatpush.msra.mxu0 %v1746
  %2082 = vmatpush.msra.mxu0 %v1742
  %2083 = vmatpush.msra.mxu0 %v1738
  %2084 = vmatpush.msra.mxu0 %v1734
  %2085 = vmatpush.msra.mxu0 %v1730
  %2086 = vmatpush.msra.mxu0 %v1726
  %2087 = vmatpush.msra.mxu0 %v1722
  %2088 = vmatpush.msra.mxu0 %v1718
  %2089 = vmatpush.msra.mxu0 %v1714
  %2090 = vmatpush.msra.mxu0 %v1710
  %2091 = vmatpush.msra.mxu0 %v1706
  %2092 = vmatpush.msra.mxu0 %v1702
  %2093 = vmatpush.msra.mxu0 %v1698
  %2094 = vmatpush.msra.mxu0 %v1694
  %2095 = vmatmul.f32.gmra.mxu0 %v1647
  %v2096 = vpop.f32.mrf.mxu0
  %v2097 = vadd.f32 0.0, %v2096
  %2098 = vdwg.mxu0
  %2099 = vmatpush.msra.mxu0 %v1818
  %2100 = vmatpush.msra.mxu0 %v1814
  %2101 = vmatpush.msra.mxu0 %v1810
  %2102 = vmatpush.msra.mxu0 %v1806
  %2103 = vmatpush.msra.mxu0 %v1802
  %2104 = vmatpush.msra.mxu0 %v1798
  %2105 = vmatpush.msra.mxu0 %v1794
  %2106 = vmatpush.msra.mxu0 %v1790
  %2107 = vmatpush.msra.mxu0 %v1786
  %2108 = vmatpush.msra.mxu0 %v1782
  %2109 = vmatpush.msra.mxu0 %v1778
  %2110 = vmatpush.msra.mxu0 %v1774
  %2111 = vmatpush.msra.mxu0 %v1770
  %2112 = vmatpush.msra.mxu0 %v1766
  %2113 = vmatpush.msra.mxu0 %v1762
  %2114 = vmatpush.msra.mxu0 %v1758
  %2115 = vmatmul.f32.gmra.mxu0 %v1659
  %v2116 = vpop.f32.mrf.mxu0
  %v2117 = vadd.f32 %v2097, %v2116
  %2118 = vdwg.mxu0
  %2119 = vmatpush.msra.mxu0 %v1882
  %2120 = vmatpush.msra.mxu0 %v1878
  %2121 = vmatpush.msra.mxu0 %v1874
  %2122 = vmatpush.msra.mxu0 %v1870
  %2123 = vmatpush.msra.mxu0 %v1866
  %2124 = vmatpush.msra.mxu0 %v1862
  %2125 = vmatpush.msra.mxu0 %v1858
  %2126 = vmatpush.msra.mxu0 %v1854
  %2127 = vmatpush.msra.mxu0 %v1850
  %2128 = vmatpush.msra.mxu0 %v1846
  %2129 = vmatpush.msra.mxu0 %v1842
  %2130 = vmatpush.msra.mxu0 %v1838
  %2131 = vmatpush.msra.mxu0 %v1834
  %2132 = vmatpush.msra.mxu0 %v1830
  %2133 = vmatpush.msra.mxu0 %v1826
  %2134 = vmatpush.msra.mxu0 %v1822
  %2135 = vmatmul.f32.gmra.mxu0 %v1671
  %v2136 = vpop.f32.mrf.mxu0
  %v2137 = vadd.f32 %v2117, %v2136
  %2138 = vdwg.mxu0
  %2139 = vmatpush.msra.mxu0 0.0
  %2140 = vmatpush.msra.mxu0 0.0
  %2141 = vmatpush.msra.mxu0 0.0
  %2142 = vmatpush.msra.mxu0 0.0
  %2143 = vmatpush.msra.mxu0 0.0
  %2144 = vmatpush.msra.mxu0 0.0
  %2145 = vmatpush.msra.mxu0 0.0
  %2146 = vmatpush.msra.mxu0 0.0
  %2147 = vmatpush.msra.mxu0 %v1914
  %2148 = vmatpush.msra.mxu0 %v1910
  %2149 = vmatpush.msra.mxu0 %v1906
  %2150 = vmatpush.msra.mxu0 %v1902
  %2151 = vmatpush.msra.mxu0 %v1898
  %2152 = vmatpush.msra.mxu0 %v1894
  %2153 = vmatpush.msra.mxu0 %v1890
  %2154 = vmatpush.msra.mxu0 %v1886
  %2155 = vmatmul.f32.gmra.mxu0 %v1917
  %v2156 = vpop.f32.mrf.mxu0
  %v2157 = vadd.f32 %v2137, %v2156
  %2158 = vdwg.mxu0
  %2159 = vmatpush.msra.mxu0 %v1755
  %2160 = vmatpush.msra.mxu0 %v1751
  %2161 = vmatpush.msra.mxu0 %v1747
  %2162 = vmatpush.msra.mxu0 %v1743
  %2163 = vmatpush.msra.mxu0 %v1739
  %2164 = vmatpush.msra.mxu0 %v1735
  %2165 = vmatpush.msra.mxu0 %v1731
  %2166 = vmatpush.msra.mxu0 %v1727
  %2167 = vmatpush.msra.mxu0 %v1723
  %2168 = vmatpush.msra.mxu0 %v1719
  %2169 = vmatpush.msra.mxu0 %v1715
  %2170 = vmatpush.msra.mxu0 %v1711
  %2171 = vmatpush.msra.mxu0 %v1707
  %2172 = vmatpush.msra.mxu0 %v1703
  %2173 = vmatpush.msra.mxu0 %v1699
  %2174 = vmatpush.msra.mxu0 %v1695
  %2175 = vmatmul.f32.gmra.mxu0 %v1647
  %v2176 = vpop.f32.mrf.mxu0
  %v2177 = vadd.f32 0.0, %v2176
  %2178 = vdwg.mxu0
  %2179 = vmatpush.msra.mxu0 %v1819
  %2180 = vmatpush.msra.mxu0 %v1815
  %2181 = vmatpush.msra.mxu0 %v1811
  %2182 = vmatpush.msra.mxu0 %v1807
  %2183 = vmatpush.msra.mxu0 %v1803
  %2184 = vmatpush.msra.mxu0 %v1799
  %2185 = vmatpush.msra.mxu0 %v1795
  %2186 = vmatpush.msra.mxu0 %v1791
  %2187 = vmatpush.msra.mxu0 %v1787
  %2188 = vmatpush.msra.mxu0 %v1783
  %2189 = vmatpush.msra.mxu0 %v1779
  %2190 = vmatpush.msra.mxu0 %v1775
  %2191 = vmatpush.msra.mxu0 %v1771
  %2192 = vmatpush.msra.mxu0 %v1767
  %2193 = vmatpush.msra.mxu0 %v1763
  %2194 = vmatpush.msra.mxu0 %v1759
  %2195 = vmatmul.f32.gmra.mxu0 %v1659
  %v2196 = vpop.f32.mrf.mxu0
  %v2197 = vadd.f32 %v2177, %v2196
  %2198 = vdwg.mxu0
  %2199 = vmatpush.msra.mxu0 %v1883
  %2200 = vmatpush.msra.mxu0 %v1879
  %2201 = vmatpush.msra.mxu0 %v1875
  %2202 = vmatpush.msra.mxu0 %v1871
  %2203 = vmatpush.msra.mxu0 %v1867
  %2204 = vmatpush.msra.mxu0 %v1863
  %2205 = vmatpush.msra.mxu0 %v1859
  %2206 = vmatpush.msra.mxu0 %v1855
  %2207 = vmatpush.msra.mxu0 %v1851
  %2208 = vmatpush.msra.mxu0 %v1847
  %2209 = vmatpush.msra.mxu0 %v1843
  %2210 = vmatpush.msra.mxu0 %v1839
  %2211 = vmatpush.msra.mxu0 %v1835
  %2212 = vmatpush.msra.mxu0 %v1831
  %2213 = vmatpush.msra.mxu0 %v1827
  %2214 = vmatpush.msra.mxu0 %v1823
  %2215 = vmatmul.f32.gmra.mxu0 %v1671
  %v2216 = vpop.f32.mrf.mxu0
  %v2217 = vadd.f32 %v2197, %v2216
  %2218 = vdwg.mxu0
  %2219 = vmatpush.msra.mxu0 0.0
  %2220 = vmatpush.msra.mxu0 0.0
  %2221 = vmatpush.msra.mxu0 0.0
  %2222 = vmatpush.msra.mxu0 0.0
  %2223 = vmatpush.msra.mxu0 0.0
  %2224 = vmatpush.msra.mxu0 0.0
  %2225 = vmatpush.msra.mxu0 0.0
  %2226 = vmatpush.msra.mxu0 0.0
  %2227 = vmatpush.msra.mxu0 %v1915
  %2228 = vmatpush.msra.mxu0 %v1911
  %2229 = vmatpush.msra.mxu0 %v1907
  %2230 = vmatpush.msra.mxu0 %v1903
  %2231 = vmatpush.msra.mxu0 %v1899
  %2232 = vmatpush.msra.mxu0 %v1895
  %2233 = vmatpush.msra.mxu0 %v1891
  %2234 = vmatpush.msra.mxu0 %v1887
  %2235 = vmatmul.f32.gmra.mxu0 %v1917
  %v2236 = vpop.f32.mrf.mxu0
  %v2237 = vadd.f32 %v2217, %v2236
  %2238 = vdwg.mxu0
  %v2239 = vmul.f32 %v1997, 0.0006377551
  %v2240 = vmul.f32 %v2077, 0.0006377551
  %v2241 = vmul.f32 %v2157, 0.0006377551
  %v2242 = vmul.f32 %v2237, 0.0006377551
  %v2243 = vmul.f32 %v1608, %v1608
  %v2244 = vmul.f32 %v1609, %v1609
  %v2245 = vmul.f32 %v1610, %v1610
  %v2246 = vmul.f32 %v1611, %v1611
  %v2247 = vmul.f32 %v1612, %v1612
  %v2248 = vmul.f32 %v1613, %v1613
  %v2249 = vmul.f32 %v1614, %v1614
  %v2250 = vmul.f32 %v1615, %v1615
  %v2251 = vmul.f32 %v1616, %v1616
  %v2252 = vmul.f32 %v1617, %v1617
  %v2253 = vmul.f32 %v1618, %v1618
  %v2254 = vmul.f32 %v1619, %v1619
  %v2255 = vmul.f32 %v1620, %v1620
  %v2256 = vmul.f32 %v1621, %v1621
  %v2257 = vmul.f32 %v1622, %v1622
  %v2258 = vmul.f32 %v1623, %v1623
  %v2259 = vmul.f32 %v1624, %v1624
  %v2260 = vmul.f32 %v1625, %v1625
  %v2261 = vmul.f32 %v1626, %v1626
  %v2262 = vmul.f32 %v1627, %v1627
  %v2263 = vmul.f32 %v1628, %v1628
  %v2264 = vmul.f32 %v1629, %v1629
  %v2265 = vmul.f32 %v1630, %v1630
  %v2266 = vmul.f32 %v1631, %v1631
  %v2267 = vmul.f32 %v1632, %v1632
  %v2268 = vmul.f32 %v1633, %v1633
  %v2269 = vmul.f32 %v1634, %v1634
  %v2270 = vmul.f32 %v1635, %v1635
  %v2271 = vadd.f32 %v2243, %v2247
  %v2272 = vadd.f32 %v2271, %v2251
  %v2273 = vadd.f32 %v2272, %v2255
  %v2274 = vadd.f32 %v2273, %v2259
  %v2275 = vadd.f32 %v2274, %v2263
  %v2276 = vadd.f32 %v2275, %v2267
  %v2277 = vrot.slane %v2276, 4
  %v2278 = vadd.f32 %v2276, %v2277
  %v2279 = vrot.slane %v2278, 2
  %v2280 = vadd.f32 %v2278, %v2279
  %v2281 = vrot.slane %v2280, 1
  %v2282 = vadd.f32 %v2280, %v2281
  %v2283 = vadd.f32 %v2244, %v2248
  %v2284 = vadd.f32 %v2283, %v2252
  %v2285 = vadd.f32 %v2284, %v2256
  %v2286 = vadd.f32 %v2285, %v2260
  %v2287 = vadd.f32 %v2286, %v2264
  %v2288 = vadd.f32 %v2287, %v2268
  %v2289 = vrot.slane %v2288, 4
  %v2290 = vadd.f32 %v2288, %v2289
  %v2291 = vrot.slane %v2290, 2
  %v2292 = vadd.f32 %v2290, %v2291
  %v2293 = vrot.slane %v2292, 1
  %v2294 = vadd.f32 %v2292, %v2293
  %v2295 = vadd.f32 %v2245, %v2249
  %v2296 = vadd.f32 %v2295, %v2253
  %v2297 = vadd.f32 %v2296, %v2257
  %v2298 = vadd.f32 %v2297, %v2261
  %v2299 = vadd.f32 %v2298, %v2265
  %v2300 = vadd.f32 %v2299, %v2269
  %v2301 = vrot.slane %v2300, 4
  %v2302 = vadd.f32 %v2300, %v2301
  %v2303 = vrot.slane %v2302, 2
  %v2304 = vadd.f32 %v2302, %v2303
  %v2305 = vrot.slane %v2304, 1
  %v2306 = vadd.f32 %v2304, %v2305
  %v2307 = vsel %vm1672, %v2246, 0.0
  %v2308 = vsel %vm1672, %v2250, 0.0
  %v2309 = vadd.f32 %v2307, %v2308
  %v2310 = vsel %vm1672, %v2254, 0.0
  %v2311 = vadd.f32 %v2309, %v2310
  %v2312 = vsel %vm1672, %v2258, 0.0
  %v2313 = vadd.f32 %v2311, %v2312
  %v2314 = vsel %vm1672, %v2262, 0.0
  %v2315 = vadd.f32 %v2313, %v2314
  %v2316 = vsel %vm1672, %v2266, 0.0
  %v2317 = vadd.f32 %v2315, %v2316
  %v2318 = vsel %vm1672, %v2270, 0.0
  %v2319 = vadd.f32 %v2317, %v2318
  %v2320 = vrot.slane %v2319, 4
  %v2321 = vadd.f32 %v2319, %v2320
  %v2322 = vrot.slane %v2321, 2
  %v2323 = vadd.f32 %v2321, %v2322
  %v2324 = vrot.slane %v2323, 1
  %v2325 = vadd.f32 %v2323, %v2324
  %v2327 = vsel %vm1672, %v2325, 0
  %2329 = vmatpush.msra.mxu0 %v1752
  %2330 = vmatpush.msra.mxu0 %v1748
  %2331 = vmatpush.msra.mxu0 %v1744
  %2332 = vmatpush.msra.mxu0 %v1740
  %2333 = vmatpush.msra.mxu0 %v1736
  %2334 = vmatpush.msra.mxu0 %v1732
  %2335 = vmatpush.msra.mxu0 %v1728
  %2336 = vmatpush.msra.mxu0 %v1724
  %2337 = vmatpush.msra.mxu0 %v1720
  %2338 = vmatpush.msra.mxu0 %v1716
  %2339 = vmatpush.msra.mxu0 %v1712
  %2340 = vmatpush.msra.mxu0 %v1708
  %2341 = vmatpush.msra.mxu0 %v1704
  %2342 = vmatpush.msra.mxu0 %v1700
  %2343 = vmatpush.msra.mxu0 %v1696
  %2344 = vmatpush.msra.mxu0 %v1692
  %2345 = vmatmul.f32.gmra.mxu0 %v2282
  %v2346 = vpop.f32.mrf.mxu0
  %v2347 = vadd.f32 0.0, %v2346
  %2348 = vdwg.mxu0
  %2349 = vmatpush.msra.mxu0 %v1816
  %2350 = vmatpush.msra.mxu0 %v1812
  %2351 = vmatpush.msra.mxu0 %v1808
  %2352 = vmatpush.msra.mxu0 %v1804
  %2353 = vmatpush.msra.mxu0 %v1800
  %2354 = vmatpush.msra.mxu0 %v1796
  %2355 = vmatpush.msra.mxu0 %v1792
  %2356 = vmatpush.msra.mxu0 %v1788
  %2357 = vmatpush.msra.mxu0 %v1784
  %2358 = vmatpush.msra.mxu0 %v1780
  %2359 = vmatpush.msra.mxu0 %v1776
  %2360 = vmatpush.msra.mxu0 %v1772
  %2361 = vmatpush.msra.mxu0 %v1768
  %2362 = vmatpush.msra.mxu0 %v1764
  %2363 = vmatpush.msra.mxu0 %v1760
  %2364 = vmatpush.msra.mxu0 %v1756
  %2365 = vmatmul.f32.gmra.mxu0 %v2294
  %v2366 = vpop.f32.mrf.mxu0
  %v2367 = vadd.f32 %v2347, %v2366
  %2368 = vdwg.mxu0
  %2369 = vmatpush.msra.mxu0 %v1880
  %2370 = vmatpush.msra.mxu0 %v1876
  %2371 = vmatpush.msra.mxu0 %v1872
  %2372 = vmatpush.msra.mxu0 %v1868
  %2373 = vmatpush.msra.mxu0 %v1864
  %2374 = vmatpush.msra.mxu0 %v1860
  %2375 = vmatpush.msra.mxu0 %v1856
  %2376 = vmatpush.msra.mxu0 %v1852
  %2377 = vmatpush.msra.mxu0 %v1848
  %2378 = vmatpush.msra.mxu0 %v1844
  %2379 = vmatpush.msra.mxu0 %v1840
  %2380 = vmatpush.msra.mxu0 %v1836
  %2381 = vmatpush.msra.mxu0 %v1832
  %2382 = vmatpush.msra.mxu0 %v1828
  %2383 = vmatpush.msra.mxu0 %v1824
  %2384 = vmatpush.msra.mxu0 %v1820
  %2385 = vmatmul.f32.gmra.mxu0 %v2306
  %v2386 = vpop.f32.mrf.mxu0
  %v2387 = vadd.f32 %v2367, %v2386
  %2388 = vdwg.mxu0
  %2389 = vmatpush.msra.mxu0 0.0
  %2390 = vmatpush.msra.mxu0 0.0
  %2391 = vmatpush.msra.mxu0 0.0
  %2392 = vmatpush.msra.mxu0 0.0
  %2393 = vmatpush.msra.mxu0 0.0
  %2394 = vmatpush.msra.mxu0 0.0
  %2395 = vmatpush.msra.mxu0 0.0
  %2396 = vmatpush.msra.mxu0 0.0
  %2397 = vmatpush.msra.mxu0 %v1912
  %2398 = vmatpush.msra.mxu0 %v1908
  %2399 = vmatpush.msra.mxu0 %v1904
  %2400 = vmatpush.msra.mxu0 %v1900
  %2401 = vmatpush.msra.mxu0 %v1896
  %2402 = vmatpush.msra.mxu0 %v1892
  %2403 = vmatpush.msra.mxu0 %v1888
  %2404 = vmatpush.msra.mxu0 %v1884
  %2405 = vmatmul.f32.gmra.mxu0 %v2327
  %v2406 = vpop.f32.mrf.mxu0
  %v2407 = vadd.f32 %v2387, %v2406
  %2408 = vdwg.mxu0
  %2409 = vmatpush.msra.mxu0 %v1753
  %2410 = vmatpush.msra.mxu0 %v1749
  %2411 = vmatpush.msra.mxu0 %v1745
  %2412 = vmatpush.msra.mxu0 %v1741
  %2413 = vmatpush.msra.mxu0 %v1737
  %2414 = vmatpush.msra.mxu0 %v1733
  %2415 = vmatpush.msra.mxu0 %v1729
  %2416 = vmatpush.msra.mxu0 %v1725
  %2417 = vmatpush.msra.mxu0 %v1721
  %2418 = vmatpush.msra.mxu0 %v1717
  %2419 = vmatpush.msra.mxu0 %v1713
  %2420 = vmatpush.msra.mxu0 %v1709
  %2421 = vmatpush.msra.mxu0 %v1705
  %2422 = vmatpush.msra.mxu0 %v1701
  %2423 = vmatpush.msra.mxu0 %v1697
  %2424 = vmatpush.msra.mxu0 %v1693
  %2425 = vmatmul.f32.gmra.mxu0 %v2282
  %v2426 = vpop.f32.mrf.mxu0
  %v2427 = vadd.f32 0.0, %v2426
  %2428 = vdwg.mxu0
  %2429 = vmatpush.msra.mxu0 %v1817
  %2430 = vmatpush.msra.mxu0 %v1813
  %2431 = vmatpush.msra.mxu0 %v1809
  %2432 = vmatpush.msra.mxu0 %v1805
  %2433 = vmatpush.msra.mxu0 %v1801
  %2434 = vmatpush.msra.mxu0 %v1797
  %2435 = vmatpush.msra.mxu0 %v1793
  %2436 = vmatpush.msra.mxu0 %v1789
  %2437 = vmatpush.msra.mxu0 %v1785
  %2438 = vmatpush.msra.mxu0 %v1781
  %2439 = vmatpush.msra.mxu0 %v1777
  %2440 = vmatpush.msra.mxu0 %v1773
  %2441 = vmatpush.msra.mxu0 %v1769
  %2442 = vmatpush.msra.mxu0 %v1765
  %2443 = vmatpush.msra.mxu0 %v1761
  %2444 = vmatpush.msra.mxu0 %v1757
  %2445 = vmatmul.f32.gmra.mxu0 %v2294
  %v2446 = vpop.f32.mrf.mxu0
  %v2447 = vadd.f32 %v2427, %v2446
  %2448 = vdwg.mxu0
  %2449 = vmatpush.msra.mxu0 %v1881
  %2450 = vmatpush.msra.mxu0 %v1877
  %2451 = vmatpush.msra.mxu0 %v1873
  %2452 = vmatpush.msra.mxu0 %v1869
  %2453 = vmatpush.msra.mxu0 %v1865
  %2454 = vmatpush.msra.mxu0 %v1861
  %2455 = vmatpush.msra.mxu0 %v1857
  %2456 = vmatpush.msra.mxu0 %v1853
  %2457 = vmatpush.msra.mxu0 %v1849
  %2458 = vmatpush.msra.mxu0 %v1845
  %2459 = vmatpush.msra.mxu0 %v1841
  %2460 = vmatpush.msra.mxu0 %v1837
  %2461 = vmatpush.msra.mxu0 %v1833
  %2462 = vmatpush.msra.mxu0 %v1829
  %2463 = vmatpush.msra.mxu0 %v1825
  %2464 = vmatpush.msra.mxu0 %v1821
  %2465 = vmatmul.f32.gmra.mxu0 %v2306
  %v2466 = vpop.f32.mrf.mxu0
  %v2467 = vadd.f32 %v2447, %v2466
  %2468 = vdwg.mxu0
  %2469 = vmatpush.msra.mxu0 0.0
  %2470 = vmatpush.msra.mxu0 0.0
  %2471 = vmatpush.msra.mxu0 0.0
  %2472 = vmatpush.msra.mxu0 0.0
  %2473 = vmatpush.msra.mxu0 0.0
  %2474 = vmatpush.msra.mxu0 0.0
  %2475 = vmatpush.msra.mxu0 0.0
  %2476 = vmatpush.msra.mxu0 0.0
  %2477 = vmatpush.msra.mxu0 %v1913
  %2478 = vmatpush.msra.mxu0 %v1909
  %2479 = vmatpush.msra.mxu0 %v1905
  %2480 = vmatpush.msra.mxu0 %v1901
  %2481 = vmatpush.msra.mxu0 %v1897
  %2482 = vmatpush.msra.mxu0 %v1893
  %2483 = vmatpush.msra.mxu0 %v1889
  %2484 = vmatpush.msra.mxu0 %v1885
  %2485 = vmatmul.f32.gmra.mxu0 %v2327
  %v2486 = vpop.f32.mrf.mxu0
  %v2487 = vadd.f32 %v2467, %v2486
  %2488 = vdwg.mxu0
  %2489 = vmatpush.msra.mxu0 %v1754
  %2490 = vmatpush.msra.mxu0 %v1750
  %2491 = vmatpush.msra.mxu0 %v1746
  %2492 = vmatpush.msra.mxu0 %v1742
  %2493 = vmatpush.msra.mxu0 %v1738
  %2494 = vmatpush.msra.mxu0 %v1734
  %2495 = vmatpush.msra.mxu0 %v1730
  %2496 = vmatpush.msra.mxu0 %v1726
  %2497 = vmatpush.msra.mxu0 %v1722
  %2498 = vmatpush.msra.mxu0 %v1718
  %2499 = vmatpush.msra.mxu0 %v1714
  %2500 = vmatpush.msra.mxu0 %v1710
  %2501 = vmatpush.msra.mxu0 %v1706
  %2502 = vmatpush.msra.mxu0 %v1702
  %2503 = vmatpush.msra.mxu0 %v1698
  %2504 = vmatpush.msra.mxu0 %v1694
  %2505 = vmatmul.f32.gmra.mxu0 %v2282
  %v2506 = vpop.f32.mrf.mxu0
  %v2507 = vadd.f32 0.0, %v2506
  %2508 = vdwg.mxu0
  %2509 = vmatpush.msra.mxu0 %v1818
  %2510 = vmatpush.msra.mxu0 %v1814
  %2511 = vmatpush.msra.mxu0 %v1810
  %2512 = vmatpush.msra.mxu0 %v1806
  %2513 = vmatpush.msra.mxu0 %v1802
  %2514 = vmatpush.msra.mxu0 %v1798
  %2515 = vmatpush.msra.mxu0 %v1794
  %2516 = vmatpush.msra.mxu0 %v1790
  %2517 = vmatpush.msra.mxu0 %v1786
  %2518 = vmatpush.msra.mxu0 %v1782
  %2519 = vmatpush.msra.mxu0 %v1778
  %2520 = vmatpush.msra.mxu0 %v1774
  %2521 = vmatpush.msra.mxu0 %v1770
  %2522 = vmatpush.msra.mxu0 %v1766
  %2523 = vmatpush.msra.mxu0 %v1762
  %2524 = vmatpush.msra.mxu0 %v1758
  %2525 = vmatmul.f32.gmra.mxu0 %v2294
  %v2526 = vpop.f32.mrf.mxu0
  %v2527 = vadd.f32 %v2507, %v2526
  %2528 = vdwg.mxu0
  %2529 = vmatpush.msra.mxu0 %v1882
  %2530 = vmatpush.msra.mxu0 %v1878
  %2531 = vmatpush.msra.mxu0 %v1874
  %2532 = vmatpush.msra.mxu0 %v1870
  %2533 = vmatpush.msra.mxu0 %v1866
  %2534 = vmatpush.msra.mxu0 %v1862
  %2535 = vmatpush.msra.mxu0 %v1858
  %2536 = vmatpush.msra.mxu0 %v1854
  %2537 = vmatpush.msra.mxu0 %v1850
  %2538 = vmatpush.msra.mxu0 %v1846
  %2539 = vmatpush.msra.mxu0 %v1842
  %2540 = vmatpush.msra.mxu0 %v1838
  %2541 = vmatpush.msra.mxu0 %v1834
  %2542 = vmatpush.msra.mxu0 %v1830
  %2543 = vmatpush.msra.mxu0 %v1826
  %2544 = vmatpush.msra.mxu0 %v1822
  %2545 = vmatmul.f32.gmra.mxu0 %v2306
  %v2546 = vpop.f32.mrf.mxu0
  %v2547 = vadd.f32 %v2527, %v2546
  %2548 = vdwg.mxu0
  %2549 = vmatpush.msra.mxu0 0.0
  %2550 = vmatpush.msra.mxu0 0.0
  %2551 = vmatpush.msra.mxu0 0.0
  %2552 = vmatpush.msra.mxu0 0.0
  %2553 = vmatpush.msra.mxu0 0.0
  %2554 = vmatpush.msra.mxu0 0.0
  %2555 = vmatpush.msra.mxu0 0.0
  %2556 = vmatpush.msra.mxu0 0.0
  %2557 = vmatpush.msra.mxu0 %v1914
  %2558 = vmatpush.msra.mxu0 %v1910
  %2559 = vmatpush.msra.mxu0 %v1906
  %2560 = vmatpush.msra.mxu0 %v1902
  %2561 = vmatpush.msra.mxu0 %v1898
  %2562 = vmatpush.msra.mxu0 %v1894
  %2563 = vmatpush.msra.mxu0 %v1890
  %2564 = vmatpush.msra.mxu0 %v1886
  %2565 = vmatmul.f32.gmra.mxu0 %v2327
  %v2566 = vpop.f32.mrf.mxu0
  %v2567 = vadd.f32 %v2547, %v2566
  %2568 = vdwg.mxu0
  %2569 = vmatpush.msra.mxu0 %v1755
  %2570 = vmatpush.msra.mxu0 %v1751
  %2571 = vmatpush.msra.mxu0 %v1747
  %2572 = vmatpush.msra.mxu0 %v1743
  %2573 = vmatpush.msra.mxu0 %v1739
  %2574 = vmatpush.msra.mxu0 %v1735
  %2575 = vmatpush.msra.mxu0 %v1731
  %2576 = vmatpush.msra.mxu0 %v1727
  %2577 = vmatpush.msra.mxu0 %v1723
  %2578 = vmatpush.msra.mxu0 %v1719
  %2579 = vmatpush.msra.mxu0 %v1715
  %2580 = vmatpush.msra.mxu0 %v1711
  %2581 = vmatpush.msra.mxu0 %v1707
  %2582 = vmatpush.msra.mxu0 %v1703
  %2583 = vmatpush.msra.mxu0 %v1699
  %2584 = vmatpush.msra.mxu0 %v1695
  %2585 = vmatmul.f32.gmra.mxu0 %v2282
  %v2586 = vpop.f32.mrf.mxu0
  %v2587 = vadd.f32 0.0, %v2586
  %2588 = vdwg.mxu0
  %2589 = vmatpush.msra.mxu0 %v1819
  %2590 = vmatpush.msra.mxu0 %v1815
  %2591 = vmatpush.msra.mxu0 %v1811
  %2592 = vmatpush.msra.mxu0 %v1807
  %2593 = vmatpush.msra.mxu0 %v1803
  %2594 = vmatpush.msra.mxu0 %v1799
  %2595 = vmatpush.msra.mxu0 %v1795
  %2596 = vmatpush.msra.mxu0 %v1791
  %2597 = vmatpush.msra.mxu0 %v1787
  %2598 = vmatpush.msra.mxu0 %v1783
  %2599 = vmatpush.msra.mxu0 %v1779
  %2600 = vmatpush.msra.mxu0 %v1775
  %2601 = vmatpush.msra.mxu0 %v1771
  %2602 = vmatpush.msra.mxu0 %v1767
  %2603 = vmatpush.msra.mxu0 %v1763
  %2604 = vmatpush.msra.mxu0 %v1759
  %2605 = vmatmul.f32.gmra.mxu0 %v2294
  %v2606 = vpop.f32.mrf.mxu0
  %v2607 = vadd.f32 %v2587, %v2606
  %2608 = vdwg.mxu0
  %2609 = vmatpush.msra.mxu0 %v1883
  %2610 = vmatpush.msra.mxu0 %v1879
  %2611 = vmatpush.msra.mxu0 %v1875
  %2612 = vmatpush.msra.mxu0 %v1871
  %2613 = vmatpush.msra.mxu0 %v1867
  %2614 = vmatpush.msra.mxu0 %v1863
  %2615 = vmatpush.msra.mxu0 %v1859
  %2616 = vmatpush.msra.mxu0 %v1855
  %2617 = vmatpush.msra.mxu0 %v1851
  %2618 = vmatpush.msra.mxu0 %v1847
  %2619 = vmatpush.msra.mxu0 %v1843
  %2620 = vmatpush.msra.mxu0 %v1839
  %2621 = vmatpush.msra.mxu0 %v1835
  %2622 = vmatpush.msra.mxu0 %v1831
  %2623 = vmatpush.msra.mxu0 %v1827
  %2624 = vmatpush.msra.mxu0 %v1823
  %2625 = vmatmul.f32.gmra.mxu0 %v2306
  %v2626 = vpop.f32.mrf.mxu0
  %v2627 = vadd.f32 %v2607, %v2626
  %2628 = vdwg.mxu0
  %2629 = vmatpush.msra.mxu0 0.0
  %2630 = vmatpush.msra.mxu0 0.0
  %2631 = vmatpush.msra.mxu0 0.0
  %2632 = vmatpush.msra.mxu0 0.0
  %2633 = vmatpush.msra.mxu0 0.0
  %2634 = vmatpush.msra.mxu0 0.0
  %2635 = vmatpush.msra.mxu0 0.0
  %2636 = vmatpush.msra.mxu0 0.0
  %2637 = vmatpush.msra.mxu0 %v1915
  %2638 = vmatpush.msra.mxu0 %v1911
  %2639 = vmatpush.msra.mxu0 %v1907
  %2640 = vmatpush.msra.mxu0 %v1903
  %2641 = vmatpush.msra.mxu0 %v1899
  %2642 = vmatpush.msra.mxu0 %v1895
  %2643 = vmatpush.msra.mxu0 %v1891
  %2644 = vmatpush.msra.mxu0 %v1887
  %2645 = vmatmul.f32.gmra.mxu0 %v2327
  %v2646 = vpop.f32.mrf.mxu0
  %v2647 = vadd.f32 %v2627, %v2646
  %2648 = vdwg.mxu0
  %v2649 = vmul.f32 %v2407, 0.0006377551
  %v2650 = vmul.f32 %v2487, 0.0006377551
  %v2651 = vmul.f32 %v2567, 0.0006377551
  %v2652 = vmul.f32 %v2647, 0.0006377551
  %v2653 = vmul.f32 %v2239, %v2239
  %v2654 = vmul.f32 %v2240, %v2240
  %v2655 = vmul.f32 %v2241, %v2241
  %v2656 = vmul.f32 %v2242, %v2242
  %v2657 = vsub.f32 %v2649, %v2653
  %v2658 = vsub.f32 %v2650, %v2654
  %v2659 = vsub.f32 %v2651, %v2655
  %v2660 = vsub.f32 %v2652, %v2656
  %v2661 = vperm.slane %v2239, 0
  %v2662 = vperm.slane %v2240, 0
  %v2663 = vperm.slane %v2241, 0
  %v2664 = vperm.slane %v2242, 0
  %v2665 = vsub.f32 %v1608, %v2661
  %v2666 = vsub.f32 %v1609, %v2662
  %v2667 = vsub.f32 %v1610, %v2663
  %v2668 = vsub.f32 %v1611, %v2664
  %v2669 = vsub.f32 %v1612, %v2661
  %v2670 = vsub.f32 %v1613, %v2662
  %v2671 = vsub.f32 %v1614, %v2663
  %v2672 = vsub.f32 %v1615, %v2664
  %v2673 = vsub.f32 %v1616, %v2661
  %v2674 = vsub.f32 %v1617, %v2662
  %v2675 = vsub.f32 %v1618, %v2663
  %v2676 = vsub.f32 %v1619, %v2664
  %v2677 = vsub.f32 %v1620, %v2661
  %v2678 = vsub.f32 %v1621, %v2662
  %v2679 = vsub.f32 %v1622, %v2663
  %v2680 = vsub.f32 %v1623, %v2664
  %v2681 = vsub.f32 %v1624, %v2661
  %v2682 = vsub.f32 %v1625, %v2662
  %v2683 = vsub.f32 %v1626, %v2663
  %v2684 = vsub.f32 %v1627, %v2664
  %v2685 = vsub.f32 %v1628, %v2661
  %v2686 = vsub.f32 %v1629, %v2662
  %v2687 = vsub.f32 %v1630, %v2663
  %v2688 = vsub.f32 %v1631, %v2664
  %v2689 = vsub.f32 %v1632, %v2661
  %v2690 = vsub.f32 %v1633, %v2662
  %v2691 = vsub.f32 %v1634, %v2663
  %v2692 = vsub.f32 %v1635, %v2664
  %v2693 = vadd.f32 %v2657, 1e-05
  %v2694 = vadd.f32 %v2658, 1e-05
  %v2695 = vadd.f32 %v2659, 1e-05
  %v2696 = vadd.f32 %v2660, 1e-05
  %v2697 = vrsqrt.pop %v2693
  %v2698 = vmul.f32 %v2697, %v2693
  %v2699 = vmul.f32 %v2698, %v2697
  %v2700 = vmul.f32 0.5, %v2699
  %v2701 = vsub.f32 1.5, %v2700
  %v2702 = vmul.f32 %v2697, %v2701
  %vm2703 = vweird.f32 %v2693
  %vm2704 = vweird.f32 %v2697
  %vm2705 = vmor %vm2703, %vm2704
  %v2706 = vsel %vm2705, %v2697, %v2702
  %v2707 = vrsqrt.pop %v2694
  %v2708 = vmul.f32 %v2707, %v2694
  %v2709 = vmul.f32 %v2708, %v2707
  %v2710 = vmul.f32 0.5, %v2709
  %v2711 = vsub.f32 1.5, %v2710
  %v2712 = vmul.f32 %v2707, %v2711
  %vm2713 = vweird.f32 %v2694
  %vm2714 = vweird.f32 %v2707
  %vm2715 = vmor %vm2713, %vm2714
  %v2716 = vsel %vm2715, %v2707, %v2712
  %v2717 = vrsqrt.pop %v2695
  %v2718 = vmul.f32 %v2717, %v2695
  %v2719 = vmul.f32 %v2718, %v2717
  %v2720 = vmul.f32 0.5, %v2719
  %v2721 = vsub.f32 1.5, %v2720
  %v2722 = vmul.f32 %v2717, %v2721
  %vm2723 = vweird.f32 %v2695
  %vm2724 = vweird.f32 %v2717
  %vm2725 = vmor %vm2723, %vm2724
  %v2726 = vsel %vm2725, %v2717, %v2722
  %v2727 = vrsqrt.pop %v2696
  %v2728 = vmul.f32 %v2727, %v2696
  %v2729 = vmul.f32 %v2728, %v2727
  %v2730 = vmul.f32 0.5, %v2729
  %v2731 = vsub.f32 1.5, %v2730
  %v2732 = vmul.f32 %v2727, %v2731
  %vm2733 = vweird.f32 %v2696
  %vm2734 = vweird.f32 %v2727
  %vm2735 = vmor %vm2733, %vm2734
  %v2736 = vsel %vm2735, %v2727, %v2732
  %v2737 = vperm.slane %v2706, 0
  %v2738 = vperm.slane %v2716, 0
  %v2739 = vperm.slane %v2726, 0
  %v2740 = vperm.slane %v2736, 0
  %v2741 = vmul.f32 %v2665, %v2737
  %v2742 = vmul.f32 %v2666, %v2738
  %v2743 = vmul.f32 %v2667, %v2739
  %v2744 = vmul.f32 %v2668, %v2740
  %v2745 = vmul.f32 %v2669, %v2737
  %v2746 = vmul.f32 %v2670, %v2738
  %v2747 = vmul.f32 %v2671, %v2739
  %v2748 = vmul.f32 %v2672, %v2740
  %v2749 = vmul.f32 %v2673, %v2737
  %v2750 = vmul.f32 %v2674, %v2738
  %v2751 = vmul.f32 %v2675, %v2739
  %v2752 = vmul.f32 %v2676, %v2740
  %v2753 = vmul.f32 %v2677, %v2737
  %v2754 = vmul.f32 %v2678, %v2738
  %v2755 = vmul.f32 %v2679, %v2739
  %v2756 = vmul.f32 %v2680, %v2740
  %v2757 = vmul.f32 %v2681, %v2737
  %v2758 = vmul.f32 %v2682, %v2738
  %v2759 = vmul.f32 %v2683, %v2739
  %v2760 = vmul.f32 %v2684, %v2740
  %v2761 = vmul.f32 %v2685, %v2737
  %v2762 = vmul.f32 %v2686, %v2738
  %v2763 = vmul.f32 %v2687, %v2739
  %v2764 = vmul.f32 %v2688, %v2740
  %v2765 = vmul.f32 %v2689, %v2737
  %v2766 = vmul.f32 %v2690, %v2738
  %v2767 = vmul.f32 %v2691, %v2739
  %v2768 = vmul.f32 %v2692, %v2740
  %v2769 = vld [vmem:[%s5] sm:$0xf]
  %v2771 = vperm.slane %v2769, 0
  %v2772 = vperm.slane %v2769, 1
  %v2773 = vperm.slane %v2769, 2
  %v2774 = vperm.slane %v2769, 3
  %v2779 = vmul.f32 %v2741, %v2771
  %v2780 = vmul.f32 %v2742, %v2772
  %v2781 = vmul.f32 %v2743, %v2773
  %v2782 = vmul.f32 %v2744, %v2774
  %v2783 = vmul.f32 %v2745, %v2771
  %v2784 = vmul.f32 %v2746, %v2772
  %v2785 = vmul.f32 %v2747, %v2773
  %v2786 = vmul.f32 %v2748, %v2774
  %v2787 = vmul.f32 %v2749, %v2771
  %v2788 = vmul.f32 %v2750, %v2772
  %v2789 = vmul.f32 %v2751, %v2773
  %v2790 = vmul.f32 %v2752, %v2774
  %v2791 = vmul.f32 %v2753, %v2771
  %v2792 = vmul.f32 %v2754, %v2772
  %v2793 = vmul.f32 %v2755, %v2773
  %v2794 = vmul.f32 %v2756, %v2774
  %v2795 = vmul.f32 %v2757, %v2771
  %v2796 = vmul.f32 %v2758, %v2772
  %v2797 = vmul.f32 %v2759, %v2773
  %v2798 = vmul.f32 %v2760, %v2774
  %v2799 = vmul.f32 %v2761, %v2771
  %v2800 = vmul.f32 %v2762, %v2772
  %v2801 = vmul.f32 %v2763, %v2773
  %v2802 = vmul.f32 %v2764, %v2774
  %v2803 = vmul.f32 %v2765, %v2771
  %v2804 = vmul.f32 %v2766, %v2772
  %v2805 = vmul.f32 %v2767, %v2773
  %v2806 = vmul.f32 %v2768, %v2774
  %v2807 = vld [vmem:[%s6] sm:$0xf]
  %v2809 = vperm.slane %v2807, 0
  %v2810 = vperm.slane %v2807, 1
  %v2811 = vperm.slane %v2807, 2
  %v2812 = vperm.slane %v2807, 3
  %v2817 = vadd.f32 %v2779, %v2809
  %v2818 = vadd.f32 %v2780, %v2810
  %v2819 = vadd.f32 %v2781, %v2811
  %v2820 = vadd.f32 %v2782, %v2812
  %v2821 = vadd.f32 %v2783, %v2809
  %v2822 = vadd.f32 %v2784, %v2810
  %v2823 = vadd.f32 %v2785, %v2811
  %v2824 = vadd.f32 %v2786, %v2812
  %v2825 = vadd.f32 %v2787, %v2809
  %v2826 = vadd.f32 %v2788, %v2810
  %v2827 = vadd.f32 %v2789, %v2811
  %v2828 = vadd.f32 %v2790, %v2812
  %v2829 = vadd.f32 %v2791, %v2809
  %v2830 = vadd.f32 %v2792, %v2810
  %v2831 = vadd.f32 %v2793, %v2811
  %v2832 = vadd.f32 %v2794, %v2812
  %v2833 = vadd.f32 %v2795, %v2809
  %v2834 = vadd.f32 %v2796, %v2810
  %v2835 = vadd.f32 %v2797, %v2811
  %v2836 = vadd.f32 %v2798, %v2812
  %v2837 = vadd.f32 %v2799, %v2809
  %v2838 = vadd.f32 %v2800, %v2810
  %v2839 = vadd.f32 %v2801, %v2811
  %v2840 = vadd.f32 %v2802, %v2812
  %v2841 = vadd.f32 %v2803, %v2809
  %v2842 = vadd.f32 %v2804, %v2810
  %v2843 = vadd.f32 %v2805, %v2811
  %v2844 = vadd.f32 %v2806, %v2812
  %v2845 = vmax.f32 %v2817, 0.0
  %v2846 = vmax.f32 %v2818, 0.0
  %v2847 = vmax.f32 %v2819, 0.0
  %v2848 = vmax.f32 %v2820, 0.0
  %v2849 = vmax.f32 %v2821, 0.0
  %v2850 = vmax.f32 %v2822, 0.0
  %v2851 = vmax.f32 %v2823, 0.0
  %v2852 = vmax.f32 %v2824, 0.0
  %v2853 = vmax.f32 %v2825, 0.0
  %v2854 = vmax.f32 %v2826, 0.0
  %v2855 = vmax.f32 %v2827, 0.0
  %v2856 = vmax.f32 %v2828, 0.0
  %v2857 = vmax.f32 %v2829, 0.0
  %v2858 = vmax.f32 %v2830, 0.0
  %v2859 = vmax.f32 %v2831, 0.0
  %v2860 = vmax.f32 %v2832, 0.0
  %v2861 = vmax.f32 %v2833, 0.0
  %v2862 = vmax.f32 %v2834, 0.0
  %v2863 = vmax.f32 %v2835, 0.0
  %v2864 = vmax.f32 %v2836, 0.0
  %v2865 = vmax.f32 %v2837, 0.0
  %v2866 = vmax.f32 %v2838, 0.0
  %v2867 = vmax.f32 %v2839, 0.0
  %v2868 = vmax.f32 %v2840, 0.0
  %v2869 = vmax.f32 %v2841, 0.0
  %v2870 = vmax.f32 %v2842, 0.0
  %v2871 = vmax.f32 %v2843, 0.0
  %v2872 = vmax.f32 %v2844, 0.0
  %2873 = vmatpush.msra.mxu0 0.0
  %2874 = vmatpush.msra.mxu0 0.0
  %2875 = vmatpush.msra.mxu0 0.0
  %2876 = vmatpush.msra.mxu0 0.0
  %2877 = vmatpush.msra.mxu0 0.0
  %2878 = vmatpush.msra.mxu0 0.0
  %2879 = vmatpush.msra.mxu0 0.0
  %2880 = vmatpush.msra.mxu0 0.0
  %2881 = vmatpush.msra.mxu0 0.0
  %2882 = vmatpush.msra.mxu0 %v2869
  %2883 = vmatpush.msra.mxu0 %v2865
  %2884 = vmatpush.msra.mxu0 %v2861
  %2885 = vmatpush.msra.mxu0 %v2857
  %2886 = vmatpush.msra.mxu0 %v2853
  %2887 = vmatpush.msra.mxu0 %v2849
  %2888 = vmatpush.msra.mxu0 %v2845
  %2889 = vmatmul.f32.gmra.mxu0 %v65
  %v2890 = vpop.f32.mrf.mxu0
  %v2891 = vadd.f32 0.0, %v2890
  %2892 = vmatmul.f32.gmra.mxu0 %v68
  %v2893 = vpop.f32.mrf.mxu0
  %v2894 = vadd.f32 0.0, %v2893
  %2895 = vmatmul.f32.gmra.mxu0 %v71
  %v2896 = vpop.f32.mrf.mxu0
  %v2897 = vadd.f32 0.0, %v2896
  %2898 = vmatmul.f32.gmra.mxu0 %v74
  %v2899 = vpop.f32.mrf.mxu0
  %v2900 = vadd.f32 0.0, %v2899
  %2901 = vmatmul.f32.gmra.mxu0 %v77
  %v2902 = vpop.f32.mrf.mxu0
  %v2903 = vadd.f32 0.0, %v2902
  %2904 = vmatmul.f32.gmra.mxu0 %v80
  %v2905 = vpop.f32.mrf.mxu0
  %v2906 = vadd.f32 0.0, %v2905
  %2907 = vmatmul.f32.gmra.mxu0 %v83
  %v2908 = vpop.f32.mrf.mxu0
  %v2909 = vadd.f32 0.0, %v2908
  %2910 = vdwg.mxu0
  %2911 = vmatpush.msra.mxu0 0.0
  %2912 = vmatpush.msra.mxu0 0.0
  %2913 = vmatpush.msra.mxu0 0.0
  %2914 = vmatpush.msra.mxu0 0.0
  %2915 = vmatpush.msra.mxu0 0.0
  %2916 = vmatpush.msra.mxu0 0.0
  %2917 = vmatpush.msra.mxu0 0.0
  %2918 = vmatpush.msra.mxu0 0.0
  %2919 = vmatpush.msra.mxu0 0.0
  %2920 = vmatpush.msra.mxu0 %v2870
  %2921 = vmatpush.msra.mxu0 %v2866
  %2922 = vmatpush.msra.mxu0 %v2862
  %2923 = vmatpush.msra.mxu0 %v2858
  %2924 = vmatpush.msra.mxu0 %v2854
  %2925 = vmatpush.msra.mxu0 %v2850
  %2926 = vmatpush.msra.mxu0 %v2846
  %2927 = vmatmul.f32.gmra.mxu0 %v65
  %v2928 = vpop.f32.mrf.mxu0
  %v2929 = vadd.f32 0.0, %v2928
  %2930 = vmatmul.f32.gmra.mxu0 %v68
  %v2931 = vpop.f32.mrf.mxu0
  %v2932 = vadd.f32 0.0, %v2931
  %2933 = vmatmul.f32.gmra.mxu0 %v71
  %v2934 = vpop.f32.mrf.mxu0
  %v2935 = vadd.f32 0.0, %v2934
  %2936 = vmatmul.f32.gmra.mxu0 %v74
  %v2937 = vpop.f32.mrf.mxu0
  %v2938 = vadd.f32 0.0, %v2937
  %2939 = vmatmul.f32.gmra.mxu0 %v77
  %v2940 = vpop.f32.mrf.mxu0
  %v2941 = vadd.f32 0.0, %v2940
  %2942 = vmatmul.f32.gmra.mxu0 %v80
  %v2943 = vpop.f32.mrf.mxu0
  %v2944 = vadd.f32 0.0, %v2943
  %2945 = vmatmul.f32.gmra.mxu0 %v83
  %v2946 = vpop.f32.mrf.mxu0
  %v2947 = vadd.f32 0.0, %v2946
  %2948 = vdwg.mxu0
  %2949 = vmatpush.msra.mxu0 0.0
  %2950 = vmatpush.msra.mxu0 0.0
  %2951 = vmatpush.msra.mxu0 0.0
  %2952 = vmatpush.msra.mxu0 0.0
  %2953 = vmatpush.msra.mxu0 0.0
  %2954 = vmatpush.msra.mxu0 0.0
  %2955 = vmatpush.msra.mxu0 0.0
  %2956 = vmatpush.msra.mxu0 0.0
  %2957 = vmatpush.msra.mxu0 0.0
  %2958 = vmatpush.msra.mxu0 %v2871
  %2959 = vmatpush.msra.mxu0 %v2867
  %2960 = vmatpush.msra.mxu0 %v2863
  %2961 = vmatpush.msra.mxu0 %v2859
  %2962 = vmatpush.msra.mxu0 %v2855
  %2963 = vmatpush.msra.mxu0 %v2851
  %2964 = vmatpush.msra.mxu0 %v2847
  %2965 = vmatmul.f32.gmra.mxu0 %v65
  %v2966 = vpop.f32.mrf.mxu0
  %v2967 = vadd.f32 0.0, %v2966
  %2968 = vmatmul.f32.gmra.mxu0 %v68
  %v2969 = vpop.f32.mrf.mxu0
  %v2970 = vadd.f32 0.0, %v2969
  %2971 = vmatmul.f32.gmra.mxu0 %v71
  %v2972 = vpop.f32.mrf.mxu0
  %v2973 = vadd.f32 0.0, %v2972
  %2974 = vmatmul.f32.gmra.mxu0 %v74
  %v2975 = vpop.f32.mrf.mxu0
  %v2976 = vadd.f32 0.0, %v2975
  %2977 = vmatmul.f32.gmra.mxu0 %v77
  %v2978 = vpop.f32.mrf.mxu0
  %v2979 = vadd.f32 0.0, %v2978
  %2980 = vmatmul.f32.gmra.mxu0 %v80
  %v2981 = vpop.f32.mrf.mxu0
  %v2982 = vadd.f32 0.0, %v2981
  %2983 = vmatmul.f32.gmra.mxu0 %v83
  %v2984 = vpop.f32.mrf.mxu0
  %v2985 = vadd.f32 0.0, %v2984
  %2986 = vdwg.mxu0
  %2987 = vmatpush.msra.mxu0 0.0
  %2988 = vmatpush.msra.mxu0 0.0
  %2989 = vmatpush.msra.mxu0 0.0
  %2990 = vmatpush.msra.mxu0 0.0
  %2991 = vmatpush.msra.mxu0 0.0
  %2992 = vmatpush.msra.mxu0 0.0
  %2993 = vmatpush.msra.mxu0 0.0
  %2994 = vmatpush.msra.mxu0 0.0
  %2995 = vmatpush.msra.mxu0 0.0
  %2996 = vmatpush.msra.mxu0 %v2872
  %2997 = vmatpush.msra.mxu0 %v2868
  %2998 = vmatpush.msra.mxu0 %v2864
  %2999 = vmatpush.msra.mxu0 %v2860
  %3000 = vmatpush.msra.mxu0 %v2856
  %3001 = vmatpush.msra.mxu0 %v2852
  %3002 = vmatpush.msra.mxu0 %v2848
  %3003 = vmatmul.f32.gmra.mxu0 %v65
  %v3004 = vpop.f32.mrf.mxu0
  %v3005 = vadd.f32 0.0, %v3004
  %3006 = vmatmul.f32.gmra.mxu0 %v68
  %v3007 = vpop.f32.mrf.mxu0
  %v3008 = vadd.f32 0.0, %v3007
  %3009 = vmatmul.f32.gmra.mxu0 %v71
  %v3010 = vpop.f32.mrf.mxu0
  %v3011 = vadd.f32 0.0, %v3010
  %3012 = vmatmul.f32.gmra.mxu0 %v74
  %v3013 = vpop.f32.mrf.mxu0
  %v3014 = vadd.f32 0.0, %v3013
  %3015 = vmatmul.f32.gmra.mxu0 %v77
  %v3016 = vpop.f32.mrf.mxu0
  %v3017 = vadd.f32 0.0, %v3016
  %3018 = vmatmul.f32.gmra.mxu0 %v80
  %v3019 = vpop.f32.mrf.mxu0
  %v3020 = vadd.f32 0.0, %v3019
  %3021 = vmatmul.f32.gmra.mxu0 %v83
  %v3022 = vpop.f32.mrf.mxu0
  %v3023 = vadd.f32 0.0, %v3022
  %3024 = vdwg.mxu0
  %3025 = vmatpush.msra.mxu0 0.0
  %3026 = vmatpush.msra.mxu0 0.0
  %3027 = vmatpush.msra.mxu0 0.0
  %3028 = vmatpush.msra.mxu0 0.0
  %3029 = vmatpush.msra.mxu0 0.0
  %3030 = vmatpush.msra.mxu0 0.0
  %3031 = vmatpush.msra.mxu0 0.0
  %3032 = vmatpush.msra.mxu0 0.0
  %3033 = vmatpush.msra.mxu0 0.0
  %3034 = vmatpush.msra.mxu0 %v2869
  %3035 = vmatpush.msra.mxu0 %v2865
  %3036 = vmatpush.msra.mxu0 %v2861
  %3037 = vmatpush.msra.mxu0 %v2857
  %3038 = vmatpush.msra.mxu0 %v2853
  %3039 = vmatpush.msra.mxu0 %v2849
  %3040 = vmatpush.msra.mxu0 %v2845
  %3041 = vmatmul.f32.gmra.mxu0 %v162
  %v3042 = vpop.f32.mrf.mxu0
  %v3043 = vadd.f32 0.0, %v3042
  %3044 = vmatmul.f32.gmra.mxu0 %v165
  %v3045 = vpop.f32.mrf.mxu0
  %v3046 = vadd.f32 0.0, %v3045
  %3047 = vmatmul.f32.gmra.mxu0 %v168
  %v3048 = vpop.f32.mrf.mxu0
  %v3049 = vadd.f32 0.0, %v3048
  %3050 = vmatmul.f32.gmra.mxu0 %v171
  %v3051 = vpop.f32.mrf.mxu0
  %v3052 = vadd.f32 0.0, %v3051
  %3053 = vmatmul.f32.gmra.mxu0 %v174
  %v3054 = vpop.f32.mrf.mxu0
  %v3055 = vadd.f32 0.0, %v3054
  %3056 = vmatmul.f32.gmra.mxu0 %v177
  %v3057 = vpop.f32.mrf.mxu0
  %v3058 = vadd.f32 0.0, %v3057
  %3059 = vmatmul.f32.gmra.mxu0 %v180
  %v3060 = vpop.f32.mrf.mxu0
  %v3061 = vadd.f32 0.0, %v3060
  %3062 = vdwg.mxu0
  %3063 = vmatpush.msra.mxu0 0.0
  %3064 = vmatpush.msra.mxu0 0.0
  %3065 = vmatpush.msra.mxu0 0.0
  %3066 = vmatpush.msra.mxu0 0.0
  %3067 = vmatpush.msra.mxu0 0.0
  %3068 = vmatpush.msra.mxu0 0.0
  %3069 = vmatpush.msra.mxu0 0.0
  %3070 = vmatpush.msra.mxu0 0.0
  %3071 = vmatpush.msra.mxu0 0.0
  %3072 = vmatpush.msra.mxu0 %v2870
  %3073 = vmatpush.msra.mxu0 %v2866
  %3074 = vmatpush.msra.mxu0 %v2862
  %3075 = vmatpush.msra.mxu0 %v2858
  %3076 = vmatpush.msra.mxu0 %v2854
  %3077 = vmatpush.msra.mxu0 %v2850
  %3078 = vmatpush.msra.mxu0 %v2846
  %3079 = vmatmul.f32.gmra.mxu0 %v162
  %v3080 = vpop.f32.mrf.mxu0
  %v3081 = vadd.f32 0.0, %v3080
  %3082 = vmatmul.f32.gmra.mxu0 %v165
  %v3083 = vpop.f32.mrf.mxu0
  %v3084 = vadd.f32 0.0, %v3083
  %3085 = vmatmul.f32.gmra.mxu0 %v168
  %v3086 = vpop.f32.mrf.mxu0
  %v3087 = vadd.f32 0.0, %v3086
  %3088 = vmatmul.f32.gmra.mxu0 %v171
  %v3089 = vpop.f32.mrf.mxu0
  %v3090 = vadd.f32 0.0, %v3089
  %3091 = vmatmul.f32.gmra.mxu0 %v174
  %v3092 = vpop.f32.mrf.mxu0
  %v3093 = vadd.f32 0.0, %v3092
  %3094 = vmatmul.f32.gmra.mxu0 %v177
  %v3095 = vpop.f32.mrf.mxu0
  %v3096 = vadd.f32 0.0, %v3095
  %3097 = vmatmul.f32.gmra.mxu0 %v180
  %v3098 = vpop.f32.mrf.mxu0
  %v3099 = vadd.f32 0.0, %v3098
  %3100 = vdwg.mxu0
  %3101 = vmatpush.msra.mxu0 0.0
  %3102 = vmatpush.msra.mxu0 0.0
  %3103 = vmatpush.msra.mxu0 0.0
  %3104 = vmatpush.msra.mxu0 0.0
  %3105 = vmatpush.msra.mxu0 0.0
  %3106 = vmatpush.msra.mxu0 0.0
  %3107 = vmatpush.msra.mxu0 0.0
  %3108 = vmatpush.msra.mxu0 0.0
  %3109 = vmatpush.msra.mxu0 0.0
  %3110 = vmatpush.msra.mxu0 %v2871
  %3111 = vmatpush.msra.mxu0 %v2867
  %3112 = vmatpush.msra.mxu0 %v2863
  %3113 = vmatpush.msra.mxu0 %v2859
  %3114 = vmatpush.msra.mxu0 %v2855
  %3115 = vmatpush.msra.mxu0 %v2851
  %3116 = vmatpush.msra.mxu0 %v2847
  %3117 = vmatmul.f32.gmra.mxu0 %v162
  %v3118 = vpop.f32.mrf.mxu0
  %v3119 = vadd.f32 0.0, %v3118
  %3120 = vmatmul.f32.gmra.mxu0 %v165
  %v3121 = vpop.f32.mrf.mxu0
  %v3122 = vadd.f32 0.0, %v3121
  %3123 = vmatmul.f32.gmra.mxu0 %v168
  %v3124 = vpop.f32.mrf.mxu0
  %v3125 = vadd.f32 0.0, %v3124
  %3126 = vmatmul.f32.gmra.mxu0 %v171
  %v3127 = vpop.f32.mrf.mxu0
  %v3128 = vadd.f32 0.0, %v3127
  %3129 = vmatmul.f32.gmra.mxu0 %v174
  %v3130 = vpop.f32.mrf.mxu0
  %v3131 = vadd.f32 0.0, %v3130
  %3132 = vmatmul.f32.gmra.mxu0 %v177
  %v3133 = vpop.f32.mrf.mxu0
  %v3134 = vadd.f32 0.0, %v3133
  %3135 = vmatmul.f32.gmra.mxu0 %v180
  %v3136 = vpop.f32.mrf.mxu0
  %v3137 = vadd.f32 0.0, %v3136
  %3138 = vdwg.mxu0
  %3139 = vmatpush.msra.mxu0 0.0
  %3140 = vmatpush.msra.mxu0 0.0
  %3141 = vmatpush.msra.mxu0 0.0
  %3142 = vmatpush.msra.mxu0 0.0
  %3143 = vmatpush.msra.mxu0 0.0
  %3144 = vmatpush.msra.mxu0 0.0
  %3145 = vmatpush.msra.mxu0 0.0
  %3146 = vmatpush.msra.mxu0 0.0
  %3147 = vmatpush.msra.mxu0 0.0
  %3148 = vmatpush.msra.mxu0 %v2872
  %3149 = vmatpush.msra.mxu0 %v2868
  %3150 = vmatpush.msra.mxu0 %v2864
  %3151 = vmatpush.msra.mxu0 %v2860
  %3152 = vmatpush.msra.mxu0 %v2856
  %3153 = vmatpush.msra.mxu0 %v2852
  %3154 = vmatpush.msra.mxu0 %v2848
  %3155 = vmatmul.f32.gmra.mxu0 %v162
  %v3156 = vpop.f32.mrf.mxu0
  %v3157 = vadd.f32 0.0, %v3156
  %3158 = vmatmul.f32.gmra.mxu0 %v165
  %v3159 = vpop.f32.mrf.mxu0
  %v3160 = vadd.f32 0.0, %v3159
  %3161 = vmatmul.f32.gmra.mxu0 %v168
  %v3162 = vpop.f32.mrf.mxu0
  %v3163 = vadd.f32 0.0, %v3162
  %3164 = vmatmul.f32.gmra.mxu0 %v171
  %v3165 = vpop.f32.mrf.mxu0
  %v3166 = vadd.f32 0.0, %v3165
  %3167 = vmatmul.f32.gmra.mxu0 %v174
  %v3168 = vpop.f32.mrf.mxu0
  %v3169 = vadd.f32 0.0, %v3168
  %3170 = vmatmul.f32.gmra.mxu0 %v177
  %v3171 = vpop.f32.mrf.mxu0
  %v3172 = vadd.f32 0.0, %v3171
  %3173 = vmatmul.f32.gmra.mxu0 %v180
  %v3174 = vpop.f32.mrf.mxu0
  %v3175 = vadd.f32 0.0, %v3174
  %3176 = vdwg.mxu0
  %v3177 = vld [vmem:[%s8] sm:$0xff]
  %v3178 = vld [vmem:[%s8 + $0x8] sm:$0xff]
  %v3179 = vld [vmem:[%s8 + $0x10] sm:$0xff]
  %v3180 = vld [vmem:[%s8 + $0x18] sm:$0xff]
  %v3181 = vld [vmem:[%s8 + $0x20] sm:$0xff]
  %v3182 = vld [vmem:[%s8 + $0x28] sm:$0xff]
  %v3183 = vld [vmem:[%s8 + $0x30] sm:$0xff]
  %v3184 = vld [vmem:[%s8 + $0x38] sm:$0xff]
  %v3185 = vld [vmem:[%s8 + $0x40] sm:$0xff]
  %v3186 = vld [vmem:[%s8 + $0x48] sm:$0xff]
  %v3187 = vld [vmem:[%s8 + $0x50] sm:$0xff]
  %v3188 = vld [vmem:[%s8 + $0x58] sm:$0xff]
  %v3189 = vld [vmem:[%s8 + $0x60] sm:$0xff]
  %v3190 = vld [vmem:[%s8 + $0x68] sm:$0xff]
  %v3191 = vld [vmem:[%s8 + $0x70] sm:$0xff]
  %v3192 = vld [vmem:[%s8 + $0x78] sm:$0xff]
  %v3193 = vld [vmem:[%s8 + $0x80] sm:$0xff]
  %v3194 = vld [vmem:[%s8 + $0x88] sm:$0xff]
  %v3195 = vld [vmem:[%s8 + $0x90] sm:$0xff]
  %v3196 = vld [vmem:[%s8 + $0x98] sm:$0xff]
  %v3197 = vld [vmem:[%s8 + $0xa0] sm:$0xff]
  %v3198 = vld [vmem:[%s8 + $0xa8] sm:$0xff]
  %v3199 = vld [vmem:[%s8 + $0xb0] sm:$0xff]
  %v3200 = vld [vmem:[%s8 + $0xb8] sm:$0xff]
  %v3201 = vld [vmem:[%s8 + $0xc0] sm:$0xff]
  %v3202 = vld [vmem:[%s8 + $0xc8] sm:$0xff]
  %v3203 = vld [vmem:[%s8 + $0xd0] sm:$0xff]
  %v3204 = vld [vmem:[%s8 + $0xd8] sm:$0xff]
  %v3205 = vld [vmem:[%s8 + $0xe0] sm:$0xff]
  %v3206 = vld [vmem:[%s8 + $0xe8] sm:$0xff]
  %v3207 = vld [vmem:[%s8 + $0xf0] sm:$0xff]
  %v3208 = vld [vmem:[%s8 + $0xf8] sm:$0xff]
  %v3209 = vld [vmem:[%s8 + $0x100] sm:$0xff]
  %v3210 = vld [vmem:[%s8 + $0x108] sm:$0xff]
  %v3211 = vld [vmem:[%s8 + $0x110] sm:$0xff]
  %v3212 = vld [vmem:[%s8 + $0x118] sm:$0xff]
  %v3213 = vld [vmem:[%s8 + $0x120] sm:$0xff]
  %v3214 = vld [vmem:[%s8 + $0x128] sm:$0xff]
  %v3215 = vld [vmem:[%s8 + $0x130] sm:$0xff]
  %v3216 = vld [vmem:[%s8 + $0x138] sm:$0xff]
  %v3217 = vld [vmem:[%s8 + $0x140] sm:$0xff]
  %v3218 = vld [vmem:[%s8 + $0x148] sm:$0xff]
  %v3219 = vld [vmem:[%s8 + $0x150] sm:$0xff]
  %v3220 = vld [vmem:[%s8 + $0x158] sm:$0xff]
  %v3221 = vld [vmem:[%s8 + $0x160] sm:$0xff]
  %v3222 = vld [vmem:[%s8 + $0x168] sm:$0xff]
  %v3223 = vld [vmem:[%s8 + $0x170] sm:$0xff]
  %v3224 = vld [vmem:[%s8 + $0x178] sm:$0xff]
  %v3225 = vld [vmem:[%s8 + $0x180] sm:$0xff]
  %v3226 = vld [vmem:[%s8 + $0x188] sm:$0xff]
  %v3227 = vld [vmem:[%s8 + $0x190] sm:$0xff]
  %v3228 = vld [vmem:[%s8 + $0x198] sm:$0xff]
  %v3229 = vld [vmem:[%s8 + $0x1a0] sm:$0xff]
  %v3230 = vld [vmem:[%s8 + $0x1a8] sm:$0xff]
  %v3231 = vld [vmem:[%s8 + $0x1b0] sm:$0xff]
  %v3232 = vld [vmem:[%s8 + $0x1b8] sm:$0xff]
  %v3233 = vld [vmem:[%s8 + $0x1c0] sm:$0xff]
  %v3234 = vld [vmem:[%s8 + $0x1c8] sm:$0xff]
  %v3235 = vld [vmem:[%s8 + $0x1d0] sm:$0xff]
  %v3236 = vld [vmem:[%s8 + $0x1d8] sm:$0xff]
  %v3237 = vld [vmem:[%s8 + $0x1e0] sm:$0xff]
  %v3238 = vld [vmem:[%s8 + $0x1e8] sm:$0xff]
  %v3239 = vld [vmem:[%s8 + $0x1f0] sm:$0xff]
  %v3240 = vld [vmem:[%s8 + $0x1f8] sm:$0xff]
  %v3241 = vld [vmem:[%s8 + $0x200] sm:$0xff]
  %v3242 = vld [vmem:[%s8 + $0x208] sm:$0xff]
  %v3243 = vld [vmem:[%s8 + $0x210] sm:$0xff]
  %v3244 = vld [vmem:[%s8 + $0x218] sm:$0xff]
  %v3245 = vld [vmem:[%s8 + $0x220] sm:$0xff]
  %v3246 = vld [vmem:[%s8 + $0x228] sm:$0xff]
  %v3247 = vld [vmem:[%s8 + $0x230] sm:$0xff]
  %v3248 = vld [vmem:[%s8 + $0x238] sm:$0xff]
  %v3249 = vld [vmem:[%s8 + $0x240] sm:$0xff]
  %v3250 = vld [vmem:[%s8 + $0x248] sm:$0xff]
  %v3251 = vld [vmem:[%s8 + $0x250] sm:$0xff]
  %v3252 = vld [vmem:[%s8 + $0x258] sm:$0xff]
  %v3253 = vld [vmem:[%s8 + $0x260] sm:$0xff]
  %v3254 = vld [vmem:[%s8 + $0x268] sm:$0xff]
  %v3255 = vld [vmem:[%s8 + $0x270] sm:$0xff]
  %v3256 = vld [vmem:[%s8 + $0x278] sm:$0xff]
  %v3257 = vld [vmem:[%s8 + $0x280] sm:$0xff]
  %v3258 = vld [vmem:[%s8 + $0x288] sm:$0xff]
  %v3259 = vld [vmem:[%s8 + $0x290] sm:$0xff]
  %v3260 = vld [vmem:[%s8 + $0x298] sm:$0xff]
  %v3261 = vld [vmem:[%s8 + $0x2a0] sm:$0xff]
  %v3262 = vld [vmem:[%s8 + $0x2a8] sm:$0xff]
  %v3263 = vld [vmem:[%s8 + $0x2b0] sm:$0xff]
  %v3264 = vld [vmem:[%s8 + $0x2b8] sm:$0xff]
  %v3265 = vld [vmem:[%s8 + $0x2c0] sm:$0xff]
  %v3266 = vld [vmem:[%s8 + $0x2c8] sm:$0xff]
  %v3267 = vld [vmem:[%s8 + $0x2d0] sm:$0xff]
  %v3268 = vld [vmem:[%s8 + $0x2d8] sm:$0xff]
  %v3269 = vld [vmem:[%s8 + $0x2e0] sm:$0xff]
  %v3270 = vld [vmem:[%s8 + $0x2e8] sm:$0xff]
  %v3271 = vld [vmem:[%s8 + $0x2f0] sm:$0xff]
  %v3272 = vld [vmem:[%s8 + $0x2f8] sm:$0xff]
  %v3273 = vld [vmem:[%s8 + $0x300] sm:$0xff]
  %v3274 = vld [vmem:[%s8 + $0x308] sm:$0xff]
  %v3275 = vld [vmem:[%s8 + $0x310] sm:$0xff]
  %v3276 = vld [vmem:[%s8 + $0x318] sm:$0xff]
  %v3277 = vld [vmem:[%s8 + $0x320] sm:$0xff]
  %v3278 = vld [vmem:[%s8 + $0x328] sm:$0xff]
  %v3279 = vld [vmem:[%s8 + $0x330] sm:$0xff]
  %v3280 = vld [vmem:[%s8 + $0x338] sm:$0xff]
  %v3281 = vld [vmem:[%s8 + $0x340] sm:$0xff]
  %v3282 = vld [vmem:[%s8 + $0x348] sm:$0xff]
  %v3283 = vld [vmem:[%s8 + $0x350] sm:$0xff]
  %v3284 = vld [vmem:[%s8 + $0x358] sm:$0xff]
  %v3285 = vld [vmem:[%s8 + $0x360] sm:$0xff]
  %v3286 = vld [vmem:[%s8 + $0x368] sm:$0xff]
  %v3287 = vld [vmem:[%s8 + $0x370] sm:$0xff]
  %v3288 = vld [vmem:[%s8 + $0x378] sm:$0xff]
  %v3289 = vld [vmem:[%s8 + $0x380] sm:$0xff]
  %v3290 = vld [vmem:[%s8 + $0x388] sm:$0xff]
  %v3291 = vld [vmem:[%s8 + $0x390] sm:$0xff]
  %v3292 = vld [vmem:[%s8 + $0x398] sm:$0xff]
  %v3293 = vld [vmem:[%s8 + $0x3a0] sm:$0xff]
  %v3294 = vld [vmem:[%s8 + $0x3a8] sm:$0xff]
  %v3295 = vld [vmem:[%s8 + $0x3b0] sm:$0xff]
  %v3296 = vld [vmem:[%s8 + $0x3b8] sm:$0xff]
  %v3297 = vld [vmem:[%s8 + $0x3c0] sm:$0xff]
  %v3298 = vld [vmem:[%s8 + $0x3c8] sm:$0xff]
  %v3299 = vld [vmem:[%s8 + $0x3d0] sm:$0xff]
  %v3300 = vld [vmem:[%s8 + $0x3d8] sm:$0xff]
  %v3301 = vld [vmem:[%s8 + $0x3e0] sm:$0xff]
  %v3302 = vld [vmem:[%s8 + $0x3e8] sm:$0xff]
  %v3303 = vld [vmem:[%s8 + $0x3f0] sm:$0xff]
  %v3304 = vld [vmem:[%s8 + $0x3f8] sm:$0xff]
  %v3305 = vld [vmem:[%s8 + $0x400] sm:$0xff]
  %v3306 = vld [vmem:[%s8 + $0x408] sm:$0xff]
  %v3307 = vld [vmem:[%s8 + $0x410] sm:$0xff]
  %v3308 = vld [vmem:[%s8 + $0x418] sm:$0xff]
  %v3309 = vld [vmem:[%s8 + $0x420] sm:$0xff]
  %v3310 = vld [vmem:[%s8 + $0x428] sm:$0xff]
  %v3311 = vld [vmem:[%s8 + $0x430] sm:$0xff]
  %v3312 = vld [vmem:[%s8 + $0x438] sm:$0xff]
  %v3313 = vld [vmem:[%s8 + $0x440] sm:$0xff]
  %v3314 = vld [vmem:[%s8 + $0x448] sm:$0xff]
  %v3315 = vld [vmem:[%s8 + $0x450] sm:$0xff]
  %v3316 = vld [vmem:[%s8 + $0x458] sm:$0xff]
  %v3317 = vld [vmem:[%s8 + $0x460] sm:$0xff]
  %v3318 = vld [vmem:[%s8 + $0x468] sm:$0xff]
  %v3319 = vld [vmem:[%s8 + $0x470] sm:$0xff]
  %v3320 = vld [vmem:[%s8 + $0x478] sm:$0xff]
  %v3321 = vld [vmem:[%s8 + $0x480] sm:$0xff]
  %v3322 = vld [vmem:[%s8 + $0x488] sm:$0xff]
  %v3323 = vld [vmem:[%s8 + $0x490] sm:$0xff]
  %v3324 = vld [vmem:[%s8 + $0x498] sm:$0xff]
  %v3325 = vld [vmem:[%s8 + $0x4a0] sm:$0xff]
  %v3326 = vld [vmem:[%s8 + $0x4a8] sm:$0xff]
  %v3327 = vld [vmem:[%s8 + $0x4b0] sm:$0xff]
  %v3328 = vld [vmem:[%s8 + $0x4b8] sm:$0xff]
  %v3329 = vld [vmem:[%s8 + $0x4c0] sm:$0xff]
  %v3330 = vld [vmem:[%s8 + $0x4c8] sm:$0xff]
  %v3331 = vld [vmem:[%s8 + $0x4d0] sm:$0xff]
  %v3332 = vld [vmem:[%s8 + $0x4d8] sm:$0xff]
  %v3333 = vld [vmem:[%s8 + $0x4e0] sm:$0xff]
  %v3334 = vld [vmem:[%s8 + $0x4e8] sm:$0xff]
  %v3335 = vld [vmem:[%s8 + $0x4f0] sm:$0xff]
  %v3336 = vld [vmem:[%s8 + $0x4f8] sm:$0xff]
  %v3337 = vld [vmem:[%s8 + $0x500] sm:$0xff]
  %v3338 = vld [vmem:[%s8 + $0x508] sm:$0xff]
  %v3339 = vld [vmem:[%s8 + $0x510] sm:$0xff]
  %v3340 = vld [vmem:[%s8 + $0x518] sm:$0xff]
  %v3341 = vld [vmem:[%s8 + $0x520] sm:$0xff]
  %v3342 = vld [vmem:[%s8 + $0x528] sm:$0xff]
  %v3343 = vld [vmem:[%s8 + $0x530] sm:$0xff]
  %v3344 = vld [vmem:[%s8 + $0x538] sm:$0xff]
  %v3346 = vsel %vm1672, %v2848, 0
  %v3349 = vsel %vm1672, %v2852, 0
  %v3352 = vsel %vm1672, %v2856, 0
  %v3355 = vsel %vm1672, %v2860, 0
  %v3358 = vsel %vm1672, %v2864, 0
  %v3361 = vsel %vm1672, %v2868, 0
  %v3364 = vsel %vm1672, %v2872, 0
  %3366 = vmatpush.msra.mxu0 %v3248
  %3367 = vmatpush.msra.mxu0 %v3247
  %3368 = vmatpush.msra.mxu0 %v3246
  %3369 = vmatpush.msra.mxu0 %v3245
  %3370 = vmatpush.msra.mxu0 %v3244
  %3371 = vmatpush.msra.mxu0 %v3243
  %3372 = vmatpush.msra.mxu0 %v3242
  %3373 = vmatpush.msra.mxu0 %v3241
  %3374 = vmatpush.msra.mxu0 %v3240
  %3375 = vmatpush.msra.mxu0 %v3239
  %3376 = vmatpush.msra.mxu0 %v3238
  %3377 = vmatpush.msra.mxu0 %v3237
  %3378 = vmatpush.msra.mxu0 %v3236
  %3379 = vmatpush.msra.mxu0 %v3235
  %3380 = vmatpush.msra.mxu0 %v3234
  %3381 = vmatpush.msra.mxu0 %v3233
  %3382 = vmatmul.f32.gmra.mxu0 %v2845
  %v3383 = vpop.f32.mrf.mxu0
  %v3384 = vadd.f32 0.0, %v3383
  %3385 = vmatmul.f32.gmra.mxu0 %v2849
  %v3386 = vpop.f32.mrf.mxu0
  %v3387 = vadd.f32 0.0, %v3386
  %3388 = vmatmul.f32.gmra.mxu0 %v2853
  %v3389 = vpop.f32.mrf.mxu0
  %v3390 = vadd.f32 0.0, %v3389
  %3391 = vmatmul.f32.gmra.mxu0 %v2857
  %v3392 = vpop.f32.mrf.mxu0
  %v3393 = vadd.f32 0.0, %v3392
  %3394 = vmatmul.f32.gmra.mxu0 %v2861
  %v3395 = vpop.f32.mrf.mxu0
  %v3396 = vadd.f32 0.0, %v3395
  %3397 = vmatmul.f32.gmra.mxu0 %v2865
  %v3398 = vpop.f32.mrf.mxu0
  %v3399 = vadd.f32 0.0, %v3398
  %3400 = vmatmul.f32.gmra.mxu0 %v2869
  %v3401 = vpop.f32.mrf.mxu0
  %v3402 = vadd.f32 0.0, %v3401
  %3403 = vdwg.mxu0
  %3404 = vmatpush.msra.mxu0 %v3264
  %3405 = vmatpush.msra.mxu0 %v3263
  %3406 = vmatpush.msra.mxu0 %v3262
  %3407 = vmatpush.msra.mxu0 %v3261
  %3408 = vmatpush.msra.mxu0 %v3260
  %3409 = vmatpush.msra.mxu0 %v3259
  %3410 = vmatpush.msra.mxu0 %v3258
  %3411 = vmatpush.msra.mxu0 %v3257
  %3412 = vmatpush.msra.mxu0 %v3256
  %3413 = vmatpush.msra.mxu0 %v3255
  %3414 = vmatpush.msra.mxu0 %v3254
  %3415 = vmatpush.msra.mxu0 %v3253
  %3416 = vmatpush.msra.mxu0 %v3252
  %3417 = vmatpush.msra.mxu0 %v3251
  %3418 = vmatpush.msra.mxu0 %v3250
  %3419 = vmatpush.msra.mxu0 %v3249
  %3420 = vmatmul.f32.gmra.mxu0 %v2846
  %v3421 = vpop.f32.mrf.mxu0
  %v3422 = vadd.f32 %v3384, %v3421
  %3423 = vmatmul.f32.gmra.mxu0 %v2850
  %v3424 = vpop.f32.mrf.mxu0
  %v3425 = vadd.f32 %v3387, %v3424
  %3426 = vmatmul.f32.gmra.mxu0 %v2854
  %v3427 = vpop.f32.mrf.mxu0
  %v3428 = vadd.f32 %v3390, %v3427
  %3429 = vmatmul.f32.gmra.mxu0 %v2858
  %v3430 = vpop.f32.mrf.mxu0
  %v3431 = vadd.f32 %v3393, %v3430
  %3432 = vmatmul.f32.gmra.mxu0 %v2862
  %v3433 = vpop.f32.mrf.mxu0
  %v3434 = vadd.f32 %v3396, %v3433
  %3435 = vmatmul.f32.gmra.mxu0 %v2866
  %v3436 = vpop.f32.mrf.mxu0
  %v3437 = vadd.f32 %v3399, %v3436
  %3438 = vmatmul.f32.gmra.mxu0 %v2870
  %v3439 = vpop.f32.mrf.mxu0
  %v3440 = vadd.f32 %v3402, %v3439
  %3441 = vdwg.mxu0
  %3442 = vmatpush.msra.mxu0 %v3280
  %3443 = vmatpush.msra.mxu0 %v3279
  %3444 = vmatpush.msra.mxu0 %v3278
  %3445 = vmatpush.msra.mxu0 %v3277
  %3446 = vmatpush.msra.mxu0 %v3276
  %3447 = vmatpush.msra.mxu0 %v3275
  %3448 = vmatpush.msra.mxu0 %v3274
  %3449 = vmatpush.msra.mxu0 %v3273
  %3450 = vmatpush.msra.mxu0 %v3272
  %3451 = vmatpush.msra.mxu0 %v3271
  %3452 = vmatpush.msra.mxu0 %v3270
  %3453 = vmatpush.msra.mxu0 %v3269
  %3454 = vmatpush.msra.mxu0 %v3268
  %3455 = vmatpush.msra.mxu0 %v3267
  %3456 = vmatpush.msra.mxu0 %v3266
  %3457 = vmatpush.msra.mxu0 %v3265
  %3458 = vmatmul.f32.gmra.mxu0 %v2847
  %v3459 = vpop.f32.mrf.mxu0
  %v3460 = vadd.f32 %v3422, %v3459
  %3461 = vmatmul.f32.gmra.mxu0 %v2851
  %v3462 = vpop.f32.mrf.mxu0
  %v3463 = vadd.f32 %v3425, %v3462
  %3464 = vmatmul.f32.gmra.mxu0 %v2855
  %v3465 = vpop.f32.mrf.mxu0
  %v3466 = vadd.f32 %v3428, %v3465
  %3467 = vmatmul.f32.gmra.mxu0 %v2859
  %v3468 = vpop.f32.mrf.mxu0
  %v3469 = vadd.f32 %v3431, %v3468
  %3470 = vmatmul.f32.gmra.mxu0 %v2863
  %v3471 = vpop.f32.mrf.mxu0
  %v3472 = vadd.f32 %v3434, %v3471
  %3473 = vmatmul.f32.gmra.mxu0 %v2867
  %v3474 = vpop.f32.mrf.mxu0
  %v3475 = vadd.f32 %v3437, %v3474
  %3476 = vmatmul.f32.gmra.mxu0 %v2871
  %v3477 = vpop.f32.mrf.mxu0
  %v3478 = vadd.f32 %v3440, %v3477
  %3479 = vdwg.mxu0
  %3480 = vmatpush.msra.mxu0 0.0
  %3481 = vmatpush.msra.mxu0 0.0
  %3482 = vmatpush.msra.mxu0 0.0
  %3483 = vmatpush.msra.mxu0 0.0
  %3484 = vmatpush.msra.mxu0 0.0
  %3485 = vmatpush.msra.mxu0 0.0
  %3486 = vmatpush.msra.mxu0 0.0
  %3487 = vmatpush.msra.mxu0 0.0
  %3488 = vmatpush.msra.mxu0 %v3288
  %3489 = vmatpush.msra.mxu0 %v3287
  %3490 = vmatpush.msra.mxu0 %v3286
  %3491 = vmatpush.msra.mxu0 %v3285
  %3492 = vmatpush.msra.mxu0 %v3284
  %3493 = vmatpush.msra.mxu0 %v3283
  %3494 = vmatpush.msra.mxu0 %v3282
  %3495 = vmatpush.msra.mxu0 %v3281
  %3496 = vmatmul.f32.gmra.mxu0 %v3346
  %v3497 = vpop.f32.mrf.mxu0
  %v3498 = vadd.f32 %v3460, %v3497
  %3499 = vmatmul.f32.gmra.mxu0 %v3349
  %v3500 = vpop.f32.mrf.mxu0
  %v3501 = vadd.f32 %v3463, %v3500
  %3502 = vmatmul.f32.gmra.mxu0 %v3352
  %v3503 = vpop.f32.mrf.mxu0
  %v3504 = vadd.f32 %v3466, %v3503
  %3505 = vmatmul.f32.gmra.mxu0 %v3355
  %v3506 = vpop.f32.mrf.mxu0
  %v3507 = vadd.f32 %v3469, %v3506
  %3508 = vmatmul.f32.gmra.mxu0 %v3358
  %v3509 = vpop.f32.mrf.mxu0
  %v3510 = vadd.f32 %v3472, %v3509
  %3511 = vmatmul.f32.gmra.mxu0 %v3361
  %v3512 = vpop.f32.mrf.mxu0
  %v3513 = vadd.f32 %v3475, %v3512
  %3514 = vmatmul.f32.gmra.mxu0 %v3364
  %v3515 = vpop.f32.mrf.mxu0
  %v3516 = vadd.f32 %v3478, %v3515
  %3517 = vdwg.mxu0
  %v3519 = vsel %vm1672, %v3005, 0
  %v3522 = vsel %vm1672, %v3008, 0
  %v3525 = vsel %vm1672, %v3011, 0
  %v3528 = vsel %vm1672, %v3014, 0
  %v3531 = vsel %vm1672, %v3017, 0
  %v3534 = vsel %vm1672, %v3020, 0
  %v3537 = vsel %vm1672, %v3023, 0
  %3539 = vmatpush.msra.mxu0 %v3192
  %3540 = vmatpush.msra.mxu0 %v3191
  %3541 = vmatpush.msra.mxu0 %v3190
  %3542 = vmatpush.msra.mxu0 %v3189
  %3543 = vmatpush.msra.mxu0 %v3188
  %3544 = vmatpush.msra.mxu0 %v3187
  %3545 = vmatpush.msra.mxu0 %v3186
  %3546 = vmatpush.msra.mxu0 %v3185
  %3547 = vmatpush.msra.mxu0 %v3184
  %3548 = vmatpush.msra.mxu0 %v3183
  %3549 = vmatpush.msra.mxu0 %v3182
  %3550 = vmatpush.msra.mxu0 %v3181
  %3551 = vmatpush.msra.mxu0 %v3180
  %3552 = vmatpush.msra.mxu0 %v3179
  %3553 = vmatpush.msra.mxu0 %v3178
  %3554 = vmatpush.msra.mxu0 %v3177
  %3555 = vmatmul.f32.gmra.mxu0 %v2891
  %v3556 = vpop.f32.mrf.mxu0
  %v3557 = vadd.f32 %v3498, %v3556
  %3558 = vmatmul.f32.gmra.mxu0 %v2894
  %v3559 = vpop.f32.mrf.mxu0
  %v3560 = vadd.f32 %v3501, %v3559
  %3561 = vmatmul.f32.gmra.mxu0 %v2897
  %v3562 = vpop.f32.mrf.mxu0
  %v3563 = vadd.f32 %v3504, %v3562
  %3564 = vmatmul.f32.gmra.mxu0 %v2900
  %v3565 = vpop.f32.mrf.mxu0
  %v3566 = vadd.f32 %v3507, %v3565
  %3567 = vmatmul.f32.gmra.mxu0 %v2903
  %v3568 = vpop.f32.mrf.mxu0
  %v3569 = vadd.f32 %v3510, %v3568
  %3570 = vmatmul.f32.gmra.mxu0 %v2906
  %v3571 = vpop.f32.mrf.mxu0
  %v3572 = vadd.f32 %v3513, %v3571
  %3573 = vmatmul.f32.gmra.mxu0 %v2909
  %v3574 = vpop.f32.mrf.mxu0
  %v3575 = vadd.f32 %v3516, %v3574
  %3576 = vdwg.mxu0
  %3577 = vmatpush.msra.mxu0 %v3208
  %3578 = vmatpush.msra.mxu0 %v3207
  %3579 = vmatpush.msra.mxu0 %v3206
  %3580 = vmatpush.msra.mxu0 %v3205
  %3581 = vmatpush.msra.mxu0 %v3204
  %3582 = vmatpush.msra.mxu0 %v3203
  %3583 = vmatpush.msra.mxu0 %v3202
  %3584 = vmatpush.msra.mxu0 %v3201
  %3585 = vmatpush.msra.mxu0 %v3200
  %3586 = vmatpush.msra.mxu0 %v3199
  %3587 = vmatpush.msra.mxu0 %v3198
  %3588 = vmatpush.msra.mxu0 %v3197
  %3589 = vmatpush.msra.mxu0 %v3196
  %3590 = vmatpush.msra.mxu0 %v3195
  %3591 = vmatpush.msra.mxu0 %v3194
  %3592 = vmatpush.msra.mxu0 %v3193
  %3593 = vmatmul.f32.gmra.mxu0 %v2929
  %v3594 = vpop.f32.mrf.mxu0
  %v3595 = vadd.f32 %v3557, %v3594
  %3596 = vmatmul.f32.gmra.mxu0 %v2932
  %v3597 = vpop.f32.mrf.mxu0
  %v3598 = vadd.f32 %v3560, %v3597
  %3599 = vmatmul.f32.gmra.mxu0 %v2935
  %v3600 = vpop.f32.mrf.mxu0
  %v3601 = vadd.f32 %v3563, %v3600
  %3602 = vmatmul.f32.gmra.mxu0 %v2938
  %v3603 = vpop.f32.mrf.mxu0
  %v3604 = vadd.f32 %v3566, %v3603
  %3605 = vmatmul.f32.gmra.mxu0 %v2941
  %v3606 = vpop.f32.mrf.mxu0
  %v3607 = vadd.f32 %v3569, %v3606
  %3608 = vmatmul.f32.gmra.mxu0 %v2944
  %v3609 = vpop.f32.mrf.mxu0
  %v3610 = vadd.f32 %v3572, %v3609
  %3611 = vmatmul.f32.gmra.mxu0 %v2947
  %v3612 = vpop.f32.mrf.mxu0
  %v3613 = vadd.f32 %v3575, %v3612
  %3614 = vdwg.mxu0
  %3615 = vmatpush.msra.mxu0 %v3224
  %3616 = vmatpush.msra.mxu0 %v3223
  %3617 = vmatpush.msra.mxu0 %v3222
  %3618 = vmatpush.msra.mxu0 %v3221
  %3619 = vmatpush.msra.mxu0 %v3220
  %3620 = vmatpush.msra.mxu0 %v3219
  %3621 = vmatpush.msra.mxu0 %v3218
  %3622 = vmatpush.msra.mxu0 %v3217
  %3623 = vmatpush.msra.mxu0 %v3216
  %3624 = vmatpush.msra.mxu0 %v3215
  %3625 = vmatpush.msra.mxu0 %v3214
  %3626 = vmatpush.msra.mxu0 %v3213
  %3627 = vmatpush.msra.mxu0 %v3212
  %3628 = vmatpush.msra.mxu0 %v3211
  %3629 = vmatpush.msra.mxu0 %v3210
  %3630 = vmatpush.msra.mxu0 %v3209
  %3631 = vmatmul.f32.gmra.mxu0 %v2967
  %v3632 = vpop.f32.mrf.mxu0
  %v3633 = vadd.f32 %v3595, %v3632
  %3634 = vmatmul.f32.gmra.mxu0 %v2970
  %v3635 = vpop.f32.mrf.mxu0
  %v3636 = vadd.f32 %v3598, %v3635
  %3637 = vmatmul.f32.gmra.mxu0 %v2973
  %v3638 = vpop.f32.mrf.mxu0
  %v3639 = vadd.f32 %v3601, %v3638
  %3640 = vmatmul.f32.gmra.mxu0 %v2976
  %v3641 = vpop.f32.mrf.mxu0
  %v3642 = vadd.f32 %v3604, %v3641
  %3643 = vmatmul.f32.gmra.mxu0 %v2979
  %v3644 = vpop.f32.mrf.mxu0
  %v3645 = vadd.f32 %v3607, %v3644
  %3646 = vmatmul.f32.gmra.mxu0 %v2982
  %v3647 = vpop.f32.mrf.mxu0
  %v3648 = vadd.f32 %v3610, %v3647
  %3649 = vmatmul.f32.gmra.mxu0 %v2985
  %v3650 = vpop.f32.mrf.mxu0
  %v3651 = vadd.f32 %v3613, %v3650
  %3652 = vdwg.mxu0
  %3653 = vmatpush.msra.mxu0 0.0
  %3654 = vmatpush.msra.mxu0 0.0
  %3655 = vmatpush.msra.mxu0 0.0
  %3656 = vmatpush.msra.mxu0 0.0
  %3657 = vmatpush.msra.mxu0 0.0
  %3658 = vmatpush.msra.mxu0 0.0
  %3659 = vmatpush.msra.mxu0 0.0
  %3660 = vmatpush.msra.mxu0 0.0
  %3661 = vmatpush.msra.mxu0 %v3232
  %3662 = vmatpush.msra.mxu0 %v3231
  %3663 = vmatpush.msra.mxu0 %v3230
  %3664 = vmatpush.msra.mxu0 %v3229
  %3665 = vmatpush.msra.mxu0 %v3228
  %3666 = vmatpush.msra.mxu0 %v3227
  %3667 = vmatpush.msra.mxu0 %v3226
  %3668 = vmatpush.msra.mxu0 %v3225
  %3669 = vmatmul.f32.gmra.mxu0 %v3519
  %v3670 = vpop.f32.mrf.mxu0
  %v3671 = vadd.f32 %v3633, %v3670
  %3672 = vmatmul.f32.gmra.mxu0 %v3522
  %v3673 = vpop.f32.mrf.mxu0
  %v3674 = vadd.f32 %v3636, %v3673
  %3675 = vmatmul.f32.gmra.mxu0 %v3525
  %v3676 = vpop.f32.mrf.mxu0
  %v3677 = vadd.f32 %v3639, %v3676
  %3678 = vmatmul.f32.gmra.mxu0 %v3528
  %v3679 = vpop.f32.mrf.mxu0
  %v3680 = vadd.f32 %v3642, %v3679
  %3681 = vmatmul.f32.gmra.mxu0 %v3531
  %v3682 = vpop.f32.mrf.mxu0
  %v3683 = vadd.f32 %v3645, %v3682
  %3684 = vmatmul.f32.gmra.mxu0 %v3534
  %v3685 = vpop.f32.mrf.mxu0
  %v3686 = vadd.f32 %v3648, %v3685
  %3687 = vmatmul.f32.gmra.mxu0 %v3537
  %v3688 = vpop.f32.mrf.mxu0
  %v3689 = vadd.f32 %v3651, %v3688
  %3690 = vdwg.mxu0
  %v3692 = vsel %vm1672, %v3157, 0
  %v3695 = vsel %vm1672, %v3160, 0
  %v3698 = vsel %vm1672, %v3163, 0
  %v3701 = vsel %vm1672, %v3166, 0
  %v3704 = vsel %vm1672, %v3169, 0
  %v3707 = vsel %vm1672, %v3172, 0
  %v3710 = vsel %vm1672, %v3175, 0
  %3712 = vmatpush.msra.mxu0 %v3304
  %3713 = vmatpush.msra.mxu0 %v3303
  %3714 = vmatpush.msra.mxu0 %v3302
  %3715 = vmatpush.msra.mxu0 %v3301
  %3716 = vmatpush.msra.mxu0 %v3300
  %3717 = vmatpush.msra.mxu0 %v3299
  %3718 = vmatpush.msra.mxu0 %v3298
  %3719 = vmatpush.msra.mxu0 %v3297
  %3720 = vmatpush.msra.mxu0 %v3296
  %3721 = vmatpush.msra.mxu0 %v3295
  %3722 = vmatpush.msra.mxu0 %v3294
  %3723 = vmatpush.msra.mxu0 %v3293
  %3724 = vmatpush.msra.mxu0 %v3292
  %3725 = vmatpush.msra.mxu0 %v3291
  %3726 = vmatpush.msra.mxu0 %v3290
  %3727 = vmatpush.msra.mxu0 %v3289
  %3728 = vmatmul.f32.gmra.mxu0 %v3043
  %v3729 = vpop.f32.mrf.mxu0
  %v3730 = vadd.f32 0.0, %v3729
  %3731 = vmatmul.f32.gmra.mxu0 %v3046
  %v3732 = vpop.f32.mrf.mxu0
  %v3733 = vadd.f32 0.0, %v3732
  %3734 = vmatmul.f32.gmra.mxu0 %v3049
  %v3735 = vpop.f32.mrf.mxu0
  %v3736 = vadd.f32 0.0, %v3735
  %3737 = vmatmul.f32.gmra.mxu0 %v3052
  %v3738 = vpop.f32.mrf.mxu0
  %v3739 = vadd.f32 0.0, %v3738
  %3740 = vmatmul.f32.gmra.mxu0 %v3055
  %v3741 = vpop.f32.mrf.mxu0
  %v3742 = vadd.f32 0.0, %v3741
  %3743 = vmatmul.f32.gmra.mxu0 %v3058
  %v3744 = vpop.f32.mrf.mxu0
  %v3745 = vadd.f32 0.0, %v3744
  %3746 = vmatmul.f32.gmra.mxu0 %v3061
  %v3747 = vpop.f32.mrf.mxu0
  %v3748 = vadd.f32 0.0, %v3747
  %3749 = vdwg.mxu0
  %3750 = vmatpush.msra.mxu0 %v3320
  %3751 = vmatpush.msra.mxu0 %v3319
  %3752 = vmatpush.msra.mxu0 %v3318
  %3753 = vmatpush.msra.mxu0 %v3317
  %3754 = vmatpush.msra.mxu0 %v3316
  %3755 = vmatpush.msra.mxu0 %v3315
  %3756 = vmatpush.msra.mxu0 %v3314
  %3757 = vmatpush.msra.mxu0 %v3313
  %3758 = vmatpush.msra.mxu0 %v3312
  %3759 = vmatpush.msra.mxu0 %v3311
  %3760 = vmatpush.msra.mxu0 %v3310
  %3761 = vmatpush.msra.mxu0 %v3309
  %3762 = vmatpush.msra.mxu0 %v3308
  %3763 = vmatpush.msra.mxu0 %v3307
  %3764 = vmatpush.msra.mxu0 %v3306
  %3765 = vmatpush.msra.mxu0 %v3305
  %3766 = vmatmul.f32.gmra.mxu0 %v3081
  %v3767 = vpop.f32.mrf.mxu0
  %v3768 = vadd.f32 %v3730, %v3767
  %3769 = vmatmul.f32.gmra.mxu0 %v3084
  %v3770 = vpop.f32.mrf.mxu0
  %v3771 = vadd.f32 %v3733, %v3770
  %3772 = vmatmul.f32.gmra.mxu0 %v3087
  %v3773 = vpop.f32.mrf.mxu0
  %v3774 = vadd.f32 %v3736, %v3773
  %3775 = vmatmul.f32.gmra.mxu0 %v3090
  %v3776 = vpop.f32.mrf.mxu0
  %v3777 = vadd.f32 %v3739, %v3776
  %3778 = vmatmul.f32.gmra.mxu0 %v3093
  %v3779 = vpop.f32.mrf.mxu0
  %v3780 = vadd.f32 %v3742, %v3779
  %3781 = vmatmul.f32.gmra.mxu0 %v3096
  %v3782 = vpop.f32.mrf.mxu0
  %v3783 = vadd.f32 %v3745, %v3782
  %3784 = vmatmul.f32.gmra.mxu0 %v3099
  %v3785 = vpop.f32.mrf.mxu0
  %v3786 = vadd.f32 %v3748, %v3785
  %3787 = vdwg.mxu0
  %3788 = vmatpush.msra.mxu0 %v3336
  %3789 = vmatpush.msra.mxu0 %v3335
  %3790 = vmatpush.msra.mxu0 %v3334
  %3791 = vmatpush.msra.mxu0 %v3333
  %3792 = vmatpush.msra.mxu0 %v3332
  %3793 = vmatpush.msra.mxu0 %v3331
  %3794 = vmatpush.msra.mxu0 %v3330
  %3795 = vmatpush.msra.mxu0 %v3329
  %3796 = vmatpush.msra.mxu0 %v3328
  %3797 = vmatpush.msra.mxu0 %v3327
  %3798 = vmatpush.msra.mxu0 %v3326
  %3799 = vmatpush.msra.mxu0 %v3325
  %3800 = vmatpush.msra.mxu0 %v3324
  %3801 = vmatpush.msra.mxu0 %v3323
  %3802 = vmatpush.msra.mxu0 %v3322
  %3803 = vmatpush.msra.mxu0 %v3321
  %3804 = vmatmul.f32.gmra.mxu0 %v3119
  %v3805 = vpop.f32.mrf.mxu0
  %v3806 = vadd.f32 %v3768, %v3805
  %3807 = vmatmul.f32.gmra.mxu0 %v3122
  %v3808 = vpop.f32.mrf.mxu0
  %v3809 = vadd.f32 %v3771, %v3808
  %3810 = vmatmul.f32.gmra.mxu0 %v3125
  %v3811 = vpop.f32.mrf.mxu0
  %v3812 = vadd.f32 %v3774, %v3811
  %3813 = vmatmul.f32.gmra.mxu0 %v3128
  %v3814 = vpop.f32.mrf.mxu0
  %v3815 = vadd.f32 %v3777, %v3814
  %3816 = vmatmul.f32.gmra.mxu0 %v3131
  %v3817 = vpop.f32.mrf.mxu0
  %v3818 = vadd.f32 %v3780, %v3817
  %3819 = vmatmul.f32.gmra.mxu0 %v3134
  %v3820 = vpop.f32.mrf.mxu0
  %v3821 = vadd.f32 %v3783, %v3820
  %3822 = vmatmul.f32.gmra.mxu0 %v3137
  %v3823 = vpop.f32.mrf.mxu0
  %v3824 = vadd.f32 %v3786, %v3823
  %3825 = vdwg.mxu0
  %3826 = vmatpush.msra.mxu0 0.0
  %3827 = vmatpush.msra.mxu0 0.0
  %3828 = vmatpush.msra.mxu0 0.0
  %3829 = vmatpush.msra.mxu0 0.0
  %3830 = vmatpush.msra.mxu0 0.0
  %3831 = vmatpush.msra.mxu0 0.0
  %3832 = vmatpush.msra.mxu0 0.0
  %3833 = vmatpush.msra.mxu0 0.0
  %3834 = vmatpush.msra.mxu0 %v3344
  %3835 = vmatpush.msra.mxu0 %v3343
  %3836 = vmatpush.msra.mxu0 %v3342
  %3837 = vmatpush.msra.mxu0 %v3341
  %3838 = vmatpush.msra.mxu0 %v3340
  %3839 = vmatpush.msra.mxu0 %v3339
  %3840 = vmatpush.msra.mxu0 %v3338
  %3841 = vmatpush.msra.mxu0 %v3337
  %3842 = vmatmul.f32.gmra.mxu0 %v3692
  %v3843 = vpop.f32.mrf.mxu0
  %v3844 = vadd.f32 %v3806, %v3843
  %3845 = vmatmul.f32.gmra.mxu0 %v3695
  %v3846 = vpop.f32.mrf.mxu0
  %v3847 = vadd.f32 %v3809, %v3846
  %3848 = vmatmul.f32.gmra.mxu0 %v3698
  %v3849 = vpop.f32.mrf.mxu0
  %v3850 = vadd.f32 %v3812, %v3849
  %3851 = vmatmul.f32.gmra.mxu0 %v3701
  %v3852 = vpop.f32.mrf.mxu0
  %v3853 = vadd.f32 %v3815, %v3852
  %3854 = vmatmul.f32.gmra.mxu0 %v3704
  %v3855 = vpop.f32.mrf.mxu0
  %v3856 = vadd.f32 %v3818, %v3855
  %3857 = vmatmul.f32.gmra.mxu0 %v3707
  %v3858 = vpop.f32.mrf.mxu0
  %v3859 = vadd.f32 %v3821, %v3858
  %3860 = vmatmul.f32.gmra.mxu0 %v3710
  %v3861 = vpop.f32.mrf.mxu0
  %v3862 = vadd.f32 %v3824, %v3861
  %3863 = vdwg.mxu0
  %v3864 = vadd.f32 %v3671, %v3844
  %v3865 = vadd.f32 %v3674, %v3847
  %v3866 = vadd.f32 %v3677, %v3850
  %v3867 = vadd.f32 %v3680, %v3853
  %v3868 = vadd.f32 %v3683, %v3856
  %v3869 = vadd.f32 %v3686, %v3859
  %v3870 = vadd.f32 %v3689, %v3862
  %v3871 = vld [vmem:[%s9] sm:$0x1]
  %v3873 = vperm.slane %v3871, 0
  %v3875 = vadd.f32 %v3864, %v3873
  %v3876 = vadd.f32 %v3865, %v3873
  %v3877 = vadd.f32 %v3866, %v3873
  %v3878 = vadd.f32 %v3867, %v3873
  %v3879 = vadd.f32 %v3868, %v3873
  %v3880 = vadd.f32 %v3869, %v3873
  %v3881 = vadd.f32 %v3870, %v3873
  %v3882 = vxor.u32 %v3875, 2147483648
  %v3883 = vxor.u32 %v3876, 2147483648
  %v3884 = vxor.u32 %v3877, 2147483648
  %v3885 = vxor.u32 %v3878, 2147483648
  %v3886 = vxor.u32 %v3879, 2147483648
  %v3887 = vxor.u32 %v3880, 2147483648
  %v3888 = vxor.u32 %v3881, 2147483648
  %v3889 = vmul.f32 %v3882, 1.442695
  %v3890 = vpow.pop %v3889
  %v3891 = vmul.f32 %v3883, 1.442695
  %v3892 = vpow.pop %v3891
  %v3893 = vmul.f32 %v3884, 1.442695
  %v3894 = vpow.pop %v3893
  %v3895 = vmul.f32 %v3885, 1.442695
  %v3896 = vpow.pop %v3895
  %v3897 = vmul.f32 %v3886, 1.442695
  %v3898 = vpow.pop %v3897
  %v3899 = vmul.f32 %v3887, 1.442695
  %v3900 = vpow.pop %v3899
  %v3901 = vmul.f32 %v3888, 1.442695
  %v3902 = vpow.pop %v3901
  %v3903 = vadd.f32 %v3890, 1.0
  %v3904 = vadd.f32 %v3892, 1.0
  %v3905 = vadd.f32 %v3894, 1.0
  %v3906 = vadd.f32 %v3896, 1.0
  %v3907 = vadd.f32 %v3898, 1.0
  %v3908 = vadd.f32 %v3900, 1.0
  %v3909 = vadd.f32 %v3902, 1.0
  %v3910 = vrcp.pop %v3903
  %v3911 = vmul.f32 %v3903, %v3910
  %v3912 = vsub.f32 1.0, %v3911
  %v3913 = vmul.f32 %v3910, %v3912
  %v3914 = vadd.f32 %v3910, %v3913
  %vm3915 = vweird.f32 %v3903
  %vm3916 = vweird.f32 %v3910
  %vm3917 = vmor %vm3915, %vm3916
  %v3918 = vsel %vm3917, %v3910, %v3914
  %v3919 = vand.u32 2147483647, %v3903
  %vm3920 = vcmp.eq.f32.partialorder %v3919, 8.507059e+37
  %v3921 = vand.u32 %v3903, 2147483648
  %v3922 = vor.u32 1.1754944e-38, %v3921
  %v3923 = vsel %vm3920, %v3922, %v3918
  %v3924 = vmul.f32 1.0, %v3923
  %v3925 = vrcp.pop %v3904
  %v3926 = vmul.f32 %v3904, %v3925
  %v3927 = vsub.f32 1.0, %v3926
  %v3928 = vmul.f32 %v3925, %v3927
  %v3929 = vadd.f32 %v3925, %v3928
  %vm3930 = vweird.f32 %v3904
  %vm3931 = vweird.f32 %v3925
  %vm3932 = vmor %vm3930, %vm3931
  %v3933 = vsel %vm3932, %v3925, %v3929
  %v3934 = vand.u32 2147483647, %v3904
  %vm3935 = vcmp.eq.f32.partialorder %v3934, 8.507059e+37
  %v3936 = vand.u32 %v3904, 2147483648
  %v3937 = vor.u32 1.1754944e-38, %v3936
  %v3938 = vsel %vm3935, %v3937, %v3933
  %v3939 = vmul.f32 1.0, %v3938
  %v3940 = vrcp.pop %v3905
  %v3941 = vmul.f32 %v3905, %v3940
  %v3942 = vsub.f32 1.0, %v3941
  %v3943 = vmul.f32 %v3940, %v3942
  %v3944 = vadd.f32 %v3940, %v3943
  %vm3945 = vweird.f32 %v3905
  %vm3946 = vweird.f32 %v3940
  %vm3947 = vmor %vm3945, %vm3946
  %v3948 = vsel %vm3947, %v3940, %v3944
  %v3949 = vand.u32 2147483647, %v3905
  %vm3950 = vcmp.eq.f32.partialorder %v3949, 8.507059e+37
  %v3951 = vand.u32 %v3905, 2147483648
  %v3952 = vor.u32 1.1754944e-38, %v3951
  %v3953 = vsel %vm3950, %v3952, %v3948
  %v3954 = vmul.f32 1.0, %v3953
  %v3955 = vrcp.pop %v3906
  %v3956 = vmul.f32 %v3906, %v3955
  %v3957 = vsub.f32 1.0, %v3956
  %v3958 = vmul.f32 %v3955, %v3957
  %v3959 = vadd.f32 %v3955, %v3958
  %vm3960 = vweird.f32 %v3906
  %vm3961 = vweird.f32 %v3955
  %vm3962 = vmor %vm3960, %vm3961
  %v3963 = vsel %vm3962, %v3955, %v3959
  %v3964 = vand.u32 2147483647, %v3906
  %vm3965 = vcmp.eq.f32.partialorder %v3964, 8.507059e+37
  %v3966 = vand.u32 %v3906, 2147483648
  %v3967 = vor.u32 1.1754944e-38, %v3966
  %v3968 = vsel %vm3965, %v3967, %v3963
  %v3969 = vmul.f32 1.0, %v3968
  %v3970 = vrcp.pop %v3907
  %v3971 = vmul.f32 %v3907, %v3970
  %v3972 = vsub.f32 1.0, %v3971
  %v3973 = vmul.f32 %v3970, %v3972
  %v3974 = vadd.f32 %v3970, %v3973
  %vm3975 = vweird.f32 %v3907
  %vm3976 = vweird.f32 %v3970
  %vm3977 = vmor %vm3975, %vm3976
  %v3978 = vsel %vm3977, %v3970, %v3974
  %v3979 = vand.u32 2147483647, %v3907
  %vm3980 = vcmp.eq.f32.partialorder %v3979, 8.507059e+37
  %v3981 = vand.u32 %v3907, 2147483648
  %v3982 = vor.u32 1.1754944e-38, %v3981
  %v3983 = vsel %vm3980, %v3982, %v3978
  %v3984 = vmul.f32 1.0, %v3983
  %v3985 = vrcp.pop %v3908
  %v3986 = vmul.f32 %v3908, %v3985
  %v3987 = vsub.f32 1.0, %v3986
  %v3988 = vmul.f32 %v3985, %v3987
  %v3989 = vadd.f32 %v3985, %v3988
  %vm3990 = vweird.f32 %v3908
  %vm3991 = vweird.f32 %v3985
  %vm3992 = vmor %vm3990, %vm3991
  %v3993 = vsel %vm3992, %v3985, %v3989
  %v3994 = vand.u32 2147483647, %v3908
  %vm3995 = vcmp.eq.f32.partialorder %v3994, 8.507059e+37
  %v3996 = vand.u32 %v3908, 2147483648
  %v3997 = vor.u32 1.1754944e-38, %v3996
  %v3998 = vsel %vm3995, %v3997, %v3993
  %v3999 = vmul.f32 1.0, %v3998
  %v4000 = vrcp.pop %v3909
  %v4001 = vmul.f32 %v3909, %v4000
  %v4002 = vsub.f32 1.0, %v4001
  %v4003 = vmul.f32 %v4000, %v4002
  %v4004 = vadd.f32 %v4000, %v4003
  %vm4005 = vweird.f32 %v3909
  %vm4006 = vweird.f32 %v4000
  %vm4007 = vmor %vm4005, %vm4006
  %v4008 = vsel %vm4007, %v4000, %v4004
  %v4009 = vand.u32 2147483647, %v3909
  %vm4010 = vcmp.eq.f32.partialorder %v4009, 8.507059e+37
  %v4011 = vand.u32 %v3909, 2147483648
  %v4012 = vor.u32 1.1754944e-38, %v4011
  %v4013 = vsel %vm4010, %v4012, %v4008
  %v4014 = vmul.f32 1.0, %v4013
  %vm4015 = vcmask 916480
  %4016 = vst.msk [vmem:[%s10] sm:$0xff] %vm4015, %v3924
  %4017 = vst.msk [vmem:[%s10 + $0x8] sm:$0xff] %vm4015, %v3939
  %4018 = vst.msk [vmem:[%s10 + $0x10] sm:$0xff] %vm4015, %v3954
  %4019 = vst.msk [vmem:[%s10 + $0x18] sm:$0xff] %vm4015, %v3969
  %4020 = vst.msk [vmem:[%s10 + $0x20] sm:$0xff] %vm4015, %v3984
  %4021 = vst.msk [vmem:[%s10 + $0x28] sm:$0xff] %vm4015, %v3999
  %4022 = vst.msk [vmem:[%s10 + $0x30] sm:$0xff] %vm4015, %v4014
  // Predicated region
  $region42: #{decoder_cnn_forward.3} parent=0 // pred_check
    _
  $region43: #{decoder_cnn_forward.3} parent=0 // pred_check_branch
    %4024 = sbr.rel (0) target = $region45
  $region44: #{decoder_cnn_forward.3} parent=0 // pred_region
    _
  $region45: #{decoder_cnn_forward.3} parent=0 // pred_fallthru
    _
  // Predicated region
  $region46: #{decoder_cnn_forward.3} parent=0 // pred_check
    _
  $region47: #{decoder_cnn_forward.3} parent=0 // pred_check_branch
    %4026 = sbr.rel (0) target = $region49
  $region48: #{decoder_cnn_forward.3} parent=0 // pred_region
    _
  $region49: #{decoder_cnn_forward.3} parent=0 // pred_fallthru
    _

</llo_original>
